<compile_context>
chip_gen: v7x
topology: tpu7x:2x2x1
jax: 0.10.0
libtpu: 0.0.40
codegen_flags: <defaults>
</compile_context>

<pallas_src>
import math

import jax
import jax.numpy as jnp
from jax.experimental import pallas as pl
from jax.experimental.pallas import tpu as pltpu

NUM_HEADS = 4
LN_EPS = 1e-12


# ----------------------------------------------------------------------------- helpers
def _gelu(x):
    # tanh-approximate GELU (EUP-friendly).
    # TODO(synk): switch to erf-based GELU if bit parity with HF DistilBERT matters.
    c = math.sqrt(2.0 / math.pi)
    return 0.5 * x * (1.0 + jnp.tanh(c * (x + 0.044715 * x * x * x)))


def _layernorm(x, g, b):
    mu = jnp.mean(x, axis=-1, keepdims=True)
    var = jnp.mean((x - mu) ** 2, axis=-1, keepdims=True)
    return (x - mu) * jax.lax.rsqrt(var + LN_EPS) * g + b


# ----------------------------------------------------------------------------- kernel
def fused_encoder_kernel(
    x0_ref, mask_ref,
    wqkv_ref, bqkv_ref, wo_ref, bo_ref, ln1g_ref, ln1b_ref,
    wf1_ref, bf1_ref, wf2_ref, bf2_ref, ln2g_ref, ln2b_ref,
    wp_ref, bp_ref, wc_ref, bc_ref, onehot_ref,
    hs_ref, logits_ref, nll_ref,
    x_scr):
    """3 encoder layers + classification head, fused.

    grid = (batch_tiles, num_layers); layer axis innermost; the activation for the
    current batch tile lives in x_scr (VMEM) across the layer grid steps.
    """
    l = pl.program_id(1)
    nl = pl.num_programs(1)
    TB, S, H = x0_ref.shape
    TBS = TB * S
    NH = NUM_HEADS
    dh = H // NH
    scale = 1.0 / math.sqrt(dh)

    # ---- layer 0: load the (wrapper-normalized) embeddings into the resident scratch ----
    @pl.when(l == 0)
    def _init():
        x_scr[...] = x0_ref[...].reshape(TBS, H)
        logits_ref[...] = jnp.zeros_like(logits_ref)
        nll_ref[...] = jnp.zeros_like(nll_ref)

    x = x_scr[...]                                   # (TBS, H) f32, resident in VMEM

    # ---- attention: fused QKV projection, one MXU matmul (bf16 x bf16 -> f32) ----
    qkv = jnp.dot(x.astype(jnp.bfloat16), wqkv_ref[0],
                  preferred_element_type=jnp.float32) + bqkv_ref[0]     # (TBS, 3H) f32
    qkvb = qkv.astype(jnp.bfloat16)                  # single cast pass over the slab
    q = qkvb[:, 0 * H:1 * H] * scale                 # fold 1/sqrt(dh) into q once
    k = qkvb[:, 1 * H:2 * H]
    v = qkvb[:, 2 * H:3 * H]

    # heads-batched attention: regroup heads into the leading batch dim ONCE, then one
    # batched einsum per stage (single score / softmax / context pass for all heads).
    def split_heads(t):                              # (TBS, H) -> (NH*TB, S, dh)
        return jnp.stack(
            [t[:, h * dh:(h + 1) * dh].reshape(TB, S, dh) for h in range(NH)],
            axis=0).reshape(NH * TB, S, dh)

    qh, kh, vh = split_heads(q), split_heads(k), split_heads(v)

    sc = jnp.einsum("bqd,bkd->bqk", qh, kh,
                    preferred_element_type=jnp.float32)                 # (NH*TB, S, S)
    sc = sc.reshape(NH, TB, S, S) + mask_ref[...][None, :, None, :]     # additive mask
    sc = sc - jnp.max(sc, axis=-1, keepdims=True)
    p = jnp.exp(sc)
    p = p * pl.reciprocal(jnp.sum(p, axis=-1, keepdims=True), approx=True)
    ctx = jnp.einsum("bqk,bkd->bqd",
                     p.reshape(NH * TB, S, S).astype(jnp.bfloat16), vh,
                     preferred_element_type=jnp.float32)                # (NH*TB, S, dh)
    ctx = ctx.reshape(NH, TB, S, dh)

    # out-projection as a block-matmul sum over heads: mathematically identical to
    # concat(ctx_h) @ wo, but needs no lane-axis concat, no ctx scratch, and no
    # sub-128-lane stores (every store in this kernel is lane-dense).
    wo = wo_ref[0]                                                      # (H, H) bf16
    attn = jnp.zeros((TBS, H), jnp.float32)
    for h in range(NH):
        attn = attn + jnp.dot(ctx[h].reshape(TBS, dh).astype(jnp.bfloat16),
                              wo[h * dh:(h + 1) * dh, :],
                              preferred_element_type=jnp.float32)
    attn = attn + bo_ref[0]
    h1 = _layernorm(x + attn, ln1g_ref[0], ln1b_ref[0])

    # ---- FFN: batch-fused matmuls ----
    f = jnp.dot(h1.astype(jnp.bfloat16), wf1_ref[0],
                preferred_element_type=jnp.float32) + bf1_ref[0]
    f = _gelu(f)
    y = jnp.dot(f.astype(jnp.bfloat16), wf2_ref[0],
                preferred_element_type=jnp.float32) + bf2_ref[0]
    y = _layernorm(h1 + y, ln2g_ref[0], ln2b_ref[0])

    x_scr[...] = y                                   # carry to next layer (VMEM)
    hs_ref[0] = y.reshape(TB, S, H).astype(hs_ref.dtype)   # bf16 writeback per layer

    # ---- classification head fused into the final layer step ----
    @pl.when(l == nl - 1)
    def _head():
        cls = y.reshape(TB, S, H)[:, 0, :]           # (TB, H) CLS token
        hp = jnp.dot(cls.astype(jnp.bfloat16), wp_ref[...],
                     preferred_element_type=jnp.float32) + bp_ref[...]
        # Faithful to ModifiedModel3.forward: pre_classifier -> classifier directly
        # (no ReLU in between); dropout after the classifier is identity at eval.
        logits = jnp.dot(hp.astype(jnp.bfloat16), wc_ref[...],
                         preferred_element_type=jnp.float32) + bc_ref[...]  # (TB, LPAD)
        logits_ref[...] = logits                     # 128-lane-dense padded slab

        # Per-example NLL (padded logits are ~-1e9 so they never affect max / LSE,
        # padded one-hot entries are zero). Mean over the batch happens in the wrapper
        # so the batch-tile grid axis stays "parallel"-safe.
        m = jnp.max(logits, axis=-1, keepdims=True)
        lse = jnp.log(jnp.sum(jnp.exp(logits - m), axis=-1, keepdims=True)) + m
        nll_ref[...] = lse - jnp.sum(onehot_ref[...] * logits, axis=-1, keepdims=True)


# ----------------------------------------------------------------------------- wrapper
def run_fused_model(x0, mask_bias, p, onehot, *, batch_tile=None):
    B, S, H = x0.shape
    NL = p["wqkv"].shape[0]
    LPAD = p["wc"].shape[1]
    TB = B if batch_tile is None else batch_tile
    assert B % TB == 0, "batch must be divisible by the batch tile"
    num_bt = B // TB

    def full(shape):
        nd = len(shape)
        return pl.BlockSpec(shape, lambda bt, l, nd=nd: (0,) * nd)

    def per_layer(shape):
        nd = len(shape)
        blk = (1,) + tuple(shape[1:])
        return pl.BlockSpec(blk, lambda bt, l, nd=nd: (l,) + (0,) * (nd - 1))

    def per_batch(shape):
        nd = len(shape)
        blk = (TB,) + tuple(shape[1:])
        return pl.BlockSpec(blk, lambda bt, l, nd=nd: (bt,) + (0,) * (nd - 1))

    args = (x0, mask_bias,
            p["wqkv"], p["bqkv"], p["wo"], p["bo"], p["ln1g"], p["ln1b"],
            p["wf1"], p["bf1"], p["wf2"], p["bf2"], p["ln2g"], p["ln2b"],
            p["wp"], p["bp"], p["wc"], p["bc"], onehot)

    in_specs = [
        per_batch(x0.shape), per_batch(mask_bias.shape),
        per_layer(p["wqkv"].shape), per_layer(p["bqkv"].shape),
        per_layer(p["wo"].shape), per_layer(p["bo"].shape),
        per_layer(p["ln1g"].shape), per_layer(p["ln1b"].shape),
        per_layer(p["wf1"].shape), per_layer(p["bf1"].shape),
        per_layer(p["wf2"].shape), per_layer(p["bf2"].shape),
        per_layer(p["ln2g"].shape), per_layer(p["ln2b"].shape),
        full(p["wp"].shape), full(p["bp"].shape),
        full(p["wc"].shape), full(p["bc"].shape), per_batch(onehot.shape),
    ]

    out_shape = (
        jax.ShapeDtypeStruct((NL, B, S, H), jnp.bfloat16),   # hidden_states[1..NL]
        jax.ShapeDtypeStruct((B, LPAD), jnp.float32),        # padded logits
        jax.ShapeDtypeStruct((B, 1), jnp.float32),           # per-example NLL
    )
    out_specs = (
        pl.BlockSpec((1, TB, S, H), lambda bt, l: (l, bt, 0, 0)),
        pl.BlockSpec((TB, LPAD), lambda bt, l: (bt, 0)),
        pl.BlockSpec((TB, 1), lambda bt, l: (bt, 0)),
    )

    return pl.pallas_call(
        fused_encoder_kernel,
        out_shape=out_shape,
        grid=(num_bt, NL),                                   # layer axis innermost
        in_specs=in_specs,
        out_specs=out_specs,
        scratch_shapes=[pltpu.VMEM((TB * S, H), jnp.float32)],  # resident activation
        compiler_params=pltpu.CompilerParams(
            # batch tiles shard across v7x's 2 TensorCores; layer axis is sequential
            # (activation carried in VMEM scratch).
            dimension_semantics=("parallel", "arbitrary"),
            # Explicit scoped-VMEM budget (safe on v5e/v6e/v7x); resize to the tiled
            # working set (<= ~56 MiB on v7x) for real DistilBERT dims.
            vmem_limit_bytes=48 * 1024 * 1024),
    )(*args)


# ----------------------------------------------------------------------------- model
def init_params(key, vocab, seq, hidden, ffn, num_labels, num_layers=3):
    keys = iter(jax.random.split(key, 16))
    H, F, NL = hidden, ffn, num_layers
    lpad = max(128, ((num_labels + 127) // 128) * 128)   # lane-dense classifier width

    def dense(shape, dtype=jnp.float32):
        return (0.02 * jax.random.normal(next(keys), shape, jnp.float32)).astype(dtype)

    return {
        "word_emb": dense((vocab, H)),
        "pos_emb": dense((seq, H)),
        "emb_ln_g": jnp.ones((1, H), jnp.float32),
        "emb_ln_b": jnp.zeros((1, H), jnp.float32),
        # per-layer weights stacked on a leading layer axis; matmul operands in bf16
        "wqkv": dense((NL, H, 3 * H), jnp.bfloat16),
        "bqkv": jnp.zeros((NL, 1, 3 * H), jnp.float32),
        "wo": dense((NL, H, H), jnp.bfloat16),
        "bo": jnp.zeros((NL, 1, H), jnp.float32),
        "ln1g": jnp.ones((NL, 1, H), jnp.float32),
        "ln1b": jnp.zeros((NL, 1, H), jnp.float32),
        "wf1": dense((NL, H, F), jnp.bfloat16),
        "bf1": jnp.zeros((NL, 1, F), jnp.float32),
        "wf2": dense((NL, F, H), jnp.bfloat16),
        "bf2": jnp.zeros((NL, 1, H), jnp.float32),
        "ln2g": jnp.ones((NL, 1, H), jnp.float32),
        "ln2b": jnp.zeros((NL, 1, H), jnp.float32),
        # classification head, weights pre-transposed to (in, out); classifier padded
        # to 128 lanes, padded bias = -1e9 so padding never affects softmax / argmax.
        "wp": dense((H, H), jnp.bfloat16),
        "bp": jnp.zeros((1, H), jnp.float32),
        "wc": jnp.concatenate(
            [dense((H, num_labels)),
             jnp.zeros((H, lpad - num_labels), jnp.float32)], axis=1).astype(jnp.bfloat16),
        "bc": jnp.concatenate(
            [jnp.zeros((1, num_labels), jnp.float32),
             jnp.full((1, lpad - num_labels), -1e9, jnp.float32)], axis=1),
        "num_labels": num_labels,
    }


def modified_model3_forward(params, input_ids, attention_mask, labels=None):
    B, S = input_ids.shape
    NL = params["wqkv"].shape[0]
    LPAD = params["wc"].shape[1]
    num_labels = params["num_labels"]

    # embeddings (glue: gather + embedding LayerNorm in plain XLA; hidden_states[0] is
    # produced here so the step-0-only buffers are never pinned in kernel VMEM).
    emb_raw = params["word_emb"][input_ids] + params["pos_emb"][None, :S, :]
    hs0 = _layernorm(emb_raw, params["emb_ln_g"], params["emb_ln_b"])
    # additive attention-mask bias, kept f32 (softmax math stays f32 in-kernel)
    mask_bias = (1.0 - attention_mask.astype(jnp.float32)) * -1e9       # (B, S)

    if labels is not None:
        # NOTE: labels must be < num_labels; out-of-range labels hit a -1e9 pad column.
        onehot = jax.nn.one_hot(labels, LPAD, dtype=jnp.float32)
    else:
        onehot = jnp.zeros((B, LPAD), jnp.float32)

    hs, logits_pad, nll = run_fused_model(hs0, mask_bias, params, onehot)

    # kernel emits per-layer hidden states in bf16 (halved writeback bandwidth);
    # cast back to f32 here for interface fidelity (skip if caller only needs logits).
    hidden_states = (hs0,) + tuple(hs[i].astype(jnp.float32) for i in range(NL))
    logits = logits_pad[:, :num_labels]              # strip lane padding

    # TODO(synk): attention probability tensors are not materialized (None here).
    return {
        "loss": jnp.mean(nll) if labels is not None else None,
        "logits": logits,
        "hidden_states": hidden_states,
        "attentions": None,
    }


# ----------------------------------------------------------------------------- main
if __name__ == "__main__":
    B, S, H, F, L, V = 2, 8, 32, 64, 3, 50

    key = jax.random.PRNGKey(0)
    pkey, ikey, lkey = jax.random.split(key, 3)

    params = init_params(pkey, vocab=V, seq=S, hidden=H, ffn=F, num_labels=L)

    input_ids = jax.random.randint(ikey, (B, S), 0, V, dtype=jnp.int32)
    attention_mask = jnp.ones((B, S), dtype=jnp.int32).at[1, 6:].set(0)
    labels = jax.random.randint(lkey, (B,), 0, L, dtype=jnp.int32)

    out = modified_model3_forward(params, input_ids, attention_mask, labels=labels)
    jax.block_until_ready((out["loss"], out["logits"], out["hidden_states"]))

    print("KERNEL_OK")
</pallas_src>

<mosaic_0001>
module attributes {stable_mosaic.version = 11 : i64} {
  func.func @fused_encoder_kernel(%arg0: i32, %arg1: i32, %arg2: memref<2x8x32xf32, #tpu.memory_space<vmem>>, %arg3: memref<2x8xf32, #tpu.memory_space<vmem>>, %arg4: memref<1x32x96xbf16, #tpu.memory_space<vmem>>, %arg5: memref<1x1x96xf32, #tpu.memory_space<vmem>>, %arg6: memref<1x32x32xbf16, #tpu.memory_space<vmem>>, %arg7: memref<1x1x32xf32, #tpu.memory_space<vmem>>, %arg8: memref<1x1x32xf32, #tpu.memory_space<vmem>>, %arg9: memref<1x1x32xf32, #tpu.memory_space<vmem>>, %arg10: memref<1x32x64xbf16, #tpu.memory_space<vmem>>, %arg11: memref<1x1x64xf32, #tpu.memory_space<vmem>>, %arg12: memref<1x64x32xbf16, #tpu.memory_space<vmem>>, %arg13: memref<1x1x32xf32, #tpu.memory_space<vmem>>, %arg14: memref<1x1x32xf32, #tpu.memory_space<vmem>>, %arg15: memref<1x1x32xf32, #tpu.memory_space<vmem>>, %arg16: memref<32x32xbf16, #tpu.memory_space<vmem>>, %arg17: memref<1x32xf32, #tpu.memory_space<vmem>>, %arg18: memref<32x128xbf16, #tpu.memory_space<vmem>>, %arg19: memref<1x128xf32, #tpu.memory_space<vmem>>, %arg20: memref<2x128xf32, #tpu.memory_space<vmem>>, %arg21: memref<1x2x8x32xbf16, #tpu.memory_space<vmem>>, %arg22: memref<2x128xf32, #tpu.memory_space<vmem>>, %arg23: memref<2x1xf32, #tpu.memory_space<vmem>>, %arg24: memref<16x32xf32, #tpu.memory_space<vmem>>) attributes {dimension_semantics = [#tpu.dimension_semantics<parallel>, #tpu.dimension_semantics<arbitrary>], iteration_bounds = array<i64: 1, 3>, scalar_prefetch = 0 : i64, scratch_operands = 1 : i64, tpu.core_type = #tpu.core_type<tc>, window_params = [{transform_indices = @transform_0, window_bounds = array<i64: 2, 8, 32>}, {transform_indices = @transform_1, window_bounds = array<i64: 2, 8>}, {transform_indices = @transform_2, window_bounds = array<i64: 1, 32, 96>}, {transform_indices = @transform_3, window_bounds = array<i64: 1, 1, 96>}, {transform_indices = @transform_4, window_bounds = array<i64: 1, 32, 32>}, {transform_indices = @transform_5, window_bounds = array<i64: 1, 1, 32>}, {transform_indices = @transform_6, window_bounds = array<i64: 1, 1, 32>}, {transform_indices = @transform_7, window_bounds = array<i64: 1, 1, 32>}, {transform_indices = @transform_8, window_bounds = array<i64: 1, 32, 64>}, {transform_indices = @transform_9, window_bounds = array<i64: 1, 1, 64>}, {transform_indices = @transform_10, window_bounds = array<i64: 1, 64, 32>}, {transform_indices = @transform_11, window_bounds = array<i64: 1, 1, 32>}, {transform_indices = @transform_12, window_bounds = array<i64: 1, 1, 32>}, {transform_indices = @transform_13, window_bounds = array<i64: 1, 1, 32>}, {pipeline_mode = #tpu.pipeline_mode<synchronous>, transform_indices = @transform_14, window_bounds = array<i64: 32, 32>}, {pipeline_mode = #tpu.pipeline_mode<synchronous>, transform_indices = @transform_15, window_bounds = array<i64: 1, 32>}, {pipeline_mode = #tpu.pipeline_mode<synchronous>, transform_indices = @transform_16, window_bounds = array<i64: 32, 128>}, {pipeline_mode = #tpu.pipeline_mode<synchronous>, transform_indices = @transform_17, window_bounds = array<i64: 1, 128>}, {transform_indices = @transform_18, window_bounds = array<i64: 2, 128>}, {transform_indices = @transform_19, window_bounds = array<i64: 1, 2, 8, 32>}, {transform_indices = @transform_20, window_bounds = array<i64: 2, 128>}, {transform_indices = @transform_21, window_bounds = array<i64: 2, 1>}]} {
    %c0_i32 = arith.constant 0 : i32
    %0 = arith.cmpi eq, %arg1, %c0_i32 : i32
    %1 = arith.extui %0 : i1 to i32
    %c0_i32_0 = arith.constant 0 : i32
    %2 = arith.cmpi ne, %1, %c0_i32_0 : i32
    scf.if %2 {
      %c0_73 = arith.constant 0 : index
      %c0_74 = arith.constant 0 : index
      %c0_75 = arith.constant 0 : index
      %207 = vector.load %arg2[%c0_73, %c0_74, %c0_75] : memref<2x8x32xf32, #tpu.memory_space<vmem>>, vector<2x8x32xf32>
      %208 = vector.shape_cast %207 : vector<2x8x32xf32> to vector<16x32xf32>
      %c0_76 = arith.constant 0 : index
      %c0_77 = arith.constant 0 : index
      %209 = vector.load %arg24[%c0_76, %c0_77] : memref<16x32xf32, #tpu.memory_space<vmem>>, vector<16x32xf32>
      tpu.vector_store %arg24[%c0_76, %c0_77], %208 {strides = array<i32>} : memref<16x32xf32, #tpu.memory_space<vmem>>, vector<16x32xf32>,
      %cst_78 = arith.constant 0.000000e+00 : f32
      %210 = vector.broadcast %cst_78 : f32 to vector<2x128xf32>
      %c0_79 = arith.constant 0 : index
      %c0_80 = arith.constant 0 : index
      %211 = vector.load %arg22[%c0_79, %c0_80] : memref<2x128xf32, #tpu.memory_space<vmem>>, vector<2x128xf32>
      tpu.vector_store %arg22[%c0_79, %c0_80], %210 {strides = array<i32>} : memref<2x128xf32, #tpu.memory_space<vmem>>, vector<2x128xf32>,
      %cst_81 = arith.constant 0.000000e+00 : f32
      %212 = vector.broadcast %cst_81 : f32 to vector<2x1xf32>
      %c0_82 = arith.constant 0 : index
      %c0_83 = arith.constant 0 : index
      %213 = vector.load %arg23[%c0_82, %c0_83] : memref<2x1xf32, #tpu.memory_space<vmem>>, vector<2x1xf32>
      tpu.vector_store %arg23[%c0_82, %c0_83], %212 {strides = array<i32>} : memref<2x1xf32, #tpu.memory_space<vmem>>, vector<2x1xf32>,
    } else {
    }
    %c0 = arith.constant 0 : index
    %c0_1 = arith.constant 0 : index
    %3 = vector.load %arg24[%c0, %c0_1] : memref<16x32xf32, #tpu.memory_space<vmem>>, vector<16x32xf32>
    %4 = arith.truncf %3 : vector<16x32xf32> to vector<16x32xbf16>
    %c0_2 = arith.constant 0 : index
    %c0_3 = arith.constant 0 : index
    %c0_4 = arith.constant 0 : index
    %5 = vector.load %arg4[%c0_2, %c0_3, %c0_4] : memref<1x32x96xbf16, #tpu.memory_space<vmem>>, vector<1x32x96xbf16>
    %6 = vector.shape_cast %5 : vector<1x32x96xbf16> to vector<32x96xbf16>
    %cst = arith.constant dense<0.000000e+00> : vector<16x96xf32>
    %7 = tpu.matmul %4, %6, %cst {dimension_numbers = #tpu.dot_dimension_numbers<[1], [0], [0], [1], [0, 0, 1, 1], [], []>} : vector<16x32xbf16>, vector<32x96xbf16>, vector<16x96xf32> -> vector<16x96xf32>
    %c0_5 = arith.constant 0 : index
    %c0_6 = arith.constant 0 : index
    %c0_7 = arith.constant 0 : index
    %8 = vector.load %arg5[%c0_5, %c0_6, %c0_7] : memref<1x1x96xf32, #tpu.memory_space<vmem>>, vector<1x1x96xf32>
    %9 = vector.shape_cast %8 : vector<1x1x96xf32> to vector<1x96xf32>
    %10 = vector.broadcast %9 : vector<1x96xf32> to vector<16x96xf32>
    %11 = arith.addf %7, %10 : vector<16x96xf32>
    %12 = arith.truncf %11 : vector<16x96xf32> to vector<16x96xbf16>
    %13 = vector.extract_strided_slice %12 {offsets = [0, 0], sizes = [16, 32], strides = [1, 1]} : vector<16x96xbf16> to vector<16x32xbf16>
    %cst_8 = arith.constant 3.535160e-01 : bf16
    %14 = vector.broadcast %cst_8 : bf16 to vector<16x32xbf16>
    %15 = arith.mulf %13, %14 : vector<16x32xbf16>
    %16 = vector.extract_strided_slice %12 {offsets = [0, 32], sizes = [16, 32], strides = [1, 1]} : vector<16x96xbf16> to vector<16x32xbf16>
    %17 = vector.extract_strided_slice %12 {offsets = [0, 64], sizes = [16, 32], strides = [1, 1]} : vector<16x96xbf16> to vector<16x32xbf16>
    %18 = vector.extract_strided_slice %15 {offsets = [0, 0], sizes = [16, 8], strides = [1, 1]} : vector<16x32xbf16> to vector<16x8xbf16>
    %19 = vector.shape_cast %18 : vector<16x8xbf16> to vector<2x8x8xbf16>
    %20 = vector.extract_strided_slice %15 {offsets = [0, 8], sizes = [16, 8], strides = [1, 1]} : vector<16x32xbf16> to vector<16x8xbf16>
    %21 = vector.shape_cast %20 : vector<16x8xbf16> to vector<2x8x8xbf16>
    %22 = vector.extract_strided_slice %15 {offsets = [0, 16], sizes = [16, 8], strides = [1, 1]} : vector<16x32xbf16> to vector<16x8xbf16>
    %23 = vector.shape_cast %22 : vector<16x8xbf16> to vector<2x8x8xbf16>
    %24 = vector.extract_strided_slice %15 {offsets = [0, 24], sizes = [16, 8], strides = [1, 1]} : vector<16x32xbf16> to vector<16x8xbf16>
    %25 = vector.shape_cast %24 : vector<16x8xbf16> to vector<2x8x8xbf16>
    %26 = vector.shape_cast %19 : vector<2x8x8xbf16> to vector<1x2x8x8xbf16>
    %27 = vector.shape_cast %21 : vector<2x8x8xbf16> to vector<1x2x8x8xbf16>
    %28 = vector.shape_cast %23 : vector<2x8x8xbf16> to vector<1x2x8x8xbf16>
    %29 = vector.shape_cast %25 : vector<2x8x8xbf16> to vector<1x2x8x8xbf16>
    %30 = tpu.concatenate %26, %27, %28, %29 in 0 : vector<1x2x8x8xbf16>, vector<1x2x8x8xbf16>, vector<1x2x8x8xbf16>, vector<1x2x8x8xbf16> -> vector<4x2x8x8xbf16>
    %31 = vector.shape_cast %30 : vector<4x2x8x8xbf16> to vector<8x8x8xbf16>
    %32 = vector.extract_strided_slice %16 {offsets = [0, 0], sizes = [16, 8], strides = [1, 1]} : vector<16x32xbf16> to vector<16x8xbf16>
    %33 = vector.shape_cast %32 : vector<16x8xbf16> to vector<2x8x8xbf16>
    %34 = vector.extract_strided_slice %16 {offsets = [0, 8], sizes = [16, 8], strides = [1, 1]} : vector<16x32xbf16> to vector<16x8xbf16>
    %35 = vector.shape_cast %34 : vector<16x8xbf16> to vector<2x8x8xbf16>
    %36 = vector.extract_strided_slice %16 {offsets = [0, 16], sizes = [16, 8], strides = [1, 1]} : vector<16x32xbf16> to vector<16x8xbf16>
    %37 = vector.shape_cast %36 : vector<16x8xbf16> to vector<2x8x8xbf16>
    %38 = vector.extract_strided_slice %16 {offsets = [0, 24], sizes = [16, 8], strides = [1, 1]} : vector<16x32xbf16> to vector<16x8xbf16>
    %39 = vector.shape_cast %38 : vector<16x8xbf16> to vector<2x8x8xbf16>
    %40 = vector.shape_cast %33 : vector<2x8x8xbf16> to vector<1x2x8x8xbf16>
    %41 = vector.shape_cast %35 : vector<2x8x8xbf16> to vector<1x2x8x8xbf16>
    %42 = vector.shape_cast %37 : vector<2x8x8xbf16> to vector<1x2x8x8xbf16>
    %43 = vector.shape_cast %39 : vector<2x8x8xbf16> to vector<1x2x8x8xbf16>
    %44 = tpu.concatenate %40, %41, %42, %43 in 0 : vector<1x2x8x8xbf16>, vector<1x2x8x8xbf16>, vector<1x2x8x8xbf16>, vector<1x2x8x8xbf16> -> vector<4x2x8x8xbf16>
    %45 = vector.shape_cast %44 : vector<4x2x8x8xbf16> to vector<8x8x8xbf16>
    %46 = vector.extract_strided_slice %17 {offsets = [0, 0], sizes = [16, 8], strides = [1, 1]} : vector<16x32xbf16> to vector<16x8xbf16>
    %47 = vector.shape_cast %46 : vector<16x8xbf16> to vector<2x8x8xbf16>
    %48 = vector.extract_strided_slice %17 {offsets = [0, 8], sizes = [16, 8], strides = [1, 1]} : vector<16x32xbf16> to vector<16x8xbf16>
    %49 = vector.shape_cast %48 : vector<16x8xbf16> to vector<2x8x8xbf16>
    %50 = vector.extract_strided_slice %17 {offsets = [0, 16], sizes = [16, 8], strides = [1, 1]} : vector<16x32xbf16> to vector<16x8xbf16>
    %51 = vector.shape_cast %50 : vector<16x8xbf16> to vector<2x8x8xbf16>
    %52 = vector.extract_strided_slice %17 {offsets = [0, 24], sizes = [16, 8], strides = [1, 1]} : vector<16x32xbf16> to vector<16x8xbf16>
    %53 = vector.shape_cast %52 : vector<16x8xbf16> to vector<2x8x8xbf16>
    %54 = vector.shape_cast %47 : vector<2x8x8xbf16> to vector<1x2x8x8xbf16>
    %55 = vector.shape_cast %49 : vector<2x8x8xbf16> to vector<1x2x8x8xbf16>
    %56 = vector.shape_cast %51 : vector<2x8x8xbf16> to vector<1x2x8x8xbf16>
    %57 = vector.shape_cast %53 : vector<2x8x8xbf16> to vector<1x2x8x8xbf16>
    %58 = tpu.concatenate %54, %55, %56, %57 in 0 : vector<1x2x8x8xbf16>, vector<1x2x8x8xbf16>, vector<1x2x8x8xbf16>, vector<1x2x8x8xbf16> -> vector<4x2x8x8xbf16>
    %59 = vector.shape_cast %58 : vector<4x2x8x8xbf16> to vector<8x8x8xbf16>
    "tpu.trace_start"() <{level = 10 : i32, message = "bqd,bkd->bqk"}> : () -> ()
    %cst_9 = arith.constant dense<0.000000e+00> : vector<8x8x8xf32>
    %60 = tpu.matmul %31, %45, %cst_9 {dimension_numbers = #tpu.dot_dimension_numbers<[2], [2], [1], [1], [0, 0, 0, 1, 1, 1], [0], [0]>} : vector<8x8x8xbf16>, vector<8x8x8xbf16>, vector<8x8x8xf32> -> vector<8x8x8xf32>
    "tpu.trace_stop"() : () -> ()
    %61 = vector.shape_cast %60 : vector<8x8x8xf32> to vector<4x2x8x8xf32>
    %c0_10 = arith.constant 0 : index
    %c0_11 = arith.constant 0 : index
    %62 = vector.load %arg3[%c0_10, %c0_11] : memref<2x8xf32, #tpu.memory_space<vmem>>, vector<2x8xf32>
    %63 = vector.shape_cast %62 : vector<2x8xf32> to vector<1x2x1x8xf32>
    %64 = vector.broadcast %63 : vector<1x2x1x8xf32> to vector<4x2x8x8xf32>
    %65 = arith.addf %61, %64 : vector<4x2x8x8xf32>
    %cst_12 = arith.constant dense<0xFF800000> : vector<4x2x8xf32>
    %66 = vector.multi_reduction <maximumf>, %65, %cst_12 [3] : vector<4x2x8x8xf32> to vector<4x2x8xf32>
    %67 = vector.shape_cast %66 : vector<4x2x8xf32> to vector<4x2x8x1xf32>
    %68 = vector.broadcast %67 : vector<4x2x8x1xf32> to vector<4x2x8x8xf32>
    %69 = arith.subf %65, %68 : vector<4x2x8x8xf32>
    %70 = math.exp %69 : vector<4x2x8x8xf32>
    %cst_13 = arith.constant dense<0.000000e+00> : vector<4x2x8xf32>
    %71 = vector.multi_reduction <add>, %70, %cst_13 [3] : vector<4x2x8x8xf32> to vector<4x2x8xf32>
    %72 = vector.shape_cast %71 : vector<4x2x8xf32> to vector<4x2x8x1xf32>
    %73 = tpu.reciprocal %72 {approx = true} : vector<4x2x8x1xf32> -> vector<4x2x8x1xf32>
    %74 = vector.broadcast %73 : vector<4x2x8x1xf32> to vector<4x2x8x8xf32>
    %75 = arith.mulf %70, %74 : vector<4x2x8x8xf32>
    %76 = vector.shape_cast %75 : vector<4x2x8x8xf32> to vector<8x8x8xf32>
    %77 = arith.truncf %76 : vector<8x8x8xf32> to vector<8x8x8xbf16>
    "tpu.trace_start"() <{level = 10 : i32, message = "bqk,bkd->bqd"}> : () -> ()
    %cst_14 = arith.constant dense<0.000000e+00> : vector<8x8x8xf32>
    %78 = tpu.matmul %77, %59, %cst_14 {dimension_numbers = #tpu.dot_dimension_numbers<[2], [1], [1], [2], [0, 0, 0, 1, 1, 2], [0], [0]>} : vector<8x8x8xbf16>, vector<8x8x8xbf16>, vector<8x8x8xf32> -> vector<8x8x8xf32>
    "tpu.trace_stop"() : () -> ()
    %79 = vector.shape_cast %78 : vector<8x8x8xf32> to vector<4x2x8x8xf32>
    %c0_15 = arith.constant 0 : index
    %c0_16 = arith.constant 0 : index
    %c0_17 = arith.constant 0 : index
    %80 = vector.load %arg6[%c0_15, %c0_16, %c0_17] : memref<1x32x32xbf16, #tpu.memory_space<vmem>>, vector<1x32x32xbf16>
    %81 = vector.shape_cast %80 : vector<1x32x32xbf16> to vector<32x32xbf16>
    %cst_18 = arith.constant 0.000000e+00 : f32
    %82 = vector.broadcast %cst_18 : f32 to vector<16x32xf32>
    %83 = vector.extract_strided_slice %79 {offsets = [0, 0, 0, 0], sizes = [1, 2, 8, 8], strides = [1, 1, 1, 1]} : vector<4x2x8x8xf32> to vector<1x2x8x8xf32>
    %84 = vector.shape_cast %83 : vector<1x2x8x8xf32> to vector<2x8x8xf32>
    %85 = vector.shape_cast %84 : vector<2x8x8xf32> to vector<16x8xf32>
    %86 = arith.truncf %85 : vector<16x8xf32> to vector<16x8xbf16>
    %87 = vector.extract_strided_slice %81 {offsets = [0, 0], sizes = [8, 32], strides = [1, 1]} : vector<32x32xbf16> to vector<8x32xbf16>
    %cst_19 = arith.constant dense<0.000000e+00> : vector<16x32xf32>
    %88 = tpu.matmul %86, %87, %cst_19 {dimension_numbers = #tpu.dot_dimension_numbers<[1], [0], [0], [1], [0, 0, 1, 1], [], []>} : vector<16x8xbf16>, vector<8x32xbf16>, vector<16x32xf32> -> vector<16x32xf32>
    %89 = arith.addf %82, %88 : vector<16x32xf32>
    %90 = vector.extract_strided_slice %79 {offsets = [1, 0, 0, 0], sizes = [1, 2, 8, 8], strides = [1, 1, 1, 1]} : vector<4x2x8x8xf32> to vector<1x2x8x8xf32>
    %91 = vector.shape_cast %90 : vector<1x2x8x8xf32> to vector<2x8x8xf32>
    %92 = vector.shape_cast %91 : vector<2x8x8xf32> to vector<16x8xf32>
    %93 = arith.truncf %92 : vector<16x8xf32> to vector<16x8xbf16>
    %94 = vector.extract_strided_slice %81 {offsets = [8, 0], sizes = [8, 32], strides = [1, 1]} : vector<32x32xbf16> to vector<8x32xbf16>
    %cst_20 = arith.constant dense<0.000000e+00> : vector<16x32xf32>
    %95 = tpu.matmul %93, %94, %cst_20 {dimension_numbers = #tpu.dot_dimension_numbers<[1], [0], [0], [1], [0, 0, 1, 1], [], []>} : vector<16x8xbf16>, vector<8x32xbf16>, vector<16x32xf32> -> vector<16x32xf32>
    %96 = arith.addf %89, %95 : vector<16x32xf32>
    %97 = vector.extract_strided_slice %79 {offsets = [2, 0, 0, 0], sizes = [1, 2, 8, 8], strides = [1, 1, 1, 1]} : vector<4x2x8x8xf32> to vector<1x2x8x8xf32>
    %98 = vector.shape_cast %97 : vector<1x2x8x8xf32> to vector<2x8x8xf32>
    %99 = vector.shape_cast %98 : vector<2x8x8xf32> to vector<16x8xf32>
    %100 = arith.truncf %99 : vector<16x8xf32> to vector<16x8xbf16>
    %101 = vector.extract_strided_slice %81 {offsets = [16, 0], sizes = [8, 32], strides = [1, 1]} : vector<32x32xbf16> to vector<8x32xbf16>
    %cst_21 = arith.constant dense<0.000000e+00> : vector<16x32xf32>
    %102 = tpu.matmul %100, %101, %cst_21 {dimension_numbers = #tpu.dot_dimension_numbers<[1], [0], [0], [1], [0, 0, 1, 1], [], []>} : vector<16x8xbf16>, vector<8x32xbf16>, vector<16x32xf32> -> vector<16x32xf32>
    %103 = arith.addf %96, %102 : vector<16x32xf32>
    %104 = vector.extract_strided_slice %79 {offsets = [3, 0, 0, 0], sizes = [1, 2, 8, 8], strides = [1, 1, 1, 1]} : vector<4x2x8x8xf32> to vector<1x2x8x8xf32>
    %105 = vector.shape_cast %104 : vector<1x2x8x8xf32> to vector<2x8x8xf32>
    %106 = vector.shape_cast %105 : vector<2x8x8xf32> to vector<16x8xf32>
    %107 = arith.truncf %106 : vector<16x8xf32> to vector<16x8xbf16>
    %108 = vector.extract_strided_slice %81 {offsets = [24, 0], sizes = [8, 32], strides = [1, 1]} : vector<32x32xbf16> to vector<8x32xbf16>
    %cst_22 = arith.constant dense<0.000000e+00> : vector<16x32xf32>
    %109 = tpu.matmul %107, %108, %cst_22 {dimension_numbers = #tpu.dot_dimension_numbers<[1], [0], [0], [1], [0, 0, 1, 1], [], []>} : vector<16x8xbf16>, vector<8x32xbf16>, vector<16x32xf32> -> vector<16x32xf32>
    %110 = arith.addf %103, %109 : vector<16x32xf32>
    %c0_23 = arith.constant 0 : index
    %c0_24 = arith.constant 0 : index
    %c0_25 = arith.constant 0 : index
    %111 = vector.load %arg7[%c0_23, %c0_24, %c0_25] : memref<1x1x32xf32, #tpu.memory_space<vmem>>, vector<1x1x32xf32>
    %112 = vector.shape_cast %111 : vector<1x1x32xf32> to vector<1x32xf32>
    %113 = vector.broadcast %112 : vector<1x32xf32> to vector<16x32xf32>
    %114 = arith.addf %110, %113 : vector<16x32xf32>
    %115 = arith.addf %3, %114 : vector<16x32xf32>
    %c0_26 = arith.constant 0 : index
    %c0_27 = arith.constant 0 : index
    %c0_28 = arith.constant 0 : index
    %116 = vector.load %arg8[%c0_26, %c0_27, %c0_28] : memref<1x1x32xf32, #tpu.memory_space<vmem>>, vector<1x1x32xf32>
    %117 = vector.shape_cast %116 : vector<1x1x32xf32> to vector<1x32xf32>
    %c0_29 = arith.constant 0 : index
    %c0_30 = arith.constant 0 : index
    %c0_31 = arith.constant 0 : index
    %118 = vector.load %arg9[%c0_29, %c0_30, %c0_31] : memref<1x1x32xf32, #tpu.memory_space<vmem>>, vector<1x1x32xf32>
    %119 = vector.shape_cast %118 : vector<1x1x32xf32> to vector<1x32xf32>
    %cst_32 = arith.constant dense<0.000000e+00> : vector<16xf32>
    %120 = vector.multi_reduction <add>, %115, %cst_32 [1] : vector<16x32xf32> to vector<16xf32>
    %121 = vector.shape_cast %120 : vector<16xf32> to vector<16x1xf32>
    %cst_33 = arith.constant 3.200000e+01 : f32
    %122 = vector.broadcast %cst_33 : f32 to vector<16x1xf32>
    %123 = arith.divf %121, %122 : vector<16x1xf32>
    %124 = vector.broadcast %123 : vector<16x1xf32> to vector<16x32xf32>
    %125 = arith.subf %115, %124 : vector<16x32xf32>
    %126 = arith.mulf %125, %125 : vector<16x32xf32>
    %cst_34 = arith.constant dense<0.000000e+00> : vector<16xf32>
    %127 = vector.multi_reduction <add>, %126, %cst_34 [1] : vector<16x32xf32> to vector<16xf32>
    %128 = vector.shape_cast %127 : vector<16xf32> to vector<16x1xf32>
    %cst_35 = arith.constant 3.200000e+01 : f32
    %129 = vector.broadcast %cst_35 : f32 to vector<16x1xf32>
    %130 = arith.divf %128, %129 : vector<16x1xf32>
    %131 = vector.broadcast %123 : vector<16x1xf32> to vector<16x32xf32>
    %132 = arith.subf %115, %131 : vector<16x32xf32>
    %cst_36 = arith.constant 9.99999996E-13 : f32
    %133 = vector.broadcast %cst_36 : f32 to vector<16x1xf32>
    %134 = arith.addf %130, %133 : vector<16x1xf32>
    %135 = math.rsqrt %134 : vector<16x1xf32>
    %136 = vector.broadcast %135 : vector<16x1xf32> to vector<16x32xf32>
    %137 = arith.mulf %132, %136 : vector<16x32xf32>
    %138 = vector.broadcast %117 : vector<1x32xf32> to vector<16x32xf32>
    %139 = arith.mulf %137, %138 : vector<16x32xf32>
    %140 = vector.broadcast %119 : vector<1x32xf32> to vector<16x32xf32>
    %141 = arith.addf %139, %140 : vector<16x32xf32>
    %142 = arith.truncf %141 : vector<16x32xf32> to vector<16x32xbf16>
    %c0_37 = arith.constant 0 : index
    %c0_38 = arith.constant 0 : index
    %c0_39 = arith.constant 0 : index
    %143 = vector.load %arg10[%c0_37, %c0_38, %c0_39] : memref<1x32x64xbf16, #tpu.memory_space<vmem>>, vector<1x32x64xbf16>
    %144 = vector.shape_cast %143 : vector<1x32x64xbf16> to vector<32x64xbf16>
    %cst_40 = arith.constant dense<0.000000e+00> : vector<16x64xf32>
    %145 = tpu.matmul %142, %144, %cst_40 {dimension_numbers = #tpu.dot_dimension_numbers<[1], [0], [0], [1], [0, 0, 1, 1], [], []>} : vector<16x32xbf16>, vector<32x64xbf16>, vector<16x64xf32> -> vector<16x64xf32>
    %c0_41 = arith.constant 0 : index
    %c0_42 = arith.constant 0 : index
    %c0_43 = arith.constant 0 : index
    %146 = vector.load %arg11[%c0_41, %c0_42, %c0_43] : memref<1x1x64xf32, #tpu.memory_space<vmem>>, vector<1x1x64xf32>
    %147 = vector.shape_cast %146 : vector<1x1x64xf32> to vector<1x64xf32>
    %148 = vector.broadcast %147 : vector<1x64xf32> to vector<16x64xf32>
    %149 = arith.addf %145, %148 : vector<16x64xf32>
    %cst_44 = arith.constant 5.000000e-01 : f32
    %150 = vector.broadcast %cst_44 : f32 to vector<16x64xf32>
    %151 = arith.mulf %150, %149 : vector<16x64xf32>
    %cst_45 = arith.constant 4.471500e-02 : f32
    %152 = vector.broadcast %cst_45 : f32 to vector<16x64xf32>
    %153 = arith.mulf %152, %149 : vector<16x64xf32>
    %154 = arith.mulf %153, %149 : vector<16x64xf32>
    %155 = arith.mulf %154, %149 : vector<16x64xf32>
    %156 = arith.addf %149, %155 : vector<16x64xf32>
    %cst_46 = arith.constant 0.797884583 : f32
    %157 = vector.broadcast %cst_46 : f32 to vector<16x64xf32>
    %158 = arith.mulf %157, %156 : vector<16x64xf32>
    %159 = math.tanh %158 : vector<16x64xf32>
    %cst_47 = arith.constant 1.000000e+00 : f32
    %160 = vector.broadcast %cst_47 : f32 to vector<16x64xf32>
    %161 = arith.addf %160, %159 : vector<16x64xf32>
    %162 = arith.mulf %151, %161 : vector<16x64xf32>
    %163 = arith.truncf %162 : vector<16x64xf32> to vector<16x64xbf16>
    %c0_48 = arith.constant 0 : index
    %c0_49 = arith.constant 0 : index
    %c0_50 = arith.constant 0 : index
    %164 = vector.load %arg12[%c0_48, %c0_49, %c0_50] : memref<1x64x32xbf16, #tpu.memory_space<vmem>>, vector<1x64x32xbf16>
    %165 = vector.shape_cast %164 : vector<1x64x32xbf16> to vector<64x32xbf16>
    %cst_51 = arith.constant dense<0.000000e+00> : vector<16x32xf32>
    %166 = tpu.matmul %163, %165, %cst_51 {dimension_numbers = #tpu.dot_dimension_numbers<[1], [0], [0], [1], [0, 0, 1, 1], [], []>} : vector<16x64xbf16>, vector<64x32xbf16>, vector<16x32xf32> -> vector<16x32xf32>
    %c0_52 = arith.constant 0 : index
    %c0_53 = arith.constant 0 : index
    %c0_54 = arith.constant 0 : index
    %167 = vector.load %arg13[%c0_52, %c0_53, %c0_54] : memref<1x1x32xf32, #tpu.memory_space<vmem>>, vector<1x1x32xf32>
    %168 = vector.shape_cast %167 : vector<1x1x32xf32> to vector<1x32xf32>
    %169 = vector.broadcast %168 : vector<1x32xf32> to vector<16x32xf32>
    %170 = arith.addf %166, %169 : vector<16x32xf32>
    %171 = arith.addf %141, %170 : vector<16x32xf32>
    %c0_55 = arith.constant 0 : index
    %c0_56 = arith.constant 0 : index
    %c0_57 = arith.constant 0 : index
    %172 = vector.load %arg14[%c0_55, %c0_56, %c0_57] : memref<1x1x32xf32, #tpu.memory_space<vmem>>, vector<1x1x32xf32>
    %173 = vector.shape_cast %172 : vector<1x1x32xf32> to vector<1x32xf32>
    %c0_58 = arith.constant 0 : index
    %c0_59 = arith.constant 0 : index
    %c0_60 = arith.constant 0 : index
    %174 = vector.load %arg15[%c0_58, %c0_59, %c0_60] : memref<1x1x32xf32, #tpu.memory_space<vmem>>, vector<1x1x32xf32>
    %175 = vector.shape_cast %174 : vector<1x1x32xf32> to vector<1x32xf32>
    %cst_61 = arith.constant dense<0.000000e+00> : vector<16xf32>
    %176 = vector.multi_reduction <add>, %171, %cst_61 [1] : vector<16x32xf32> to vector<16xf32>
    %177 = vector.shape_cast %176 : vector<16xf32> to vector<16x1xf32>
    %cst_62 = arith.constant 3.200000e+01 : f32
    %178 = vector.broadcast %cst_62 : f32 to vector<16x1xf32>
    %179 = arith.divf %177, %178 : vector<16x1xf32>
    %180 = vector.broadcast %179 : vector<16x1xf32> to vector<16x32xf32>
    %181 = arith.subf %171, %180 : vector<16x32xf32>
    %182 = arith.mulf %181, %181 : vector<16x32xf32>
    %cst_63 = arith.constant dense<0.000000e+00> : vector<16xf32>
    %183 = vector.multi_reduction <add>, %182, %cst_63 [1] : vector<16x32xf32> to vector<16xf32>
    %184 = vector.shape_cast %183 : vector<16xf32> to vector<16x1xf32>
    %cst_64 = arith.constant 3.200000e+01 : f32
    %185 = vector.broadcast %cst_64 : f32 to vector<16x1xf32>
    %186 = arith.divf %184, %185 : vector<16x1xf32>
    %187 = vector.broadcast %179 : vector<16x1xf32> to vector<16x32xf32>
    %188 = arith.subf %171, %187 : vector<16x32xf32>
    %cst_65 = arith.constant 9.99999996E-13 : f32
    %189 = vector.broadcast %cst_65 : f32 to vector<16x1xf32>
    %190 = arith.addf %186, %189 : vector<16x1xf32>
    %191 = math.rsqrt %190 : vector<16x1xf32>
    %192 = vector.broadcast %191 : vector<16x1xf32> to vector<16x32xf32>
    %193 = arith.mulf %188, %192 : vector<16x32xf32>
    %194 = vector.broadcast %173 : vector<1x32xf32> to vector<16x32xf32>
    %195 = arith.mulf %193, %194 : vector<16x32xf32>
    %196 = vector.broadcast %175 : vector<1x32xf32> to vector<16x32xf32>
    %197 = arith.addf %195, %196 : vector<16x32xf32>
    %c0_66 = arith.constant 0 : index
    %c0_67 = arith.constant 0 : index
    %198 = vector.load %arg24[%c0_66, %c0_67] : memref<16x32xf32, #tpu.memory_space<vmem>>, vector<16x32xf32>
    tpu.vector_store %arg24[%c0_66, %c0_67], %197 {strides = array<i32>} : memref<16x32xf32, #tpu.memory_space<vmem>>, vector<16x32xf32>,
    %199 = vector.shape_cast %197 : vector<16x32xf32> to vector<2x8x32xf32>
    %200 = arith.truncf %199 : vector<2x8x32xf32> to vector<2x8x32xbf16>
    %c0_68 = arith.constant 0 : index
    %c0_69 = arith.constant 0 : index
    %c0_70 = arith.constant 0 : index
    %c0_71 = arith.constant 0 : index
    %201 = vector.load %arg21[%c0_68, %c0_69, %c0_70, %c0_71] : memref<1x2x8x32xbf16, #tpu.memory_space<vmem>>, vector<1x2x8x32xbf16>
    %202 = vector.shape_cast %201 : vector<1x2x8x32xbf16> to vector<2x8x32xbf16>
    %203 = vector.shape_cast %200 : vector<2x8x32xbf16> to vector<1x2x8x32xbf16>
    tpu.vector_store %arg21[%c0_68, %c0_69, %c0_70, %c0_71], %203 {strides = array<i32>} : memref<1x2x8x32xbf16, #tpu.memory_space<vmem>>, vector<1x2x8x32xbf16>,
    %c2_i32 = arith.constant 2 : i32
    %204 = arith.cmpi eq, %arg1, %c2_i32 : i32
    %205 = arith.extui %204 : i1 to i32
    %c0_i32_72 = arith.constant 0 : i32
    %206 = arith.cmpi ne, %205, %c0_i32_72 : i32
    scf.if %206 {
      %207 = vector.shape_cast %197 : vector<16x32xf32> to vector<2x8x32xf32>
      %208 = vector.extract_strided_slice %207 {offsets = [0, 0, 0], sizes = [2, 1, 32], strides = [1, 1, 1]} : vector<2x8x32xf32> to vector<2x1x32xf32>
      %209 = vector.shape_cast %208 : vector<2x1x32xf32> to vector<2x32xf32>
      %210 = arith.truncf %209 : vector<2x32xf32> to vector<2x32xbf16>
      %c0_73 = arith.constant 0 : index
      %c0_74 = arith.constant 0 : index
      %211 = vector.load %arg16[%c0_73, %c0_74] : memref<32x32xbf16, #tpu.memory_space<vmem>>, vector<32x32xbf16>
      %cst_75 = arith.constant dense<0.000000e+00> : vector<2x32xf32>
      %212 = tpu.matmul %210, %211, %cst_75 {dimension_numbers = #tpu.dot_dimension_numbers<[1], [0], [0], [1], [0, 0, 1, 1], [], []>} : vector<2x32xbf16>, vector<32x32xbf16>, vector<2x32xf32> -> vector<2x32xf32>
      %c0_76 = arith.constant 0 : index
      %c0_77 = arith.constant 0 : index
      %213 = vector.load %arg17[%c0_76, %c0_77] : memref<1x32xf32, #tpu.memory_space<vmem>>, vector<1x32xf32>
      %214 = vector.broadcast %213 : vector<1x32xf32> to vector<2x32xf32>
      %215 = arith.addf %212, %214 : vector<2x32xf32>
      %216 = arith.truncf %215 : vector<2x32xf32> to vector<2x32xbf16>
      %c0_78 = arith.constant 0 : index
      %c0_79 = arith.constant 0 : index
      %217 = vector.load %arg18[%c0_78, %c0_79] : memref<32x128xbf16, #tpu.memory_space<vmem>>, vector<32x128xbf16>
      %cst_80 = arith.constant dense<0.000000e+00> : vector<2x128xf32>
      %218 = tpu.matmul %216, %217, %cst_80 {dimension_numbers = #tpu.dot_dimension_numbers<[1], [0], [0], [1], [0, 0, 1, 1], [], []>} : vector<2x32xbf16>, vector<32x128xbf16>, vector<2x128xf32> -> vector<2x128xf32>
      %c0_81 = arith.constant 0 : index
      %c0_82 = arith.constant 0 : index
      %219 = vector.load %arg19[%c0_81, %c0_82] : memref<1x128xf32, #tpu.memory_space<vmem>>, vector<1x128xf32>
      %220 = vector.broadcast %219 : vector<1x128xf32> to vector<2x128xf32>
      %221 = arith.addf %218, %220 : vector<2x128xf32>
      %c0_83 = arith.constant 0 : index
      %c0_84 = arith.constant 0 : index
      %222 = vector.load %arg22[%c0_83, %c0_84] : memref<2x128xf32, #tpu.memory_space<vmem>>, vector<2x128xf32>
      tpu.vector_store %arg22[%c0_83, %c0_84], %221 {strides = array<i32>} : memref<2x128xf32, #tpu.memory_space<vmem>>, vector<2x128xf32>,
      %cst_85 = arith.constant dense<0xFF800000> : vector<2xf32>
      %223 = vector.multi_reduction <maximumf>, %221, %cst_85 [1] : vector<2x128xf32> to vector<2xf32>
      %224 = vector.shape_cast %223 : vector<2xf32> to vector<2x1xf32>
      %225 = vector.broadcast %224 : vector<2x1xf32> to vector<2x128xf32>
      %226 = arith.subf %221, %225 : vector<2x128xf32>
      %227 = math.exp %226 : vector<2x128xf32>
      %cst_86 = arith.constant dense<0.000000e+00> : vector<2xf32>
      %228 = vector.multi_reduction <add>, %227, %cst_86 [1] : vector<2x128xf32> to vector<2xf32>
      %229 = vector.shape_cast %228 : vector<2xf32> to vector<2x1xf32>
      %230 = math.log %229 : vector<2x1xf32>
      %231 = arith.addf %230, %224 : vector<2x1xf32>
      %c0_87 = arith.constant 0 : index
      %c0_88 = arith.constant 0 : index
      %232 = vector.load %arg20[%c0_87, %c0_88] : memref<2x128xf32, #tpu.memory_space<vmem>>, vector<2x128xf32>
      %233 = arith.mulf %232, %221 : vector<2x128xf32>
      %cst_89 = arith.constant dense<0.000000e+00> : vector<2xf32>
      %234 = vector.multi_reduction <add>, %233, %cst_89 [1] : vector<2x128xf32> to vector<2xf32>
      %235 = vector.shape_cast %234 : vector<2xf32> to vector<2x1xf32>
      %236 = arith.subf %231, %235 : vector<2x1xf32>
      %c0_90 = arith.constant 0 : index
      %c0_91 = arith.constant 0 : index
      %237 = vector.load %arg23[%c0_90, %c0_91] : memref<2x1xf32, #tpu.memory_space<vmem>>, vector<2x1xf32>
      tpu.vector_store %arg23[%c0_90, %c0_91], %236 {strides = array<i32>} : memref<2x1xf32, #tpu.memory_space<vmem>>, vector<2x1xf32>,
    } else {
    }
    return
  }
  func.func @transform_0(%arg0: i32, %arg1: i32) -> (i32, i32, i32) {
    %c0_i32 = arith.constant 0 : i32
    %c0_i32_0 = arith.constant 0 : i32
    %c0_i32_1 = arith.constant 0 : i32
    return %arg0, %c0_i32, %c0_i32_0 : i32, i32, i32
  }
  func.func @transform_1(%arg0: i32, %arg1: i32) -> (i32, i32) {
    %c0_i32 = arith.constant 0 : i32
    %c0_i32_0 = arith.constant 0 : i32
    return %arg0, %c0_i32 : i32, i32
  }
  func.func @transform_2(%arg0: i32, %arg1: i32) -> (i32, i32, i32) {
    %c0_i32 = arith.constant 0 : i32
    %c0_i32_0 = arith.constant 0 : i32
    %c0_i32_1 = arith.constant 0 : i32
    return %arg1, %c0_i32, %c0_i32_0 : i32, i32, i32
  }
  func.func @transform_3(%arg0: i32, %arg1: i32) -> (i32, i32, i32) {
    %c0_i32 = arith.constant 0 : i32
    %c0_i32_0 = arith.constant 0 : i32
    %c0_i32_1 = arith.constant 0 : i32
    return %arg1, %c0_i32, %c0_i32_0 : i32, i32, i32
  }
  func.func @transform_4(%arg0: i32, %arg1: i32) -> (i32, i32, i32) {
    %c0_i32 = arith.constant 0 : i32
    %c0_i32_0 = arith.constant 0 : i32
    %c0_i32_1 = arith.constant 0 : i32
    return %arg1, %c0_i32, %c0_i32_0 : i32, i32, i32
  }
  func.func @transform_5(%arg0: i32, %arg1: i32) -> (i32, i32, i32) {
    %c0_i32 = arith.constant 0 : i32
    %c0_i32_0 = arith.constant 0 : i32
    %c0_i32_1 = arith.constant 0 : i32
    return %arg1, %c0_i32, %c0_i32_0 : i32, i32, i32
  }
  func.func @transform_6(%arg0: i32, %arg1: i32) -> (i32, i32, i32) {
    %c0_i32 = arith.constant 0 : i32
    %c0_i32_0 = arith.constant 0 : i32
    %c0_i32_1 = arith.constant 0 : i32
    return %arg1, %c0_i32, %c0_i32_0 : i32, i32, i32
  }
  func.func @transform_7(%arg0: i32, %arg1: i32) -> (i32, i32, i32) {
    %c0_i32 = arith.constant 0 : i32
    %c0_i32_0 = arith.constant 0 : i32
    %c0_i32_1 = arith.constant 0 : i32
    return %arg1, %c0_i32, %c0_i32_0 : i32, i32, i32
  }
  func.func @transform_8(%arg0: i32, %arg1: i32) -> (i32, i32, i32) {
    %c0_i32 = arith.constant 0 : i32
    %c0_i32_0 = arith.constant 0 : i32
    %c0_i32_1 = arith.constant 0 : i32
    return %arg1, %c0_i32, %c0_i32_0 : i32, i32, i32
  }
  func.func @transform_9(%arg0: i32, %arg1: i32) -> (i32, i32, i32) {
    %c0_i32 = arith.constant 0 : i32
    %c0_i32_0 = arith.constant 0 : i32
    %c0_i32_1 = arith.constant 0 : i32
    return %arg1, %c0_i32, %c0_i32_0 : i32, i32, i32
  }
  func.func @transform_10(%arg0: i32, %arg1: i32) -> (i32, i32, i32) {
    %c0_i32 = arith.constant 0 : i32
    %c0_i32_0 = arith.constant 0 : i32
    %c0_i32_1 = arith.constant 0 : i32
    return %arg1, %c0_i32, %c0_i32_0 : i32, i32, i32
  }
  func.func @transform_11(%arg0: i32, %arg1: i32) -> (i32, i32, i32) {
    %c0_i32 = arith.constant 0 : i32
    %c0_i32_0 = arith.constant 0 : i32
    %c0_i32_1 = arith.constant 0 : i32
    return %arg1, %c0_i32, %c0_i32_0 : i32, i32, i32
  }
  func.func @transform_12(%arg0: i32, %arg1: i32) -> (i32, i32, i32) {
    %c0_i32 = arith.constant 0 : i32
    %c0_i32_0 = arith.constant 0 : i32
    %c0_i32_1 = arith.constant 0 : i32
    return %arg1, %c0_i32, %c0_i32_0 : i32, i32, i32
  }
  func.func @transform_13(%arg0: i32, %arg1: i32) -> (i32, i32, i32) {
    %c0_i32 = arith.constant 0 : i32
    %c0_i32_0 = arith.constant 0 : i32
    %c0_i32_1 = arith.constant 0 : i32
    return %arg1, %c0_i32, %c0_i32_0 : i32, i32, i32
  }
  func.func @transform_14(%arg0: i32, %arg1: i32) -> (i32, i32) {
    %c0_i32 = arith.constant 0 : i32
    %c0_i32_0 = arith.constant 0 : i32
    %c0_i32_1 = arith.constant 0 : i32
    return %c0_i32, %c0_i32_0 : i32, i32
  }
  func.func @transform_15(%arg0: i32, %arg1: i32) -> (i32, i32) {
    %c0_i32 = arith.constant 0 : i32
    %c0_i32_0 = arith.constant 0 : i32
    %c0_i32_1 = arith.constant 0 : i32
    return %c0_i32, %c0_i32_0 : i32, i32
  }
  func.func @transform_16(%arg0: i32, %arg1: i32) -> (i32, i32) {
    %c0_i32 = arith.constant 0 : i32
    %c0_i32_0 = arith.constant 0 : i32
    %c0_i32_1 = arith.constant 0 : i32
    return %c0_i32, %c0_i32_0 : i32, i32
  }
  func.func @transform_17(%arg0: i32, %arg1: i32) -> (i32, i32) {
    %c0_i32 = arith.constant 0 : i32
    %c0_i32_0 = arith.constant 0 : i32
    %c0_i32_1 = arith.constant 0 : i32
    return %c0_i32, %c0_i32_0 : i32, i32
  }
  func.func @transform_18(%arg0: i32, %arg1: i32) -> (i32, i32) {
    %c0_i32 = arith.constant 0 : i32
    %c0_i32_0 = arith.constant 0 : i32
    return %arg0, %c0_i32 : i32, i32
  }
  func.func @transform_19(%arg0: i32, %arg1: i32) -> (i32, i32, i32, i32) {
    %c0_i32 = arith.constant 0 : i32
    %c0_i32_0 = arith.constant 0 : i32
    %c0_i32_1 = arith.constant 0 : i32
    return %arg1, %arg0, %c0_i32, %c0_i32_0 : i32, i32, i32, i32
  }
  func.func @transform_20(%arg0: i32, %arg1: i32) -> (i32, i32) {
    %c0_i32 = arith.constant 0 : i32
    %c0_i32_0 = arith.constant 0 : i32
    return %arg0, %c0_i32 : i32, i32
  }
  func.func @transform_21(%arg0: i32, %arg1: i32) -> (i32, i32) {
    %c0_i32 = arith.constant 0 : i32
    %c0_i32_0 = arith.constant 0 : i32
    return %arg0, %c0_i32 : i32, i32
  }
}

</mosaic_0001>

<llo_original>
// kernel: tpu_custom_call.1
$region0: #{tpu_custom_call.1}
  #allocation0 [shape = 'u32[]', space=smem, size = 0x4, offset = 0x4, fixed_abs, tag = 'smem constant byte address 0x4 - core index']
  #allocation1 [shape = 'u32[144,128]{1,0:T(1,128)}', space=vmem, size = 0x12000, scoped, tag = 'internal scratch']
  #allocation2 [shape = 'f32[16,32]{1,0:T(8,128)}', space=vmem, size = 0x2000, scoped, tag = 'scratch operand']
  %s0 = inlined_call_operand.hbm [shape: f32[2,8,32], index: 0, kind: input, shape index: {}]
  %s1 = inlined_call_operand.hbm [shape: f32[2,8], index: 1, kind: input, shape index: {}]
  %s2 = inlined_call_operand.vmem [shape: bf16[3,32,96], index: 2, kind: input, shape index: {}]
  %s3 = inlined_call_operand.hbm [shape: f32[3,1,96], index: 3, kind: input, shape index: {}]
  %s4 = inlined_call_operand.vmem [shape: bf16[3,32,32], index: 4, kind: input, shape index: {}]
  %s5 = inlined_call_operand.hbm [shape: f32[3,1,32], index: 5, kind: input, shape index: {}]
  %s6 = inlined_call_operand.hbm [shape: f32[3,1,32], index: 6, kind: input, shape index: {}]
  %s7 = inlined_call_operand.hbm [shape: f32[3,1,32], index: 7, kind: input, shape index: {}]
  %s8 = inlined_call_operand.vmem [shape: bf16[3,32,64], index: 8, kind: input, shape index: {}]
  %s9 = inlined_call_operand.hbm [shape: f32[3,1,64], index: 9, kind: input, shape index: {}]
  %s10 = inlined_call_operand.vmem [shape: bf16[3,64,32], index: 10, kind: input, shape index: {}]
  %s11 = inlined_call_operand.vmem [shape: f32[3,1,32], index: 11, kind: input, shape index: {}]
  %s12 = inlined_call_operand.vmem [shape: f32[3,1,32], index: 12, kind: input, shape index: {}]
  %s13 = inlined_call_operand.vmem [shape: f32[3,1,32], index: 13, kind: input, shape index: {}]
  %s14 = inlined_call_operand.vmem [shape: bf16[32,32], index: 14, kind: input, shape index: {}]
  %s15 = inlined_call_operand.vmem [shape: f32[1,32], index: 15, kind: input, shape index: {}]
  %s16 = inlined_call_operand.vmem [shape: bf16[32,128], index: 16, kind: input, shape index: {}]
  %s17 = inlined_call_operand.vmem [shape: f32[1,128], index: 17, kind: input, shape index: {}]
  %s18 = inlined_call_operand.vmem [shape: f32[2,128], index: 18, kind: input, shape index: {}]
  %s19 = inlined_call_operand.hbm [shape: bf16[3,2,8,32], index: 19, kind: output, shape index: {0}]
  %s20 = inlined_call_operand.hbm [shape: f32[2,128], index: 20, kind: output, shape index: {1}]
  %s21 = inlined_call_operand.vmem [shape: f32[2,1], index: 21, kind: output, shape index: {2}]
  %22 = xla_tuple %s19, %s20, %s21
  %s23 = sld [smem:[#allocation0]]
  $region161: #{tpu_custom_call.1} parent=0
    _
  %s25 = ssub.s32 1, %s23
  %s26 = scalar_select 0, %s25, %s23
  $region1: #{tpu_custom_call.1} parent=0
    #allocation3 [shape = 'u8[8192]{0}', space=vmem, size = 0x2000, scoped, tag = 'input window, operand 0, single buffered']
    #allocation4 [shape = 's32[2]{0}', space=sflag, size = 0x8, scoped, tag = 'scoped memory for tpu_custom_call.1']
    #allocation5 [shape = 's32[2]{0}', space=sflag, size = 0x8, scoped, tag = 'scoped memory for tpu_custom_call.1']
    #allocation6 [shape = 'u8[1024]{0}', space=vmem, size = 0x400, scoped, tag = 'input window, operand 1, single buffered']
    #allocation7 [shape = 's32[1]{0}', space=sflag, size = 0x4, scoped, tag = 'scoped memory for tpu_custom_call.1']
    #allocation8 [shape = 'u8[1024]{0}', space=vmem, size = 0x400, scoped, tag = 'input window, operand 3']
    #allocation9 [shape = 'u8[1024]{0}', space=vmem, size = 0x400, scoped, tag = 'input window, operand 5']
    #allocation10 [shape = 'u8[1024]{0}', space=vmem, size = 0x400, scoped, tag = 'input window, operand 6']
    #allocation11 [shape = 'u8[1024]{0}', space=vmem, size = 0x400, scoped, tag = 'input window, operand 7']
    #allocation12 [shape = 'u8[1024]{0}', space=vmem, size = 0x400, scoped, tag = 'input window, operand 9']
    #allocation13 [shape = 'u8[8192]{0}', space=vmem, size = 0x2000, scoped, tag = 'output window, operand 0']
    #allocation14 [shape = 'u8[1024]{0}', space=vmem, size = 0x400, scoped, tag = 'output window, operand 1, single buffered']
    #allocation15 [shape = 's32[1]{0}', space=sflag, size = 0x4, scoped, tag = 'scoped memory for tpu_custom_call.1']
    %27 = vsyncpa [#allocation4], 0
    %28 = vsyncpa [#allocation7], 0
    %29 = vsyncpa [#allocation5], 0
    %s30 = scalar_lea.sflag [#allocation5], 1
    %31 = vsyncpa %s30, 0
    %32 = vsyncpa [#allocation15], 0
    loop: start=0, step=1, limit=5
    $region2: #{tpu_custom_call.1} parent=1 // loop_pre_header
      _
    $region3: #{tpu_custom_call.1} parent=1 // loop_header
      %s34 = sphi 0, %s38
      %p35 = scmp.ge.s32.totalorder %s34, 5
      %s41 = sphi 0, %s53
      %s42 = sphi 0, %s49
      %s43 = sphi 0, %s41
      %s44 = sphi 0, %s42
      %s45 = sphi 0, %s43
      %s46 = sphi 0, %s44
      %s56 = sphi 0, %s58
      %s59 = sphi 0, %s56
      %s60 = sphi 0, %s59
      %s76 = sphi 0, %s60
      %s82 = sphi 0, %s84
      %s85 = sphi 0, %s82
      %s86 = sphi 0, %s85
      %s102 = sphi 0, %s86
      %s108 = sphi 0, %s110
      %s111 = sphi 0, %s108
      %s112 = sphi 0, %s111
      %s128 = sphi 0, %s112
      %s134 = sphi 0, %s136
      %s137 = sphi 0, %s134
      %s138 = sphi 0, %s137
      %s154 = sphi 0, %s138
      %s160 = sphi 0, %s162
      %s163 = sphi 0, %s160
      %s164 = sphi 0, %s163
      %s180 = sphi 0, %s164
      %s186 = sphi 0, %s188
      %s189 = sphi 0, %s186
      %s190 = sphi 0, %s189
      %s206 = sphi 0, %s190
      %s212 = sphi 0, %s214
      %s215 = sphi 0, %s212
      %s216 = sphi 0, %s215
      %s232 = sphi 0, %s216
      %s238 = sphi 0, %s240
      %s241 = sphi 0, %s238
      %s242 = sphi 0, %s241
      %s258 = sphi 0, %s242
      %s264 = sphi 0, %s266
      %s267 = sphi 0, %s264
      %s268 = sphi 0, %s267
      %s284 = sphi 0, %s268
      %s290 = sphi 0, %s292
      %s293 = sphi 0, %s290
      %s294 = sphi 0, %s293
      %s310 = sphi 0, %s294
      %s316 = sphi 0, %s318
      %s319 = sphi 0, %s316
      %s320 = sphi 0, %s319
      %s336 = sphi 0, %s320
      %s342 = sphi 0, %s344
      %s345 = sphi 0, %s342
      %s346 = sphi 0, %s345
      %s362 = sphi 0, %s346
      %s368 = sphi 0, %s370
      %s371 = sphi 0, %s368
      %s372 = sphi 0, %s371
      %s388 = sphi 0, %s372
      %s394 = sphi 0, %s396
      %s397 = sphi 0, %s394
      %s398 = sphi 0, %s397
      %s414 = sphi 0, %s398
      %s418 = sphi 0, %s418
      %s420 = sphi 0, %s418
      %s421 = sphi 0, %s420
      %s435 = sphi 0, %s421
      %s439 = sphi 0, %s439
      %s441 = sphi 0, %s439
      %s442 = sphi 0, %s441
      %s456 = sphi 0, %s442
      %s460 = sphi 0, %s460
      %s462 = sphi 0, %s460
      %s463 = sphi 0, %s462
      %s477 = sphi 0, %s463
      %s481 = sphi 0, %s481
      %s483 = sphi 0, %s481
      %s484 = sphi 0, %s483
      %s498 = sphi 0, %s484
      %s504 = sphi 0, %s506
      %s507 = sphi 0, %s504
      %s508 = sphi 0, %s507
      %s524 = sphi 0, %s508
      %s532 = sphi 0, %s534
      %s535 = sphi 0, %s532
      %s536 = sphi 0, %s535
      %s552 = sphi 0, %s536
      %s558 = sphi 0, %s560
      %s561 = sphi 0, %s558
      %s562 = sphi 0, %s561
      %s578 = sphi 0, %s562
      %s584 = sphi 0, %s586
      %s587 = sphi 0, %s584
      %s588 = sphi 0, %s587
      %s604 = sphi 0, %s588
    $region4: #{tpu_custom_call.1} parent=1 // loop_header_branch
      %37 = sbr.rel (%p35) target = $region8
    $region5: #{tpu_custom_call.1} parent=1 // loop_body
      %s39 = ssub.s32 %s34, 1
      %s40 = ssub.s32 %s34, 2
      %s47 = sadd.s32 1, %s42
      %p48 = scmp.ge.s32.totalorder %s47, 3
      %s49 = scalar_select %p48, 0, %s47
      %s50 = sadd.s32 1, %s41
      %s51 = scalar_select %p48, %s50, %s41
      %p52 = scmp.ge.s32.totalorder %s51, 1
      %s53 = scalar_select %p52, 0, %s51
      %s54 = ssub.s32 %s41, %s53
      %p55 = scmp.eq.s32.totalorder %s54, 0
      %s57 = sadd.s32 %s56, 1
      %s58 = scalar_select %p55, %s56, %s57
      %p61 = pneg %p55
      %p62 = scmp.eq.s32.totalorder %s34, 2
      %p63 = por %p61, %p62
      %p64 = scmp.ne.s32.totalorder %s56, %s59
      %p65 = scmp.eq.s32.totalorder %s34, 0
      %p66 = por %p64, %p65
      %p67 = scmp.ne.s32.totalorder %s56, %s59
      %p68 = scmp.eq.s32.totalorder %s39, 2
      %p69 = por %p67, %p68
      %p70 = scmp.ne.s32.totalorder %s59, %s60
      %p71 = scmp.eq.s32.totalorder %s39, 0
      %p72 = por %p70, %p71
      %p73 = scmp.ne.s32.totalorder %s59, %s60
      %p74 = scmp.eq.s32.totalorder %s40, 2
      %p75 = por %p73, %p74
      %p77 = scmp.ne.s32.totalorder %s60, %s76
      %p78 = scmp.eq.s32.totalorder %s40, 0
      %p79 = por %p77, %p78
      %s80 = ssub.s32 %s41, %s53
      %p81 = scmp.eq.s32.totalorder %s80, 0
      %s83 = sadd.s32 %s82, 1
      %s84 = scalar_select %p81, %s82, %s83
      %p87 = pneg %p81
      %p88 = scmp.eq.s32.totalorder %s34, 2
      %p89 = por %p87, %p88
      %p90 = scmp.ne.s32.totalorder %s82, %s85
      %p91 = scmp.eq.s32.totalorder %s34, 0
      %p92 = por %p90, %p91
      %p93 = scmp.ne.s32.totalorder %s82, %s85
      %p94 = scmp.eq.s32.totalorder %s39, 2
      %p95 = por %p93, %p94
      %p96 = scmp.ne.s32.totalorder %s85, %s86
      %p97 = scmp.eq.s32.totalorder %s39, 0
      %p98 = por %p96, %p97
      %p99 = scmp.ne.s32.totalorder %s85, %s86
      %p100 = scmp.eq.s32.totalorder %s40, 2
      %p101 = por %p99, %p100
      %p103 = scmp.ne.s32.totalorder %s86, %s102
      %p104 = scmp.eq.s32.totalorder %s40, 0
      %p105 = por %p103, %p104
      %s106 = ssub.s32 %s42, %s49
      %p107 = scmp.eq.s32.totalorder %s106, 0
      %s109 = sadd.s32 %s108, 1
      %s110 = scalar_select %p107, %s108, %s109
      %p113 = pneg %p107
      %p114 = scmp.eq.s32.totalorder %s34, 2
      %p115 = por %p113, %p114
      %p116 = scmp.ne.s32.totalorder %s108, %s111
      %p117 = scmp.eq.s32.totalorder %s34, 0
      %p118 = por %p116, %p117
      %p119 = scmp.ne.s32.totalorder %s108, %s111
      %p120 = scmp.eq.s32.totalorder %s39, 2
      %p121 = por %p119, %p120
      %p122 = scmp.ne.s32.totalorder %s111, %s112
      %p123 = scmp.eq.s32.totalorder %s39, 0
      %p124 = por %p122, %p123
      %p125 = scmp.ne.s32.totalorder %s111, %s112
      %p126 = scmp.eq.s32.totalorder %s40, 2
      %p127 = por %p125, %p126
      %p129 = scmp.ne.s32.totalorder %s112, %s128
      %p130 = scmp.eq.s32.totalorder %s40, 0
      %p131 = por %p129, %p130
      %s132 = ssub.s32 %s42, %s49
      %p133 = scmp.eq.s32.totalorder %s132, 0
      %s135 = sadd.s32 %s134, 1
      %s136 = scalar_select %p133, %s134, %s135
      %p139 = pneg %p133
      %p140 = scmp.eq.s32.totalorder %s34, 2
      %p141 = por %p139, %p140
      %p142 = scmp.ne.s32.totalorder %s134, %s137
      %p143 = scmp.eq.s32.totalorder %s34, 0
      %p144 = por %p142, %p143
      %p145 = scmp.ne.s32.totalorder %s134, %s137
      %p146 = scmp.eq.s32.totalorder %s39, 2
      %p147 = por %p145, %p146
      %p148 = scmp.ne.s32.totalorder %s137, %s138
      %p149 = scmp.eq.s32.totalorder %s39, 0
      %p150 = por %p148, %p149
      %p151 = scmp.ne.s32.totalorder %s137, %s138
      %p152 = scmp.eq.s32.totalorder %s40, 2
      %p153 = por %p151, %p152
      %p155 = scmp.ne.s32.totalorder %s138, %s154
      %p156 = scmp.eq.s32.totalorder %s40, 0
      %p157 = por %p155, %p156
      %s158 = ssub.s32 %s42, %s49
      %p159 = scmp.eq.s32.totalorder %s158, 0
      %s161 = sadd.s32 %s160, 1
      %s162 = scalar_select %p159, %s160, %s161
      %p165 = pneg %p159
      %p166 = scmp.eq.s32.totalorder %s34, 2
      %p167 = por %p165, %p166
      %p168 = scmp.ne.s32.totalorder %s160, %s163
      %p169 = scmp.eq.s32.totalorder %s34, 0
      %p170 = por %p168, %p169
      %p171 = scmp.ne.s32.totalorder %s160, %s163
      %p172 = scmp.eq.s32.totalorder %s39, 2
      %p173 = por %p171, %p172
      %p174 = scmp.ne.s32.totalorder %s163, %s164
      %p175 = scmp.eq.s32.totalorder %s39, 0
      %p176 = por %p174, %p175
      %p177 = scmp.ne.s32.totalorder %s163, %s164
      %p178 = scmp.eq.s32.totalorder %s40, 2
      %p179 = por %p177, %p178
      %p181 = scmp.ne.s32.totalorder %s164, %s180
      %p182 = scmp.eq.s32.totalorder %s40, 0
      %p183 = por %p181, %p182
      %s184 = ssub.s32 %s42, %s49
      %p185 = scmp.eq.s32.totalorder %s184, 0
      %s187 = sadd.s32 %s186, 1
      %s188 = scalar_select %p185, %s186, %s187
      %p191 = pneg %p185
      %p192 = scmp.eq.s32.totalorder %s34, 2
      %p193 = por %p191, %p192
      %p194 = scmp.ne.s32.totalorder %s186, %s189
      %p195 = scmp.eq.s32.totalorder %s34, 0
      %p196 = por %p194, %p195
      %p197 = scmp.ne.s32.totalorder %s186, %s189
      %p198 = scmp.eq.s32.totalorder %s39, 2
      %p199 = por %p197, %p198
      %p200 = scmp.ne.s32.totalorder %s189, %s190
      %p201 = scmp.eq.s32.totalorder %s39, 0
      %p202 = por %p200, %p201
      %p203 = scmp.ne.s32.totalorder %s189, %s190
      %p204 = scmp.eq.s32.totalorder %s40, 2
      %p205 = por %p203, %p204
      %p207 = scmp.ne.s32.totalorder %s190, %s206
      %p208 = scmp.eq.s32.totalorder %s40, 0
      %p209 = por %p207, %p208
      %s210 = ssub.s32 %s42, %s49
      %p211 = scmp.eq.s32.totalorder %s210, 0
      %s213 = sadd.s32 %s212, 1
      %s214 = scalar_select %p211, %s212, %s213
      %p217 = pneg %p211
      %p218 = scmp.eq.s32.totalorder %s34, 2
      %p219 = por %p217, %p218
      %p220 = scmp.ne.s32.totalorder %s212, %s215
      %p221 = scmp.eq.s32.totalorder %s34, 0
      %p222 = por %p220, %p221
      %p223 = scmp.ne.s32.totalorder %s212, %s215
      %p224 = scmp.eq.s32.totalorder %s39, 2
      %p225 = por %p223, %p224
      %p226 = scmp.ne.s32.totalorder %s215, %s216
      %p227 = scmp.eq.s32.totalorder %s39, 0
      %p228 = por %p226, %p227
      %p229 = scmp.ne.s32.totalorder %s215, %s216
      %p230 = scmp.eq.s32.totalorder %s40, 2
      %p231 = por %p229, %p230
      %p233 = scmp.ne.s32.totalorder %s216, %s232
      %p234 = scmp.eq.s32.totalorder %s40, 0
      %p235 = por %p233, %p234
      %s236 = ssub.s32 %s42, %s49
      %p237 = scmp.eq.s32.totalorder %s236, 0
      %s239 = sadd.s32 %s238, 1
      %s240 = scalar_select %p237, %s238, %s239
      %p243 = pneg %p237
      %p244 = scmp.eq.s32.totalorder %s34, 2
      %p245 = por %p243, %p244
      %p246 = scmp.ne.s32.totalorder %s238, %s241
      %p247 = scmp.eq.s32.totalorder %s34, 0
      %p248 = por %p246, %p247
      %p249 = scmp.ne.s32.totalorder %s238, %s241
      %p250 = scmp.eq.s32.totalorder %s39, 2
      %p251 = por %p249, %p250
      %p252 = scmp.ne.s32.totalorder %s241, %s242
      %p253 = scmp.eq.s32.totalorder %s39, 0
      %p254 = por %p252, %p253
      %p255 = scmp.ne.s32.totalorder %s241, %s242
      %p256 = scmp.eq.s32.totalorder %s40, 2
      %p257 = por %p255, %p256
      %p259 = scmp.ne.s32.totalorder %s242, %s258
      %p260 = scmp.eq.s32.totalorder %s40, 0
      %p261 = por %p259, %p260
      %s262 = ssub.s32 %s42, %s49
      %p263 = scmp.eq.s32.totalorder %s262, 0
      %s265 = sadd.s32 %s264, 1
      %s266 = scalar_select %p263, %s264, %s265
      %p269 = pneg %p263
      %p270 = scmp.eq.s32.totalorder %s34, 2
      %p271 = por %p269, %p270
      %p272 = scmp.ne.s32.totalorder %s264, %s267
      %p273 = scmp.eq.s32.totalorder %s34, 0
      %p274 = por %p272, %p273
      %p275 = scmp.ne.s32.totalorder %s264, %s267
      %p276 = scmp.eq.s32.totalorder %s39, 2
      %p277 = por %p275, %p276
      %p278 = scmp.ne.s32.totalorder %s267, %s268
      %p279 = scmp.eq.s32.totalorder %s39, 0
      %p280 = por %p278, %p279
      %p281 = scmp.ne.s32.totalorder %s267, %s268
      %p282 = scmp.eq.s32.totalorder %s40, 2
      %p283 = por %p281, %p282
      %p285 = scmp.ne.s32.totalorder %s268, %s284
      %p286 = scmp.eq.s32.totalorder %s40, 0
      %p287 = por %p285, %p286
      %s288 = ssub.s32 %s42, %s49
      %p289 = scmp.eq.s32.totalorder %s288, 0
      %s291 = sadd.s32 %s290, 1
      %s292 = scalar_select %p289, %s290, %s291
      %p295 = pneg %p289
      %p296 = scmp.eq.s32.totalorder %s34, 2
      %p297 = por %p295, %p296
      %p298 = scmp.ne.s32.totalorder %s290, %s293
      %p299 = scmp.eq.s32.totalorder %s34, 0
      %p300 = por %p298, %p299
      %p301 = scmp.ne.s32.totalorder %s290, %s293
      %p302 = scmp.eq.s32.totalorder %s39, 2
      %p303 = por %p301, %p302
      %p304 = scmp.ne.s32.totalorder %s293, %s294
      %p305 = scmp.eq.s32.totalorder %s39, 0
      %p306 = por %p304, %p305
      %p307 = scmp.ne.s32.totalorder %s293, %s294
      %p308 = scmp.eq.s32.totalorder %s40, 2
      %p309 = por %p307, %p308
      %p311 = scmp.ne.s32.totalorder %s294, %s310
      %p312 = scmp.eq.s32.totalorder %s40, 0
      %p313 = por %p311, %p312
      %s314 = ssub.s32 %s42, %s49
      %p315 = scmp.eq.s32.totalorder %s314, 0
      %s317 = sadd.s32 %s316, 1
      %s318 = scalar_select %p315, %s316, %s317
      %p321 = pneg %p315
      %p322 = scmp.eq.s32.totalorder %s34, 2
      %p323 = por %p321, %p322
      %p324 = scmp.ne.s32.totalorder %s316, %s319
      %p325 = scmp.eq.s32.totalorder %s34, 0
      %p326 = por %p324, %p325
      %p327 = scmp.ne.s32.totalorder %s316, %s319
      %p328 = scmp.eq.s32.totalorder %s39, 2
      %p329 = por %p327, %p328
      %p330 = scmp.ne.s32.totalorder %s319, %s320
      %p331 = scmp.eq.s32.totalorder %s39, 0
      %p332 = por %p330, %p331
      %p333 = scmp.ne.s32.totalorder %s319, %s320
      %p334 = scmp.eq.s32.totalorder %s40, 2
      %p335 = por %p333, %p334
      %p337 = scmp.ne.s32.totalorder %s320, %s336
      %p338 = scmp.eq.s32.totalorder %s40, 0
      %p339 = por %p337, %p338
      %s340 = ssub.s32 %s42, %s49
      %p341 = scmp.eq.s32.totalorder %s340, 0
      %s343 = sadd.s32 %s342, 1
      %s344 = scalar_select %p341, %s342, %s343
      %p347 = pneg %p341
      %p348 = scmp.eq.s32.totalorder %s34, 2
      %p349 = por %p347, %p348
      %p350 = scmp.ne.s32.totalorder %s342, %s345
      %p351 = scmp.eq.s32.totalorder %s34, 0
      %p352 = por %p350, %p351
      %p353 = scmp.ne.s32.totalorder %s342, %s345
      %p354 = scmp.eq.s32.totalorder %s39, 2
      %p355 = por %p353, %p354
      %p356 = scmp.ne.s32.totalorder %s345, %s346
      %p357 = scmp.eq.s32.totalorder %s39, 0
      %p358 = por %p356, %p357
      %p359 = scmp.ne.s32.totalorder %s345, %s346
      %p360 = scmp.eq.s32.totalorder %s40, 2
      %p361 = por %p359, %p360
      %p363 = scmp.ne.s32.totalorder %s346, %s362
      %p364 = scmp.eq.s32.totalorder %s40, 0
      %p365 = por %p363, %p364
      %s366 = ssub.s32 %s42, %s49
      %p367 = scmp.eq.s32.totalorder %s366, 0
      %s369 = sadd.s32 %s368, 1
      %s370 = scalar_select %p367, %s368, %s369
      %p373 = pneg %p367
      %p374 = scmp.eq.s32.totalorder %s34, 2
      %p375 = por %p373, %p374
      %p376 = scmp.ne.s32.totalorder %s368, %s371
      %p377 = scmp.eq.s32.totalorder %s34, 0
      %p378 = por %p376, %p377
      %p379 = scmp.ne.s32.totalorder %s368, %s371
      %p380 = scmp.eq.s32.totalorder %s39, 2
      %p381 = por %p379, %p380
      %p382 = scmp.ne.s32.totalorder %s371, %s372
      %p383 = scmp.eq.s32.totalorder %s39, 0
      %p384 = por %p382, %p383
      %p385 = scmp.ne.s32.totalorder %s371, %s372
      %p386 = scmp.eq.s32.totalorder %s40, 2
      %p387 = por %p385, %p386
      %p389 = scmp.ne.s32.totalorder %s372, %s388
      %p390 = scmp.eq.s32.totalorder %s40, 0
      %p391 = por %p389, %p390
      %s392 = ssub.s32 %s42, %s49
      %p393 = scmp.eq.s32.totalorder %s392, 0
      %s395 = sadd.s32 %s394, 1
      %s396 = scalar_select %p393, %s394, %s395
      %p399 = pneg %p393
      %p400 = scmp.eq.s32.totalorder %s34, 2
      %p401 = por %p399, %p400
      %p402 = scmp.ne.s32.totalorder %s394, %s397
      %p403 = scmp.eq.s32.totalorder %s34, 0
      %p404 = por %p402, %p403
      %p405 = scmp.ne.s32.totalorder %s394, %s397
      %p406 = scmp.eq.s32.totalorder %s39, 2
      %p407 = por %p405, %p406
      %p408 = scmp.ne.s32.totalorder %s397, %s398
      %p409 = scmp.eq.s32.totalorder %s39, 0
      %p410 = por %p408, %p409
      %p411 = scmp.ne.s32.totalorder %s397, %s398
      %p412 = scmp.eq.s32.totalorder %s40, 2
      %p413 = por %p411, %p412
      %p415 = scmp.ne.s32.totalorder %s398, %s414
      %p416 = scmp.eq.s32.totalorder %s40, 0
      %p417 = por %p415, %p416
      %s419 = sadd.s32 %s418, 1
      %p422 = scmp.eq.s32.totalorder %s34, 2
      %p423 = scmp.ne.s32.totalorder %s418, %s420
      %p424 = scmp.eq.s32.totalorder %s34, 0
      %p425 = por %p423, %p424
      %p426 = scmp.ne.s32.totalorder %s418, %s420
      %p427 = scmp.eq.s32.totalorder %s39, 2
      %p428 = por %p426, %p427
      %p429 = scmp.ne.s32.totalorder %s420, %s421
      %p430 = scmp.eq.s32.totalorder %s39, 0
      %p431 = por %p429, %p430
      %p432 = scmp.ne.s32.totalorder %s420, %s421
      %p433 = scmp.eq.s32.totalorder %s40, 2
      %p434 = por %p432, %p433
      %p436 = scmp.ne.s32.totalorder %s421, %s435
      %p437 = scmp.eq.s32.totalorder %s40, 0
      %p438 = por %p436, %p437
      %s440 = sadd.s32 %s439, 1
      %p443 = scmp.eq.s32.totalorder %s34, 2
      %p444 = scmp.ne.s32.totalorder %s439, %s441
      %p445 = scmp.eq.s32.totalorder %s34, 0
      %p446 = por %p444, %p445
      %p447 = scmp.ne.s32.totalorder %s439, %s441
      %p448 = scmp.eq.s32.totalorder %s39, 2
      %p449 = por %p447, %p448
      %p450 = scmp.ne.s32.totalorder %s441, %s442
      %p451 = scmp.eq.s32.totalorder %s39, 0
      %p452 = por %p450, %p451
      %p453 = scmp.ne.s32.totalorder %s441, %s442
      %p454 = scmp.eq.s32.totalorder %s40, 2
      %p455 = por %p453, %p454
      %p457 = scmp.ne.s32.totalorder %s442, %s456
      %p458 = scmp.eq.s32.totalorder %s40, 0
      %p459 = por %p457, %p458
      %s461 = sadd.s32 %s460, 1
      %p464 = scmp.eq.s32.totalorder %s34, 2
      %p465 = scmp.ne.s32.totalorder %s460, %s462
      %p466 = scmp.eq.s32.totalorder %s34, 0
      %p467 = por %p465, %p466
      %p468 = scmp.ne.s32.totalorder %s460, %s462
      %p469 = scmp.eq.s32.totalorder %s39, 2
      %p470 = por %p468, %p469
      %p471 = scmp.ne.s32.totalorder %s462, %s463
      %p472 = scmp.eq.s32.totalorder %s39, 0
      %p473 = por %p471, %p472
      %p474 = scmp.ne.s32.totalorder %s462, %s463
      %p475 = scmp.eq.s32.totalorder %s40, 2
      %p476 = por %p474, %p475
      %p478 = scmp.ne.s32.totalorder %s463, %s477
      %p479 = scmp.eq.s32.totalorder %s40, 0
      %p480 = por %p478, %p479
      %s482 = sadd.s32 %s481, 1
      %p485 = scmp.eq.s32.totalorder %s34, 2
      %p486 = scmp.ne.s32.totalorder %s481, %s483
      %p487 = scmp.eq.s32.totalorder %s34, 0
      %p488 = por %p486, %p487
      %p489 = scmp.ne.s32.totalorder %s481, %s483
      %p490 = scmp.eq.s32.totalorder %s39, 2
      %p491 = por %p489, %p490
      %p492 = scmp.ne.s32.totalorder %s483, %s484
      %p493 = scmp.eq.s32.totalorder %s39, 0
      %p494 = por %p492, %p493
      %p495 = scmp.ne.s32.totalorder %s483, %s484
      %p496 = scmp.eq.s32.totalorder %s40, 2
      %p497 = por %p495, %p496
      %p499 = scmp.ne.s32.totalorder %s484, %s498
      %p500 = scmp.eq.s32.totalorder %s40, 0
      %p501 = por %p499, %p500
      %s502 = ssub.s32 %s41, %s53
      %p503 = scmp.eq.s32.totalorder %s502, 0
      %s505 = sadd.s32 %s504, 1
      %s506 = scalar_select %p503, %s504, %s505
      %p509 = pneg %p503
      %p510 = scmp.eq.s32.totalorder %s34, 2
      %p511 = por %p509, %p510
      %p512 = scmp.ne.s32.totalorder %s504, %s507
      %p513 = scmp.eq.s32.totalorder %s34, 0
      %p514 = por %p512, %p513
      %p515 = scmp.ne.s32.totalorder %s504, %s507
      %p516 = scmp.eq.s32.totalorder %s39, 2
      %p517 = por %p515, %p516
      %p518 = scmp.ne.s32.totalorder %s507, %s508
      %p519 = scmp.eq.s32.totalorder %s39, 0
      %p520 = por %p518, %p519
      %p521 = scmp.ne.s32.totalorder %s507, %s508
      %p522 = scmp.eq.s32.totalorder %s40, 2
      %p523 = por %p521, %p522
      %p525 = scmp.ne.s32.totalorder %s508, %s524
      %p526 = scmp.eq.s32.totalorder %s40, 0
      %p527 = por %p525, %p526
      %s528 = ssub.s32 %s42, %s49
      %s529 = ssub.s32 %s41, %s53
      %s530 = sor.u32 %s528, %s529
      %p531 = scmp.eq.s32.totalorder %s530, 0
      %s533 = sadd.s32 %s532, 1
      %s534 = scalar_select %p531, %s532, %s533
      %p537 = pneg %p531
      %p538 = scmp.eq.s32.totalorder %s34, 2
      %p539 = por %p537, %p538
      %p540 = scmp.ne.s32.totalorder %s532, %s535
      %p541 = scmp.eq.s32.totalorder %s34, 0
      %p542 = por %p540, %p541
      %p543 = scmp.ne.s32.totalorder %s532, %s535
      %p544 = scmp.eq.s32.totalorder %s39, 2
      %p545 = por %p543, %p544
      %p546 = scmp.ne.s32.totalorder %s535, %s536
      %p547 = scmp.eq.s32.totalorder %s39, 0
      %p548 = por %p546, %p547
      %p549 = scmp.ne.s32.totalorder %s535, %s536
      %p550 = scmp.eq.s32.totalorder %s40, 2
      %p551 = por %p549, %p550
      %p553 = scmp.ne.s32.totalorder %s536, %s552
      %p554 = scmp.eq.s32.totalorder %s40, 0
      %p555 = por %p553, %p554
      %s556 = ssub.s32 %s41, %s53
      %p557 = scmp.eq.s32.totalorder %s556, 0
      %s559 = sadd.s32 %s558, 1
      %s560 = scalar_select %p557, %s558, %s559
      %p563 = pneg %p557
      %p564 = scmp.eq.s32.totalorder %s34, 2
      %p565 = por %p563, %p564
      %p566 = scmp.ne.s32.totalorder %s558, %s561
      %p567 = scmp.eq.s32.totalorder %s34, 0
      %p568 = por %p566, %p567
      %p569 = scmp.ne.s32.totalorder %s558, %s561
      %p570 = scmp.eq.s32.totalorder %s39, 2
      %p571 = por %p569, %p570
      %p572 = scmp.ne.s32.totalorder %s561, %s562
      %p573 = scmp.eq.s32.totalorder %s39, 0
      %p574 = por %p572, %p573
      %p575 = scmp.ne.s32.totalorder %s561, %s562
      %p576 = scmp.eq.s32.totalorder %s40, 2
      %p577 = por %p575, %p576
      %p579 = scmp.ne.s32.totalorder %s562, %s578
      %p580 = scmp.eq.s32.totalorder %s40, 0
      %p581 = por %p579, %p580
      %s582 = ssub.s32 %s41, %s53
      %p583 = scmp.eq.s32.totalorder %s582, 0
      %s585 = sadd.s32 %s584, 1
      %s586 = scalar_select %p583, %s584, %s585
      %p589 = pneg %p583
      %p590 = scmp.eq.s32.totalorder %s34, 2
      %p591 = por %p589, %p590
      %p592 = scmp.ne.s32.totalorder %s584, %s587
      %p593 = scmp.eq.s32.totalorder %s34, 0
      %p594 = por %p592, %p593
      %p595 = scmp.ne.s32.totalorder %s584, %s587
      %p596 = scmp.eq.s32.totalorder %s39, 2
      %p597 = por %p595, %p596
      %p598 = scmp.ne.s32.totalorder %s587, %s588
      %p599 = scmp.eq.s32.totalorder %s39, 0
      %p600 = por %p598, %p599
      %p601 = scmp.ne.s32.totalorder %s587, %s588
      %p602 = scmp.eq.s32.totalorder %s40, 2
      %p603 = por %p601, %p602
      %p605 = scmp.ne.s32.totalorder %s588, %s604
      %p606 = scmp.eq.s32.totalorder %s40, 0
      %p607 = por %p605, %p606
      %p608 = scmp.le.s32.totalorder 1, %s34
      %p609 = scmp.lt.s32.totalorder %s34, 4
      %p610 = pnand %p608, %p609
      %p611 = pneg %p610
      // Predicated region
      $region9: #{tpu_custom_call.1} parent=5 // pred_check
        _
      $region10: #{tpu_custom_call.1} parent=5 // pred_check_branch
        %613 = sbr.rel (%p610) target = $region12
      $region11: #{tpu_custom_call.1} parent=5 // pred_region
        %s614 = ssub.s32 %s34, 1
        // Predicated region
        $region13: #{tpu_custom_call.1} parent=11 // pred_check
          %p615 = pneg %p72
        $region14: #{tpu_custom_call.1} parent=11 // pred_check_branch
          %617 = sbr.rel (%p615) target = $region16
        $region15: #{tpu_custom_call.1} parent=11 // pred_region
          %s618 = smul.u32 2, %s43
          %s620 = ssub.s32 256, 256
          %621 = vsyncadd [#allocation4], %s620
          %s622 = smul.addr %s618, 128
          %s623 = scalar_lea.hbm %s0, %s622
          %s624 = sshll.u32 [#allocation3], 4
          %s625 = int_to_ptr.vmem [resolvable:$true] %s624
          %630 = dma.hbm_to_vmem [thread:$0]  %s623, 256, %s625, [#allocation4], 128, 128, 8
        $region16: #{tpu_custom_call.1} parent=11 // pred_fallthru
          _
        // Predicated region
        $region17: #{tpu_custom_call.1} parent=11 // pred_check
          %p631 = pneg %p98
        $region18: #{tpu_custom_call.1} parent=11 // pred_check_branch
          %633 = sbr.rel (%p631) target = $region20
        $region19: #{tpu_custom_call.1} parent=11 // pred_region
          %s635 = ssub.s32 32, 32
          %636 = vsyncadd [#allocation7], %s635
          %s637 = smul.addr %s43, 32
          %s638 = scalar_lea.hbm %s1, %s637
          %s640 = sshll.u32 [#allocation6], 4
          %s641 = int_to_ptr.vmem [resolvable:$true] %s640
          %643 = dma.hbm_to_vmem [thread:$0]  %s638, 32, %s641, [#allocation7]
        $region20: #{tpu_custom_call.1} parent=11 // pred_fallthru
          _
        // Predicated region
        $region21: #{tpu_custom_call.1} parent=11 // pred_check
          %p644 = pneg %p431
        $region22: #{tpu_custom_call.1} parent=11 // pred_check_branch
          %646 = sbr.rel (%p644) target = $region24
        $region23: #{tpu_custom_call.1} parent=11 // pred_region
          _
        $region24: #{tpu_custom_call.1} parent=11 // pred_fallthru
          _
        // Predicated region
        $region25: #{tpu_custom_call.1} parent=11 // pred_check
          %p647 = pneg %p452
        $region26: #{tpu_custom_call.1} parent=11 // pred_check_branch
          %649 = sbr.rel (%p647) target = $region28
        $region27: #{tpu_custom_call.1} parent=11 // pred_region
          _
        $region28: #{tpu_custom_call.1} parent=11 // pred_fallthru
          _
        // Predicated region
        $region29: #{tpu_custom_call.1} parent=11 // pred_check
          %p650 = pneg %p473
        $region30: #{tpu_custom_call.1} parent=11 // pred_check_branch
          %652 = sbr.rel (%p650) target = $region32
        $region31: #{tpu_custom_call.1} parent=11 // pred_region
          _
        $region32: #{tpu_custom_call.1} parent=11 // pred_fallthru
          _
        // Predicated region
        $region33: #{tpu_custom_call.1} parent=11 // pred_check
          %p653 = pneg %p494
        $region34: #{tpu_custom_call.1} parent=11 // pred_check_branch
          %655 = sbr.rel (%p653) target = $region36
        $region35: #{tpu_custom_call.1} parent=11 // pred_region
          _
        $region36: #{tpu_custom_call.1} parent=11 // pred_fallthru
          _
        // Predicated region
        $region37: #{tpu_custom_call.1} parent=11 // pred_check
          %p656 = pneg %p520
        $region38: #{tpu_custom_call.1} parent=11 // pred_check_branch
          %658 = sbr.rel (%p656) target = $region40
        $region39: #{tpu_custom_call.1} parent=11 // pred_region
          %p659 = scmp.lt.s32.totalorder %s43, 0
          %s660 = scalar_select %p659, %s43, 0
          %s661 = smul.addr %s660, 2
          %s662 = scalar_lea.vmem %s18, %s661
        $region40: #{tpu_custom_call.1} parent=11 // pred_fallthru
          _
      $region12: #{tpu_custom_call.1} parent=5 // pred_fallthru
        _
      %p663 = scmp.lt.s32.totalorder %s34, 3
      // Predicated region
      $region41: #{tpu_custom_call.1} parent=5 // pred_check
        %p664 = pneg %p663
      $region42: #{tpu_custom_call.1} parent=5 // pred_check_branch
        %666 = sbr.rel (%p664) target = $region44
      $region43: #{tpu_custom_call.1} parent=5 // pred_region
        // Predicated region
        $region45: #{tpu_custom_call.1} parent=43 // pred_check
          %p667 = pneg %p118
        $region46: #{tpu_custom_call.1} parent=43 // pred_check_branch
          %669 = sbr.rel (%p667) target = $region48
        $region47: #{tpu_custom_call.1} parent=43 // pred_region
          %p670 = scmp.lt.s32.totalorder %s42, 2
          %s671 = scalar_select %p670, %s42, 2
          %s672 = smul.addr %s671, 4
          %s673 = smul.addr %s672, 4
          %s674 = scalar_lea.vmem %s2, %s673
        $region48: #{tpu_custom_call.1} parent=43 // pred_fallthru
          _
        // Predicated region
        $region49: #{tpu_custom_call.1} parent=43 // pred_check
          %p675 = pneg %p144
        $region50: #{tpu_custom_call.1} parent=43 // pred_check_branch
          %677 = sbr.rel (%p675) target = $region52
        $region51: #{tpu_custom_call.1} parent=43 // pred_region
          %s678 = sand.u32 %s34, 1
          %s679 = scalar_lea.sflag [#allocation4], %s678
          %s680 = sand.u32 %s134, 1
          %s681 = scalar_lea.vmem [#allocation8], %s680
          %s683 = ssub.s32 16, 16
          %684 = vsyncadd %s679, %s683
          %s685 = smul.addr %s42, 16
          %s686 = scalar_lea.hbm %s3, %s685
          %s688 = sshll.u32 %s681, 4
          %s689 = int_to_ptr.vmem [resolvable:$true] %s688
          %691 = dma.hbm_to_vmem [thread:$0]  %s686, 16, %s689, %s679
        $region52: #{tpu_custom_call.1} parent=43 // pred_fallthru
          _
        // Predicated region
        $region53: #{tpu_custom_call.1} parent=43 // pred_check
          %p692 = pneg %p170
        $region54: #{tpu_custom_call.1} parent=43 // pred_check_branch
          %694 = sbr.rel (%p692) target = $region56
        $region55: #{tpu_custom_call.1} parent=43 // pred_region
          %p695 = scmp.lt.s32.totalorder %s42, 2
          %s696 = scalar_select %p695, %s42, 2
          %s697 = smul.addr %s696, 4
          %s698 = smul.addr %s697, 4
          %s699 = scalar_lea.vmem %s4, %s698
        $region56: #{tpu_custom_call.1} parent=43 // pred_fallthru
          _
        // Predicated region
        $region57: #{tpu_custom_call.1} parent=43 // pred_check
          %p700 = pneg %p196
        $region58: #{tpu_custom_call.1} parent=43 // pred_check_branch
          %702 = sbr.rel (%p700) target = $region60
        $region59: #{tpu_custom_call.1} parent=43 // pred_region
          %s703 = sand.u32 %s34, 1
          %s704 = scalar_lea.sflag [#allocation4], %s703
          %s705 = sand.u32 %s186, 1
          %s706 = scalar_lea.vmem [#allocation9], %s705
          %s708 = ssub.s32 16, 16
          %709 = vsyncadd %s704, %s708
          %s710 = smul.addr %s42, 16
          %s711 = scalar_lea.hbm %s5, %s710
          %s713 = sshll.u32 %s706, 4
          %s714 = int_to_ptr.vmem [resolvable:$true] %s713
          %716 = dma.hbm_to_vmem [thread:$0]  %s711, 16, %s714, %s704
        $region60: #{tpu_custom_call.1} parent=43 // pred_fallthru
          _
        // Predicated region
        $region61: #{tpu_custom_call.1} parent=43 // pred_check
          %p717 = pneg %p222
        $region62: #{tpu_custom_call.1} parent=43 // pred_check_branch
          %719 = sbr.rel (%p717) target = $region64
        $region63: #{tpu_custom_call.1} parent=43 // pred_region
          %s720 = sand.u32 %s34, 1
          %s721 = scalar_lea.sflag [#allocation4], %s720
          %s722 = sand.u32 %s212, 1
          %s723 = scalar_lea.vmem [#allocation10], %s722
          %s725 = ssub.s32 16, 16
          %726 = vsyncadd %s721, %s725
          %s727 = smul.addr %s42, 16
          %s728 = scalar_lea.hbm %s6, %s727
          %s730 = sshll.u32 %s723, 4
          %s731 = int_to_ptr.vmem [resolvable:$true] %s730
          %733 = dma.hbm_to_vmem [thread:$0]  %s728, 16, %s731, %s721
        $region64: #{tpu_custom_call.1} parent=43 // pred_fallthru
          _
        // Predicated region
        $region65: #{tpu_custom_call.1} parent=43 // pred_check
          %p734 = pneg %p248
        $region66: #{tpu_custom_call.1} parent=43 // pred_check_branch
          %736 = sbr.rel (%p734) target = $region68
        $region67: #{tpu_custom_call.1} parent=43 // pred_region
          %s737 = sand.u32 %s34, 1
          %s738 = scalar_lea.sflag [#allocation4], %s737
          %s739 = sand.u32 %s238, 1
          %s740 = scalar_lea.vmem [#allocation11], %s739
          %s742 = ssub.s32 16, 16
          %743 = vsyncadd %s738, %s742
          %s744 = smul.addr %s42, 16
          %s745 = scalar_lea.hbm %s7, %s744
          %s747 = sshll.u32 %s740, 4
          %s748 = int_to_ptr.vmem [resolvable:$true] %s747
          %750 = dma.hbm_to_vmem [thread:$0]  %s745, 16, %s748, %s738
        $region68: #{tpu_custom_call.1} parent=43 // pred_fallthru
          _
        // Predicated region
        $region69: #{tpu_custom_call.1} parent=43 // pred_check
          %p751 = pneg %p274
        $region70: #{tpu_custom_call.1} parent=43 // pred_check_branch
          %753 = sbr.rel (%p751) target = $region72
        $region71: #{tpu_custom_call.1} parent=43 // pred_region
          %p754 = scmp.lt.s32.totalorder %s42, 2
          %s755 = scalar_select %p754, %s42, 2
          %s756 = smul.addr %s755, 4
          %s757 = smul.addr %s756, 4
          %s758 = scalar_lea.vmem %s8, %s757
        $region72: #{tpu_custom_call.1} parent=43 // pred_fallthru
          _
        // Predicated region
        $region73: #{tpu_custom_call.1} parent=43 // pred_check
          %p759 = pneg %p300
        $region74: #{tpu_custom_call.1} parent=43 // pred_check_branch
          %761 = sbr.rel (%p759) target = $region76
        $region75: #{tpu_custom_call.1} parent=43 // pred_region
          %s762 = sand.u32 %s34, 1
          %s763 = scalar_lea.sflag [#allocation4], %s762
          %s764 = sand.u32 %s290, 1
          %s765 = scalar_lea.vmem [#allocation12], %s764
          %s767 = ssub.s32 16, 16
          %768 = vsyncadd %s763, %s767
          %s769 = smul.addr %s42, 16
          %s770 = scalar_lea.hbm %s9, %s769
          %s772 = sshll.u32 %s765, 4
          %s773 = int_to_ptr.vmem [resolvable:$true] %s772
          %775 = dma.hbm_to_vmem [thread:$0]  %s770, 16, %s773, %s763
        $region76: #{tpu_custom_call.1} parent=43 // pred_fallthru
          _
        // Predicated region
        $region77: #{tpu_custom_call.1} parent=43 // pred_check
          %p776 = pneg %p326
        $region78: #{tpu_custom_call.1} parent=43 // pred_check_branch
          %778 = sbr.rel (%p776) target = $region80
        $region79: #{tpu_custom_call.1} parent=43 // pred_region
          %p779 = scmp.lt.s32.totalorder %s42, 2
          %s780 = scalar_select %p779, %s42, 2
          %s781 = smul.addr %s780, 8
          %s782 = smul.addr %s781, 4
          %s783 = scalar_lea.vmem %s10, %s782
        $region80: #{tpu_custom_call.1} parent=43 // pred_fallthru
          _
        // Predicated region
        $region81: #{tpu_custom_call.1} parent=43 // pred_check
          %p784 = pneg %p352
        $region82: #{tpu_custom_call.1} parent=43 // pred_check_branch
          %786 = sbr.rel (%p784) target = $region84
        $region83: #{tpu_custom_call.1} parent=43 // pred_region
          %p787 = scmp.lt.s32.totalorder %s42, 2
          %s788 = scalar_select %p787, %s42, 2
          %s789 = scalar_lea.vmem %s11, %s788
        $region84: #{tpu_custom_call.1} parent=43 // pred_fallthru
          _
        // Predicated region
        $region85: #{tpu_custom_call.1} parent=43 // pred_check
          %p790 = pneg %p378
        $region86: #{tpu_custom_call.1} parent=43 // pred_check_branch
          %792 = sbr.rel (%p790) target = $region88
        $region87: #{tpu_custom_call.1} parent=43 // pred_region
          %p793 = scmp.lt.s32.totalorder %s42, 2
          %s794 = scalar_select %p793, %s42, 2
          %s795 = scalar_lea.vmem %s12, %s794
        $region88: #{tpu_custom_call.1} parent=43 // pred_fallthru
          _
        // Predicated region
        $region89: #{tpu_custom_call.1} parent=43 // pred_check
          %p796 = pneg %p404
        $region90: #{tpu_custom_call.1} parent=43 // pred_check_branch
          %798 = sbr.rel (%p796) target = $region92
        $region91: #{tpu_custom_call.1} parent=43 // pred_region
          %p799 = scmp.lt.s32.totalorder %s42, 2
          %s800 = scalar_select %p799, %s42, 2
          %s801 = scalar_lea.vmem %s13, %s800
        $region92: #{tpu_custom_call.1} parent=43 // pred_fallthru
          _
      $region44: #{tpu_custom_call.1} parent=5 // pred_fallthru
        _
      %p802 = scmp.le.s32.totalorder 1, %s34
      %p803 = scmp.lt.s32.totalorder %s34, 4
      %p804 = pnand %p802, %p803
      %p805 = pneg %p804
      // Predicated region
      $region93: #{tpu_custom_call.1} parent=5 // pred_check
        _
      $region94: #{tpu_custom_call.1} parent=5 // pred_check_branch
        %807 = sbr.rel (%p804) target = $region96
      $region95: #{tpu_custom_call.1} parent=5 // pred_region
        %s808 = ssub.s32 %s34, 1
        // Predicated region
        $region97: #{tpu_custom_call.1} parent=95 // pred_check
          %p809 = pneg %p72
        $region98: #{tpu_custom_call.1} parent=95 // pred_check_branch
          %811 = sbr.rel (%p809) target = $region100
        $region99: #{tpu_custom_call.1} parent=95 // pred_region
          %812 = dma.done [#allocation4], 256
        $region100: #{tpu_custom_call.1} parent=95 // pred_fallthru
          _
        // Predicated region
        $region101: #{tpu_custom_call.1} parent=95 // pred_check
          %p813 = pneg %p98
        $region102: #{tpu_custom_call.1} parent=95 // pred_check_branch
          %815 = sbr.rel (%p813) target = $region104
        $region103: #{tpu_custom_call.1} parent=95 // pred_region
          %816 = dma.done [#allocation7], 32
        $region104: #{tpu_custom_call.1} parent=95 // pred_fallthru
          _
        %s817 = sand.u32 %s39, 1
        %s818 = scalar_lea.sflag [#allocation4], %s817
        %s819 = sand.u32 %s137, 1
        %s820 = scalar_lea.vmem [#allocation8], %s819
        // Predicated region
        $region105: #{tpu_custom_call.1} parent=95 // pred_check
          %p821 = pneg %p150
        $region106: #{tpu_custom_call.1} parent=95 // pred_check_branch
          %823 = sbr.rel (%p821) target = $region108
        $region107: #{tpu_custom_call.1} parent=95 // pred_region
          %824 = dma.done %s818, 16
        $region108: #{tpu_custom_call.1} parent=95 // pred_fallthru
          _
        %s825 = sand.u32 %s39, 1
        %s826 = scalar_lea.sflag [#allocation4], %s825
        %s827 = sand.u32 %s189, 1
        %s828 = scalar_lea.vmem [#allocation9], %s827
        // Predicated region
        $region109: #{tpu_custom_call.1} parent=95 // pred_check
          %p829 = pneg %p202
        $region110: #{tpu_custom_call.1} parent=95 // pred_check_branch
          %831 = sbr.rel (%p829) target = $region112
        $region111: #{tpu_custom_call.1} parent=95 // pred_region
          %832 = dma.done %s826, 16
        $region112: #{tpu_custom_call.1} parent=95 // pred_fallthru
          _
        %s833 = sand.u32 %s39, 1
        %s834 = scalar_lea.sflag [#allocation4], %s833
        %s835 = sand.u32 %s215, 1
        %s836 = scalar_lea.vmem [#allocation10], %s835
        // Predicated region
        $region113: #{tpu_custom_call.1} parent=95 // pred_check
          %p837 = pneg %p228
        $region114: #{tpu_custom_call.1} parent=95 // pred_check_branch
          %839 = sbr.rel (%p837) target = $region116
        $region115: #{tpu_custom_call.1} parent=95 // pred_region
          %840 = dma.done %s834, 16
        $region116: #{tpu_custom_call.1} parent=95 // pred_fallthru
          _
        %s841 = sand.u32 %s39, 1
        %s842 = scalar_lea.sflag [#allocation4], %s841
        %s843 = sand.u32 %s241, 1
        %s844 = scalar_lea.vmem [#allocation11], %s843
        // Predicated region
        $region117: #{tpu_custom_call.1} parent=95 // pred_check
          %p845 = pneg %p254
        $region118: #{tpu_custom_call.1} parent=95 // pred_check_branch
          %847 = sbr.rel (%p845) target = $region120
        $region119: #{tpu_custom_call.1} parent=95 // pred_region
          %848 = dma.done %s842, 16
        $region120: #{tpu_custom_call.1} parent=95 // pred_fallthru
          _
        %s849 = sand.u32 %s39, 1
        %s850 = scalar_lea.sflag [#allocation4], %s849
        %s851 = sand.u32 %s293, 1
        %s852 = scalar_lea.vmem [#allocation12], %s851
        // Predicated region
        $region121: #{tpu_custom_call.1} parent=95 // pred_check
          %p853 = pneg %p306
        $region122: #{tpu_custom_call.1} parent=95 // pred_check_branch
          %855 = sbr.rel (%p853) target = $region124
        $region123: #{tpu_custom_call.1} parent=95 // pred_region
          %856 = dma.done %s850, 16
        $region124: #{tpu_custom_call.1} parent=95 // pred_fallthru
          _
        %p857 = pneg %p72
        %p858 = pneg %p69
        %p859 = pneg %p98
        %p860 = pneg %p95
        %p861 = scmp.lt.s32.totalorder %s44, 2
        %s862 = scalar_select %p861, %s44, 2
        %s863 = smul.addr %s862, 4
        %s864 = smul.addr %s863, 4
        %s865 = scalar_lea.vmem %s2, %s864
        %p866 = pneg %p124
        %p867 = pneg %p121
        %s868 = sand.u32 %s39, 1
        %s869 = scalar_lea.sflag [#allocation4], %s868
        %s870 = sand.u32 %s137, 1
        %s871 = scalar_lea.vmem [#allocation8], %s870
        %p872 = pneg %p150
        %p873 = pneg %p147
        %p874 = scmp.lt.s32.totalorder %s44, 2
        %s875 = scalar_select %p874, %s44, 2
        %s876 = smul.addr %s875, 4
        %s877 = smul.addr %s876, 4
        %s878 = scalar_lea.vmem %s4, %s877
        %p879 = pneg %p176
        %p880 = pneg %p173
        %s881 = sand.u32 %s39, 1
        %s882 = scalar_lea.sflag [#allocation4], %s881
        %s883 = sand.u32 %s189, 1
        %s884 = scalar_lea.vmem [#allocation9], %s883
        %p885 = pneg %p202
        %p886 = pneg %p199
        %s887 = sand.u32 %s39, 1
        %s888 = scalar_lea.sflag [#allocation4], %s887
        %s889 = sand.u32 %s215, 1
        %s890 = scalar_lea.vmem [#allocation10], %s889
        %p891 = pneg %p228
        %p892 = pneg %p225
        %s893 = sand.u32 %s39, 1
        %s894 = scalar_lea.sflag [#allocation4], %s893
        %s895 = sand.u32 %s241, 1
        %s896 = scalar_lea.vmem [#allocation11], %s895
        %p897 = pneg %p254
        %p898 = pneg %p251
        %p899 = scmp.lt.s32.totalorder %s44, 2
        %s900 = scalar_select %p899, %s44, 2
        %s901 = smul.addr %s900, 4
        %s902 = smul.addr %s901, 4
        %s903 = scalar_lea.vmem %s8, %s902
        %p904 = pneg %p280
        %p905 = pneg %p277
        %s906 = sand.u32 %s39, 1
        %s907 = scalar_lea.sflag [#allocation4], %s906
        %s908 = sand.u32 %s293, 1
        %s909 = scalar_lea.vmem [#allocation12], %s908
        %p910 = pneg %p306
        %p911 = pneg %p303
        %p912 = scmp.lt.s32.totalorder %s44, 2
        %s913 = scalar_select %p912, %s44, 2
        %s914 = smul.addr %s913, 8
        %s915 = smul.addr %s914, 4
        %s916 = scalar_lea.vmem %s10, %s915
        %p917 = pneg %p332
        %p918 = pneg %p329
        %p919 = scmp.lt.s32.totalorder %s44, 2
        %s920 = scalar_select %p919, %s44, 2
        %s921 = scalar_lea.vmem %s11, %s920
        %p922 = pneg %p358
        %p923 = pneg %p355
        %p924 = scmp.lt.s32.totalorder %s44, 2
        %s925 = scalar_select %p924, %s44, 2
        %s926 = scalar_lea.vmem %s12, %s925
        %p927 = pneg %p384
        %p928 = pneg %p381
        %p929 = scmp.lt.s32.totalorder %s44, 2
        %s930 = scalar_select %p929, %s44, 2
        %s931 = scalar_lea.vmem %s13, %s930
        %p932 = pneg %p410
        %p933 = pneg %p407
        %p934 = pneg %p431
        %p935 = pneg %p428
        %p936 = pneg %p452
        %p937 = pneg %p449
        %p938 = pneg %p473
        %p939 = pneg %p470
        %p940 = pneg %p494
        %p941 = pneg %p491
        %p942 = scmp.lt.s32.totalorder %s43, 0
        %s943 = scalar_select %p942, %s43, 0
        %s944 = smul.addr %s943, 2
        %s945 = scalar_lea.vmem %s18, %s944
        %p946 = pneg %p520
        %p947 = pneg %p517
        %p948 = pneg %p548
        %p949 = pneg %p545
        %s950 = sand.u32 %s535, 1
        %s951 = scalar_lea.sflag [#allocation5], %s950
        %s952 = sand.u32 %s535, 1
        %s953 = smul.addr %s952, 8
        %s954 = scalar_lea.vmem [#allocation13], %s953
        %p955 = pneg %p574
        %p956 = pneg %p571
        %p957 = pneg %p600
        %p958 = pneg %p597
        %p959 = scmp.lt.s32.totalorder %s43, 0
        %s960 = scalar_select %p959, %s43, 0
        %s961 = smul.addr %s960, 2
        %s962 = scalar_lea.vmem %s21, %s961
        %s963 = smul.u32 2, %s43
        %p964 = scmp.lt.s32.totalorder %s44, 2
        %s965 = scalar_select %p964, %s44, 2
        %s966 = smul.addr %s965, 4
        %s967 = smul.addr %s966, 4
        %s968 = scalar_lea.vmem %s2, %s967
        %p969 = scmp.lt.s32.totalorder %s44, 2
        %s970 = scalar_select %p969, %s44, 2
        %s971 = smul.addr %s970, 4
        %s972 = smul.addr %s971, 4
        %s973 = scalar_lea.vmem %s4, %s972
        %p974 = scmp.lt.s32.totalorder %s44, 2
        %s975 = scalar_select %p974, %s44, 2
        %s976 = smul.addr %s975, 4
        %s977 = smul.addr %s976, 4
        %s978 = scalar_lea.vmem %s8, %s977
        %p979 = scmp.lt.s32.totalorder %s44, 2
        %s980 = scalar_select %p979, %s44, 2
        %s981 = smul.addr %s980, 8
        %s982 = smul.addr %s981, 4
        %s983 = scalar_lea.vmem %s10, %s982
        %p984 = scmp.lt.s32.totalorder %s44, 2
        %s985 = scalar_select %p984, %s44, 2
        %s986 = scalar_lea.vmem %s11, %s985
        %p987 = scmp.lt.s32.totalorder %s44, 2
        %s988 = scalar_select %p987, %s44, 2
        %s989 = scalar_lea.vmem %s12, %s988
        %p990 = scmp.lt.s32.totalorder %s44, 2
        %s991 = scalar_select %p990, %s44, 2
        %s992 = scalar_lea.vmem %s13, %s991
        %p993 = scmp.lt.s32.totalorder %s43, 0
        %s994 = scalar_select %p993, %s43, 0
        %s995 = smul.addr %s994, 2
        %s996 = scalar_lea.vmem %s18, %s995
        %s997 = smul.u32 2, %s43
        %p998 = scmp.lt.s32.totalorder %s43, 0
        %s999 = scalar_select %p998, %s43, 0
        %s1000 = smul.addr %s999, 2
        %s1001 = scalar_lea.vmem %s21, %s1000
        %p1004 = scmp.eq.s32.totalorder %s44, 0
        // Predicated region
        $region125: #{tpu_custom_call.1} parent=95 // pred_check
          %p1005 = pneg %p1004
        $region126: #{tpu_custom_call.1} parent=95 // pred_check_branch
          %1007 = sbr.rel (%p1005) target = $region128
        $region127: #{tpu_custom_call.1} parent=95 // pred_region
          %v1008 = vld [vmem:[#allocation3] sm:$0xff]
          %v1009 = vld [vmem:[#allocation3 + $0x8] sm:$0xff]
          %vm1010 = vcmask 261120
          %1011 = vst.msk [vmem:[#allocation2] sm:$0xff] %vm1010, %v1008
          %1012 = vst.msk [vmem:[#allocation2 + $0x8] sm:$0xff] %vm1010, %v1009
          %1013 = vst [vmem:[#allocation14] sm:$0x3] 0.0
          %vm1014 = vcmask 1024
          %1015 = vst.msk [vmem:[%s1001] sm:$0x3] %vm1014, 0.0
        $region128: #{tpu_custom_call.1} parent=95 // pred_fallthru
          _
        %v1016 = vld [vmem:[#allocation2] sm:$0xff]
        %v1017 = vld [vmem:[#allocation2 + $0x8] sm:$0xff]
        %v1018 = vpack.c.bf16 %v1017, %v1016
        %v1019 = vld [vmem:[%s968] sm:$0xf]
        %v1020 = vld [vmem:[%s968 + $0x4] sm:$0xf]
        %v1021 = vld [vmem:[%s968 + $0x8] sm:$0xf]
        %v1022 = vld [vmem:[%s968 + $0xc] sm:$0xf]
        %v1023 = vld [vmem:[%s820] sm:$0x1]
        %v1025 = vlaneseq
        %v1026 = vshrl.u32 %v1025, 7
        %v1027 = vsub.s32 0, %v1026
        %v1028 = vrot.slane %v1023, %v1027
        %v1034 = vunpack.c.l.b16 %v1019
        %v1035 = vunpack.c.l.b16 %v1020
        %v1036 = vunpack.c.l.b16 %v1021
        %v1037 = vunpack.c.l.b16 %v1022
        %v1038 = vpack.c.b16 %v1035, %v1034
        %v1039 = vpack.c.b16 %v1037, %v1036
        %vm1042 = vcmask 261120
        %v1044 = vsel %vm1042, %v1018, 0
        %1046 = vmatprep.subr.bf16.mxu0 0
        %1047 = vmatpush1.bf16.msra.mxu0 %v1038
        %1048 = vmatprep.subr.bf16.mxu0 0
        %1049 = vmatpush1.bf16.msra.mxu0 %v1039
        %1050 = vmatprep.subr.bf16.mxu0 0
        %1051 = vmatpush1.bf16.msra.mxu0 0
        %1052 = vmatprep.subr.bf16.mxu0 0
        %1053 = vmatpush1.bf16.msra.mxu0 0
        %1054 = vmatprep.subr.bf16.mxu0 0
        %1055 = vmatpush1.bf16.msra.mxu0 0
        %1056 = vmatprep.subr.bf16.mxu0 0
        %1057 = vmatpush1.bf16.msra.mxu0 0
        %1058 = vmatprep.subr.bf16.mxu0 0
        %1059 = vmatpush1.bf16.msra.mxu0 0
        %1060 = vmatprep.subr.bf16.mxu0 0
        %1061 = vmatpush1.bf16.msra.mxu0 0
        %1062 = vmatprep.subr.bf16.mxu0 0
        %1063 = vmatpush1.bf16.msra.mxu0 0
        %1064 = vmatprep.subr.bf16.mxu0 0
        %1065 = vmatpush1.bf16.msra.mxu0 0
        %1066 = vmatprep.subr.bf16.mxu0 0
        %1067 = vmatpush1.bf16.msra.mxu0 0
        %1068 = vmatprep.subr.bf16.mxu0 0
        %1069 = vmatpush1.bf16.msra.mxu0 0
        %1070 = vmatprep.subr.bf16.mxu0 0
        %1071 = vmatpush1.bf16.msra.mxu0 0
        %1072 = vmatprep.subr.bf16.mxu0 0
        %1073 = vmatpush1.bf16.msra.mxu0 0
        %1074 = vmatprep.subr.bf16.mxu0 0
        %1075 = vmatpush1.bf16.msra.mxu0 0
        %1076 = vmatprep.subr.bf16.mxu0 0
        %1077 = vmatpush1.bf16.msra.mxu0 0
        %1078 = vmatprep.mubr.bf16.mxu0 0
        %1079 = vmatmul.mubr.bf16.gmra.mrb[0].mxu0 %v1044
        %v1080 = vpop.f32.mrb[0].mxu0
        %v1081 = vadd.f32 %v1028, %v1080
        %v1082 = vpop.f32.mrb[0].mxu0
        %v1083 = vpop.f32.mrb[0].mxu0
        %v1084 = vadd.f32 %v1028, %v1083
        %v1085 = vpop.f32.mrb[0].mxu0
        %1086 = vdwg.mxu0
        %v1087 = vpack.c.bf16 %v1084, %v1081
        %v1088 = vmul.bf16 %v1087, 1052065461
        %v1090 = vunpack.c.l.b16 %v1088
        %v1091 = vunpack.c.h.b16 %v1088
        %v1092 = vpack.c.b16 %v1090, %v1090
        %v1093 = vpack.c.b16 %v1091, %v1091
        %1094 = vrot.lane.b32.xlu0 %v1092, 120
        %v1095 = vpop.permute.xlu0 %1094
        %1096 = vrot.lane.b32.xlu0 %v1093, 120
        %v1097 = vpop.permute.xlu0 %1096
        %1098 = vrot.lane.b32.xlu0 %v1092, 112
        %v1099 = vpop.permute.xlu0 %1098
        %1100 = vrot.lane.b32.xlu0 %v1093, 112
        %v1101 = vpop.permute.xlu0 %1100
        %1102 = vrot.lane.b32.xlu0 %v1092, 104
        %v1103 = vpop.permute.xlu0 %1102
        %1104 = vrot.lane.b32.xlu0 %v1093, 104
        %v1105 = vpop.permute.xlu0 %1104
        %v1107 = vunpack.c.l.b16 %v1087
        %v1108 = vunpack.c.h.b16 %v1087
        %v1109 = vpack.c.b16 %v1107, %v1107
        %v1110 = vpack.c.b16 %v1108, %v1108
        %1111 = vrot.lane.b32.xlu0 %v1109, 120
        %v1112 = vpop.permute.xlu0 %1111
        %1113 = vrot.lane.b32.xlu0 %v1110, 120
        %v1114 = vpop.permute.xlu0 %1113
        %1115 = vrot.lane.b32.xlu0 %v1109, 112
        %v1116 = vpop.permute.xlu0 %1115
        %1117 = vrot.lane.b32.xlu0 %v1110, 112
        %v1118 = vpop.permute.xlu0 %1117
        %1119 = vrot.lane.b32.xlu0 %v1109, 104
        %v1120 = vpop.permute.xlu0 %1119
        %1121 = vrot.lane.b32.xlu0 %v1110, 104
        %v1122 = vpop.permute.xlu0 %1121
        %1123 = vrot.lane.b32.xlu0 %v1109, 96
        %v1124 = vpop.permute.xlu0 %1123
        %vm1125 = vcmask 64512
        %v1127 = vsel %vm1125, %v1092, 0
        %v1130 = vsel %vm1125, %v1124, 0
        %1132 = vmatprep.subr.bf16.mxu0 0
        %1133 = vmatpush1.bf16.xpose.msra.mxu0 %v1130
        %1134 = vmatprep.subr.bf16.mxu0 0
        %1135 = vmatpush1.bf16.xpose.msra.mxu0 0
        %1136 = vmatprep.subr.bf16.mxu0 0
        %1137 = vmatpush1.bf16.xpose.msra.mxu0 0
        %1138 = vmatprep.subr.bf16.mxu0 0
        %1139 = vmatpush1.bf16.xpose.msra.mxu0 0
        %1140 = vmatprep.subr.bf16.mxu0 0
        %1141 = vmatpush1.bf16.xpose.msra.mxu0 0
        %1142 = vmatprep.subr.bf16.mxu0 0
        %1143 = vmatpush1.bf16.xpose.msra.mxu0 0
        %1144 = vmatprep.subr.bf16.mxu0 0
        %1145 = vmatpush1.bf16.xpose.msra.mxu0 0
        %1146 = vmatprep.subr.bf16.mxu0 0
        %1147 = vmatpush1.bf16.xpose.msra.mxu0 0
        %1148 = vmatprep.subr.bf16.mxu0 0
        %1149 = vmatpush1.bf16.xpose.msra.mxu0 0
        %1150 = vmatprep.subr.bf16.mxu0 0
        %1151 = vmatpush1.bf16.xpose.msra.mxu0 0
        %1152 = vmatprep.subr.bf16.mxu0 0
        %1153 = vmatpush1.bf16.xpose.msra.mxu0 0
        %1154 = vmatprep.subr.bf16.mxu0 0
        %1155 = vmatpush1.bf16.xpose.msra.mxu0 0
        %1156 = vmatprep.subr.bf16.mxu0 0
        %1157 = vmatpush1.bf16.xpose.msra.mxu0 0
        %1158 = vmatprep.subr.bf16.mxu0 0
        %1159 = vmatpush1.bf16.xpose.msra.mxu0 0
        %1160 = vmatprep.subr.bf16.mxu0 0
        %1161 = vmatpush1.bf16.xpose.msra.mxu0 0
        %1162 = vmatprep.subr.bf16.mxu0 0
        %1163 = vmatpush1.bf16.xpose.msra.mxu0 0
        %1164 = vmatprep.mubr.bf16.mxu0 0
        %1165 = vmatmul.mubr.bf16.gmra.mrb[0].mxu0 %v1127
        %v1166 = vpop.f32.mrb[0].mxu0
        %v1167 = vadd.f32 0.0, %v1166
        %v1168 = vpop.f32.mrb[0].mxu0
        %v1169 = vpop.f32.mrb[0].mxu0
        %v1170 = vpop.f32.mrb[0].mxu0
        %1171 = vdwg.mxu0
        %1172 = vrot.lane.b32.xlu0 %v1110, 96
        %v1173 = vpop.permute.xlu0 %1172
        %v1175 = vsel %vm1125, %v1093, 0
        %v1178 = vsel %vm1125, %v1173, 0
        %1180 = vmatprep.subr.bf16.mxu0 0
        %1181 = vmatpush1.bf16.xpose.msra.mxu0 %v1178
        %1182 = vmatprep.subr.bf16.mxu0 0
        %1183 = vmatpush1.bf16.xpose.msra.mxu0 0
        %1184 = vmatprep.subr.bf16.mxu0 0
        %1185 = vmatpush1.bf16.xpose.msra.mxu0 0
        %1186 = vmatprep.subr.bf16.mxu0 0
        %1187 = vmatpush1.bf16.xpose.msra.mxu0 0
        %1188 = vmatprep.subr.bf16.mxu0 0
        %1189 = vmatpush1.bf16.xpose.msra.mxu0 0
        %1190 = vmatprep.subr.bf16.mxu0 0
        %1191 = vmatpush1.bf16.xpose.msra.mxu0 0
        %1192 = vmatprep.subr.bf16.mxu0 0
        %1193 = vmatpush1.bf16.xpose.msra.mxu0 0
        %1194 = vmatprep.subr.bf16.mxu0 0
        %1195 = vmatpush1.bf16.xpose.msra.mxu0 0
        %1196 = vmatprep.subr.bf16.mxu0 0
        %1197 = vmatpush1.bf16.xpose.msra.mxu0 0
        %1198 = vmatprep.subr.bf16.mxu0 0
        %1199 = vmatpush1.bf16.xpose.msra.mxu0 0
        %1200 = vmatprep.subr.bf16.mxu0 0
        %1201 = vmatpush1.bf16.xpose.msra.mxu0 0
        %1202 = vmatprep.subr.bf16.mxu0 0
        %1203 = vmatpush1.bf16.xpose.msra.mxu0 0
        %1204 = vmatprep.subr.bf16.mxu0 0
        %1205 = vmatpush1.bf16.xpose.msra.mxu0 0
        %1206 = vmatprep.subr.bf16.mxu0 0
        %1207 = vmatpush1.bf16.xpose.msra.mxu0 0
        %1208 = vmatprep.subr.bf16.mxu0 0
        %1209 = vmatpush1.bf16.xpose.msra.mxu0 0
        %1210 = vmatprep.subr.bf16.mxu0 0
        %1211 = vmatpush1.bf16.xpose.msra.mxu0 0
        %1212 = vmatprep.mubr.bf16.mxu0 0
        %1213 = vmatmul.mubr.bf16.gmra.mrb[0].mxu0 %v1175
        %v1214 = vpop.f32.mrb[0].mxu0
        %v1215 = vadd.f32 0.0, %v1214
        %v1216 = vpop.f32.mrb[0].mxu0
        %v1217 = vpop.f32.mrb[0].mxu0
        %v1218 = vpop.f32.mrb[0].mxu0
        %1219 = vdwg.mxu0
        %v1220 = vunpack.c.l.b16 %v1112
        %v1221 = vpack.c.b16 %v1220, %v1220
        %1222 = vrot.lane.b32.xlu0 %v1221, 96
        %v1223 = vpop.permute.xlu0 %1222
        %v1225 = vsel %vm1125, %v1095, 0
        %v1228 = vsel %vm1125, %v1223, 0
        %1230 = vmatprep.subr.bf16.mxu0 0
        %1231 = vmatpush1.bf16.xpose.msra.mxu0 %v1228
        %1232 = vmatprep.subr.bf16.mxu0 0
        %1233 = vmatpush1.bf16.xpose.msra.mxu0 0
        %1234 = vmatprep.subr.bf16.mxu0 0
        %1235 = vmatpush1.bf16.xpose.msra.mxu0 0
        %1236 = vmatprep.subr.bf16.mxu0 0
        %1237 = vmatpush1.bf16.xpose.msra.mxu0 0
        %1238 = vmatprep.subr.bf16.mxu0 0
        %1239 = vmatpush1.bf16.xpose.msra.mxu0 0
        %1240 = vmatprep.subr.bf16.mxu0 0
        %1241 = vmatpush1.bf16.xpose.msra.mxu0 0
        %1242 = vmatprep.subr.bf16.mxu0 0
        %1243 = vmatpush1.bf16.xpose.msra.mxu0 0
        %1244 = vmatprep.subr.bf16.mxu0 0
        %1245 = vmatpush1.bf16.xpose.msra.mxu0 0
        %1246 = vmatprep.subr.bf16.mxu0 0
        %1247 = vmatpush1.bf16.xpose.msra.mxu0 0
        %1248 = vmatprep.subr.bf16.mxu0 0
        %1249 = vmatpush1.bf16.xpose.msra.mxu0 0
        %1250 = vmatprep.subr.bf16.mxu0 0
        %1251 = vmatpush1.bf16.xpose.msra.mxu0 0
        %1252 = vmatprep.subr.bf16.mxu0 0
        %1253 = vmatpush1.bf16.xpose.msra.mxu0 0
        %1254 = vmatprep.subr.bf16.mxu0 0
        %1255 = vmatpush1.bf16.xpose.msra.mxu0 0
        %1256 = vmatprep.subr.bf16.mxu0 0
        %1257 = vmatpush1.bf16.xpose.msra.mxu0 0
        %1258 = vmatprep.subr.bf16.mxu0 0
        %1259 = vmatpush1.bf16.xpose.msra.mxu0 0
        %1260 = vmatprep.subr.bf16.mxu0 0
        %1261 = vmatpush1.bf16.xpose.msra.mxu0 0
        %1262 = vmatprep.mubr.bf16.mxu0 0
        %1263 = vmatmul.mubr.bf16.gmra.mrb[0].mxu0 %v1225
        %v1264 = vpop.f32.mrb[0].mxu0
        %v1265 = vadd.f32 0.0, %v1264
        %v1266 = vpop.f32.mrb[0].mxu0
        %v1267 = vpop.f32.mrb[0].mxu0
        %v1268 = vpop.f32.mrb[0].mxu0
        %1269 = vdwg.mxu0
        %v1270 = vunpack.c.l.b16 %v1114
        %v1271 = vpack.c.b16 %v1270, %v1270
        %1272 = vrot.lane.b32.xlu0 %v1271, 96
        %v1273 = vpop.permute.xlu0 %1272
        %v1275 = vsel %vm1125, %v1097, 0
        %v1278 = vsel %vm1125, %v1273, 0
        %1280 = vmatprep.subr.bf16.mxu0 0
        %1281 = vmatpush1.bf16.xpose.msra.mxu0 %v1278
        %1282 = vmatprep.subr.bf16.mxu0 0
        %1283 = vmatpush1.bf16.xpose.msra.mxu0 0
        %1284 = vmatprep.subr.bf16.mxu0 0
        %1285 = vmatpush1.bf16.xpose.msra.mxu0 0
        %1286 = vmatprep.subr.bf16.mxu0 0
        %1287 = vmatpush1.bf16.xpose.msra.mxu0 0
        %1288 = vmatprep.subr.bf16.mxu0 0
        %1289 = vmatpush1.bf16.xpose.msra.mxu0 0
        %1290 = vmatprep.subr.bf16.mxu0 0
        %1291 = vmatpush1.bf16.xpose.msra.mxu0 0
        %1292 = vmatprep.subr.bf16.mxu0 0
        %1293 = vmatpush1.bf16.xpose.msra.mxu0 0
        %1294 = vmatprep.subr.bf16.mxu0 0
        %1295 = vmatpush1.bf16.xpose.msra.mxu0 0
        %1296 = vmatprep.subr.bf16.mxu0 0
        %1297 = vmatpush1.bf16.xpose.msra.mxu0 0
        %1298 = vmatprep.subr.bf16.mxu0 0
        %1299 = vmatpush1.bf16.xpose.msra.mxu0 0
        %1300 = vmatprep.subr.bf16.mxu0 0
        %1301 = vmatpush1.bf16.xpose.msra.mxu0 0
        %1302 = vmatprep.subr.bf16.mxu0 0
        %1303 = vmatpush1.bf16.xpose.msra.mxu0 0
        %1304 = vmatprep.subr.bf16.mxu0 0
        %1305 = vmatpush1.bf16.xpose.msra.mxu0 0
        %1306 = vmatprep.subr.bf16.mxu0 0
        %1307 = vmatpush1.bf16.xpose.msra.mxu0 0
        %1308 = vmatprep.subr.bf16.mxu0 0
        %1309 = vmatpush1.bf16.xpose.msra.mxu0 0
        %1310 = vmatprep.subr.bf16.mxu0 0
        %1311 = vmatpush1.bf16.xpose.msra.mxu0 0
        %1312 = vmatprep.mubr.bf16.mxu0 0
        %1313 = vmatmul.mubr.bf16.gmra.mrb[0].mxu0 %v1275
        %v1314 = vpop.f32.mrb[0].mxu0
        %v1315 = vadd.f32 0.0, %v1314
        %v1316 = vpop.f32.mrb[0].mxu0
        %v1317 = vpop.f32.mrb[0].mxu0
        %v1318 = vpop.f32.mrb[0].mxu0
        %1319 = vdwg.mxu0
        %v1320 = vunpack.c.l.b16 %v1116
        %v1321 = vpack.c.b16 %v1320, %v1320
        %1322 = vrot.lane.b32.xlu0 %v1321, 96
        %v1323 = vpop.permute.xlu0 %1322
        %v1325 = vsel %vm1125, %v1099, 0
        %v1328 = vsel %vm1125, %v1323, 0
        %1330 = vmatprep.subr.bf16.mxu0 0
        %1331 = vmatpush1.bf16.xpose.msra.mxu0 %v1328
        %1332 = vmatprep.subr.bf16.mxu0 0
        %1333 = vmatpush1.bf16.xpose.msra.mxu0 0
        %1334 = vmatprep.subr.bf16.mxu0 0
        %1335 = vmatpush1.bf16.xpose.msra.mxu0 0
        %1336 = vmatprep.subr.bf16.mxu0 0
        %1337 = vmatpush1.bf16.xpose.msra.mxu0 0
        %1338 = vmatprep.subr.bf16.mxu0 0
        %1339 = vmatpush1.bf16.xpose.msra.mxu0 0
        %1340 = vmatprep.subr.bf16.mxu0 0
        %1341 = vmatpush1.bf16.xpose.msra.mxu0 0
        %1342 = vmatprep.subr.bf16.mxu0 0
        %1343 = vmatpush1.bf16.xpose.msra.mxu0 0
        %1344 = vmatprep.subr.bf16.mxu0 0
        %1345 = vmatpush1.bf16.xpose.msra.mxu0 0
        %1346 = vmatprep.subr.bf16.mxu0 0
        %1347 = vmatpush1.bf16.xpose.msra.mxu0 0
        %1348 = vmatprep.subr.bf16.mxu0 0
        %1349 = vmatpush1.bf16.xpose.msra.mxu0 0
        %1350 = vmatprep.subr.bf16.mxu0 0
        %1351 = vmatpush1.bf16.xpose.msra.mxu0 0
        %1352 = vmatprep.subr.bf16.mxu0 0
        %1353 = vmatpush1.bf16.xpose.msra.mxu0 0
        %1354 = vmatprep.subr.bf16.mxu0 0
        %1355 = vmatpush1.bf16.xpose.msra.mxu0 0
        %1356 = vmatprep.subr.bf16.mxu0 0
        %1357 = vmatpush1.bf16.xpose.msra.mxu0 0
        %1358 = vmatprep.subr.bf16.mxu0 0
        %1359 = vmatpush1.bf16.xpose.msra.mxu0 0
        %1360 = vmatprep.subr.bf16.mxu0 0
        %1361 = vmatpush1.bf16.xpose.msra.mxu0 0
        %1362 = vmatprep.mubr.bf16.mxu0 0
        %1363 = vmatmul.mubr.bf16.gmra.mrb[0].mxu0 %v1325
        %v1364 = vpop.f32.mrb[0].mxu0
        %v1365 = vadd.f32 0.0, %v1364
        %v1366 = vpop.f32.mrb[0].mxu0
        %v1367 = vpop.f32.mrb[0].mxu0
        %v1368 = vpop.f32.mrb[0].mxu0
        %1369 = vdwg.mxu0
        %v1370 = vunpack.c.l.b16 %v1118
        %v1371 = vpack.c.b16 %v1370, %v1370
        %1372 = vrot.lane.b32.xlu0 %v1371, 96
        %v1373 = vpop.permute.xlu0 %1372
        %v1375 = vsel %vm1125, %v1101, 0
        %v1378 = vsel %vm1125, %v1373, 0
        %1380 = vmatprep.subr.bf16.mxu0 0
        %1381 = vmatpush1.bf16.xpose.msra.mxu0 %v1378
        %1382 = vmatprep.subr.bf16.mxu0 0
        %1383 = vmatpush1.bf16.xpose.msra.mxu0 0
        %1384 = vmatprep.subr.bf16.mxu0 0
        %1385 = vmatpush1.bf16.xpose.msra.mxu0 0
        %1386 = vmatprep.subr.bf16.mxu0 0
        %1387 = vmatpush1.bf16.xpose.msra.mxu0 0
        %1388 = vmatprep.subr.bf16.mxu0 0
        %1389 = vmatpush1.bf16.xpose.msra.mxu0 0
        %1390 = vmatprep.subr.bf16.mxu0 0
        %1391 = vmatpush1.bf16.xpose.msra.mxu0 0
        %1392 = vmatprep.subr.bf16.mxu0 0
        %1393 = vmatpush1.bf16.xpose.msra.mxu0 0
        %1394 = vmatprep.subr.bf16.mxu0 0
        %1395 = vmatpush1.bf16.xpose.msra.mxu0 0
        %1396 = vmatprep.subr.bf16.mxu0 0
        %1397 = vmatpush1.bf16.xpose.msra.mxu0 0
        %1398 = vmatprep.subr.bf16.mxu0 0
        %1399 = vmatpush1.bf16.xpose.msra.mxu0 0
        %1400 = vmatprep.subr.bf16.mxu0 0
        %1401 = vmatpush1.bf16.xpose.msra.mxu0 0
        %1402 = vmatprep.subr.bf16.mxu0 0
        %1403 = vmatpush1.bf16.xpose.msra.mxu0 0
        %1404 = vmatprep.subr.bf16.mxu0 0
        %1405 = vmatpush1.bf16.xpose.msra.mxu0 0
        %1406 = vmatprep.subr.bf16.mxu0 0
        %1407 = vmatpush1.bf16.xpose.msra.mxu0 0
        %1408 = vmatprep.subr.bf16.mxu0 0
        %1409 = vmatpush1.bf16.xpose.msra.mxu0 0
        %1410 = vmatprep.subr.bf16.mxu0 0
        %1411 = vmatpush1.bf16.xpose.msra.mxu0 0
        %1412 = vmatprep.mubr.bf16.mxu0 0
        %1413 = vmatmul.mubr.bf16.gmra.mrb[0].mxu0 %v1375
        %v1414 = vpop.f32.mrb[0].mxu0
        %v1415 = vadd.f32 0.0, %v1414
        %v1416 = vpop.f32.mrb[0].mxu0
        %v1417 = vpop.f32.mrb[0].mxu0
        %v1418 = vpop.f32.mrb[0].mxu0
        %1419 = vdwg.mxu0
        %v1420 = vunpack.c.l.b16 %v1120
        %v1421 = vpack.c.b16 %v1420, %v1420
        %1422 = vrot.lane.b32.xlu0 %v1421, 96
        %v1423 = vpop.permute.xlu0 %1422
        %v1425 = vsel %vm1125, %v1103, 0
        %v1428 = vsel %vm1125, %v1423, 0
        %1430 = vmatprep.subr.bf16.mxu0 0
        %1431 = vmatpush1.bf16.xpose.msra.mxu0 %v1428
        %1432 = vmatprep.subr.bf16.mxu0 0
        %1433 = vmatpush1.bf16.xpose.msra.mxu0 0
        %1434 = vmatprep.subr.bf16.mxu0 0
        %1435 = vmatpush1.bf16.xpose.msra.mxu0 0
        %1436 = vmatprep.subr.bf16.mxu0 0
        %1437 = vmatpush1.bf16.xpose.msra.mxu0 0
        %1438 = vmatprep.subr.bf16.mxu0 0
        %1439 = vmatpush1.bf16.xpose.msra.mxu0 0
        %1440 = vmatprep.subr.bf16.mxu0 0
        %1441 = vmatpush1.bf16.xpose.msra.mxu0 0
        %1442 = vmatprep.subr.bf16.mxu0 0
        %1443 = vmatpush1.bf16.xpose.msra.mxu0 0
        %1444 = vmatprep.subr.bf16.mxu0 0
        %1445 = vmatpush1.bf16.xpose.msra.mxu0 0
        %1446 = vmatprep.subr.bf16.mxu0 0
        %1447 = vmatpush1.bf16.xpose.msra.mxu0 0
        %1448 = vmatprep.subr.bf16.mxu0 0
        %1449 = vmatpush1.bf16.xpose.msra.mxu0 0
        %1450 = vmatprep.subr.bf16.mxu0 0
        %1451 = vmatpush1.bf16.xpose.msra.mxu0 0
        %1452 = vmatprep.subr.bf16.mxu0 0
        %1453 = vmatpush1.bf16.xpose.msra.mxu0 0
        %1454 = vmatprep.subr.bf16.mxu0 0
        %1455 = vmatpush1.bf16.xpose.msra.mxu0 0
        %1456 = vmatprep.subr.bf16.mxu0 0
        %1457 = vmatpush1.bf16.xpose.msra.mxu0 0
        %1458 = vmatprep.subr.bf16.mxu0 0
        %1459 = vmatpush1.bf16.xpose.msra.mxu0 0
        %1460 = vmatprep.subr.bf16.mxu0 0
        %1461 = vmatpush1.bf16.xpose.msra.mxu0 0
        %1462 = vmatprep.mubr.bf16.mxu0 0
        %1463 = vmatmul.mubr.bf16.gmra.mrb[0].mxu0 %v1425
        %v1464 = vpop.f32.mrb[0].mxu0
        %v1465 = vadd.f32 0.0, %v1464
        %v1466 = vpop.f32.mrb[0].mxu0
        %v1467 = vpop.f32.mrb[0].mxu0
        %v1468 = vpop.f32.mrb[0].mxu0
        %1469 = vdwg.mxu0
        %v1470 = vunpack.c.l.b16 %v1122
        %v1471 = vpack.c.b16 %v1470, %v1470
        %1472 = vrot.lane.b32.xlu0 %v1471, 96
        %v1473 = vpop.permute.xlu0 %1472
        %v1475 = vsel %vm1125, %v1105, 0
        %v1478 = vsel %vm1125, %v1473, 0
        %1480 = vmatprep.subr.bf16.mxu0 0
        %1481 = vmatpush1.bf16.xpose.msra.mxu0 %v1478
        %1482 = vmatprep.subr.bf16.mxu0 0
        %1483 = vmatpush1.bf16.xpose.msra.mxu0 0
        %1484 = vmatprep.subr.bf16.mxu0 0
        %1485 = vmatpush1.bf16.xpose.msra.mxu0 0
        %1486 = vmatprep.subr.bf16.mxu0 0
        %1487 = vmatpush1.bf16.xpose.msra.mxu0 0
        %1488 = vmatprep.subr.bf16.mxu0 0
        %1489 = vmatpush1.bf16.xpose.msra.mxu0 0
        %1490 = vmatprep.subr.bf16.mxu0 0
        %1491 = vmatpush1.bf16.xpose.msra.mxu0 0
        %1492 = vmatprep.subr.bf16.mxu0 0
        %1493 = vmatpush1.bf16.xpose.msra.mxu0 0
        %1494 = vmatprep.subr.bf16.mxu0 0
        %1495 = vmatpush1.bf16.xpose.msra.mxu0 0
        %1496 = vmatprep.subr.bf16.mxu0 0
        %1497 = vmatpush1.bf16.xpose.msra.mxu0 0
        %1498 = vmatprep.subr.bf16.mxu0 0
        %1499 = vmatpush1.bf16.xpose.msra.mxu0 0
        %1500 = vmatprep.subr.bf16.mxu0 0
        %1501 = vmatpush1.bf16.xpose.msra.mxu0 0
        %1502 = vmatprep.subr.bf16.mxu0 0
        %1503 = vmatpush1.bf16.xpose.msra.mxu0 0
        %1504 = vmatprep.subr.bf16.mxu0 0
        %1505 = vmatpush1.bf16.xpose.msra.mxu0 0
        %1506 = vmatprep.subr.bf16.mxu0 0
        %1507 = vmatpush1.bf16.xpose.msra.mxu0 0
        %1508 = vmatprep.subr.bf16.mxu0 0
        %1509 = vmatpush1.bf16.xpose.msra.mxu0 0
        %1510 = vmatprep.subr.bf16.mxu0 0
        %1511 = vmatpush1.bf16.xpose.msra.mxu0 0
        %1512 = vmatprep.mubr.bf16.mxu0 0
        %1513 = vmatmul.mubr.bf16.gmra.mrb[0].mxu0 %v1475
        %v1514 = vpop.f32.mrb[0].mxu0
        %v1515 = vadd.f32 0.0, %v1514
        %v1516 = vpop.f32.mrb[0].mxu0
        %v1517 = vpop.f32.mrb[0].mxu0
        %v1518 = vpop.f32.mrb[0].mxu0
        %1519 = vdwg.mxu0
        %v1520 = vld [vmem:[#allocation6] sm:$0x3]
        %v1523 = vunpack.c.l.s4 1966171168
        %v1524 = vunpack.c.0.s8 %v1523
        %v1525 = vlaneseq
        %v1526 = vshrl.u32 %v1525, 7
        %v1527 = vsub.s32 %v1524, %v1526
        %v1528 = vrot.slane %v1520, %v1527
        %v1529 = vcombine.high %v1528, %v1528
        %v1531 = vunpack.c.l.s4 1966171168
        %v1532 = vunpack.c.0.s8 %v1531
        %v1533 = vlaneseq
        %v1534 = vshrl.u32 %v1533, 7
        %v1535 = vsub.s32 %v1532, %v1534
        %v1536 = vrot.slane %v1528, %v1535
        %v1538 = vunpack.c.l.s4 1966171168
        %v1539 = vunpack.c.0.s8 %v1538
        %v1540 = vlaneseq
        %v1541 = vshrl.u32 %v1540, 7
        %v1542 = vsub.s32 %v1539, %v1541
        %v1543 = vrot.slane %v1529, %v1542
        %v1544 = vlaneseq
        %v1545 = vshrl.u32 %v1544, 7
        %v1546 = vsub.s32 0, %v1545
        %v1547 = vrot.slane %v1536, %v1546
        %v1548 = vlaneseq
        %v1549 = vshrl.u32 %v1548, 7
        %v1550 = vsub.s32 0, %v1549
        %v1551 = vrot.slane %v1543, %v1550
        %v1554 = vadd.f32 %v1167, %v1547
        %v1555 = vadd.f32 %v1215, %v1551
        %v1556 = vadd.f32 %v1265, %v1547
        %v1557 = vadd.f32 %v1315, %v1551
        %v1558 = vadd.f32 %v1365, %v1547
        %v1559 = vadd.f32 %v1415, %v1551
        %v1560 = vadd.f32 %v1465, %v1547
        %v1561 = vadd.f32 %v1515, %v1551
        %v1562 = vsel %vm1125, %v1554, -inf
        %1563 = vmax.xlane.f32.xlu0 %v1562
        %v1564 = vpop.xlane.xlu0 %1563
        %v1565 = vsel %vm1125, %v1555, -inf
        %1566 = vmax.xlane.f32.xlu0 %v1565
        %v1567 = vpop.xlane.xlu0 %1566
        %v1568 = vsel %vm1125, %v1556, -inf
        %1569 = vmax.xlane.f32.xlu0 %v1568
        %v1570 = vpop.xlane.xlu0 %1569
        %v1571 = vsel %vm1125, %v1557, -inf
        %1572 = vmax.xlane.f32.xlu0 %v1571
        %v1573 = vpop.xlane.xlu0 %1572
        %v1574 = vsel %vm1125, %v1558, -inf
        %1575 = vmax.xlane.f32.xlu0 %v1574
        %v1576 = vpop.xlane.xlu0 %1575
        %v1577 = vsel %vm1125, %v1559, -inf
        %1578 = vmax.xlane.f32.xlu0 %v1577
        %v1579 = vpop.xlane.xlu0 %1578
        %v1580 = vsel %vm1125, %v1560, -inf
        %1581 = vmax.xlane.f32.xlu0 %v1580
        %v1582 = vpop.xlane.xlu0 %1581
        %v1583 = vsel %vm1125, %v1561, -inf
        %1584 = vmax.xlane.f32.xlu0 %v1583
        %v1585 = vpop.xlane.xlu0 %1584
        %v1586 = vsub.f32 %v1554, %v1564
        %v1587 = vsub.f32 %v1555, %v1567
        %v1588 = vsub.f32 %v1556, %v1570
        %v1589 = vsub.f32 %v1557, %v1573
        %v1590 = vsub.f32 %v1558, %v1576
        %v1591 = vsub.f32 %v1559, %v1579
        %v1592 = vsub.f32 %v1560, %v1582
        %v1593 = vsub.f32 %v1561, %v1585
        %v1594 = vmul.f32 %v1586, 1.442695
        %v1595 = vpow.pop %v1594
        %v1596 = vmul.f32 %v1587, 1.442695
        %v1597 = vpow.pop %v1596
        %v1598 = vmul.f32 %v1588, 1.442695
        %v1599 = vpow.pop %v1598
        %v1600 = vmul.f32 %v1589, 1.442695
        %v1601 = vpow.pop %v1600
        %v1602 = vmul.f32 %v1590, 1.442695
        %v1603 = vpow.pop %v1602
        %v1604 = vmul.f32 %v1591, 1.442695
        %v1605 = vpow.pop %v1604
        %v1606 = vmul.f32 %v1592, 1.442695
        %v1607 = vpow.pop %v1606
        %v1608 = vmul.f32 %v1593, 1.442695
        %v1609 = vpow.pop %v1608
        %v1610 = vsel %vm1125, %v1595, 0.0
        %1611 = vadd.xlane.f32.xlu0 %v1610
        %v1612 = vpop.xlane.xlu0 %1611
        %v1613 = vsel %vm1125, %v1597, 0.0
        %1614 = vadd.xlane.f32.xlu0 %v1613
        %v1615 = vpop.xlane.xlu0 %1614
        %v1616 = vsel %vm1125, %v1599, 0.0
        %1617 = vadd.xlane.f32.xlu0 %v1616
        %v1618 = vpop.xlane.xlu0 %1617
        %v1619 = vsel %vm1125, %v1601, 0.0
        %1620 = vadd.xlane.f32.xlu0 %v1619
        %v1621 = vpop.xlane.xlu0 %1620
        %v1622 = vsel %vm1125, %v1603, 0.0
        %1623 = vadd.xlane.f32.xlu0 %v1622
        %v1624 = vpop.xlane.xlu0 %1623
        %v1625 = vsel %vm1125, %v1605, 0.0
        %1626 = vadd.xlane.f32.xlu0 %v1625
        %v1627 = vpop.xlane.xlu0 %1626
        %v1628 = vsel %vm1125, %v1607, 0.0
        %1629 = vadd.xlane.f32.xlu0 %v1628
        %v1630 = vpop.xlane.xlu0 %1629
        %v1631 = vsel %vm1125, %v1609, 0.0
        %1632 = vadd.xlane.f32.xlu0 %v1631
        %v1633 = vpop.xlane.xlu0 %1632
        %v1634 = vrcp.pop %v1612
        %v1635 = vrcp.pop %v1615
        %v1636 = vrcp.pop %v1618
        %v1637 = vrcp.pop %v1621
        %v1638 = vrcp.pop %v1624
        %v1639 = vrcp.pop %v1627
        %v1640 = vrcp.pop %v1630
        %v1641 = vrcp.pop %v1633
        %v1642 = vmul.f32 %v1595, %v1634
        %v1643 = vmul.f32 %v1597, %v1635
        %v1644 = vmul.f32 %v1599, %v1636
        %v1645 = vmul.f32 %v1601, %v1637
        %v1646 = vmul.f32 %v1603, %v1638
        %v1647 = vmul.f32 %v1605, %v1639
        %v1648 = vmul.f32 %v1607, %v1640
        %v1649 = vmul.f32 %v1609, %v1641
        %v1650 = vpack.c.bf16 %v1642, %v1642
        %v1651 = vpack.c.bf16 %v1643, %v1643
        %v1652 = vpack.c.bf16 %v1644, %v1644
        %v1653 = vpack.c.bf16 %v1645, %v1645
        %v1654 = vpack.c.bf16 %v1646, %v1646
        %v1655 = vpack.c.bf16 %v1647, %v1647
        %v1656 = vpack.c.bf16 %v1648, %v1648
        %v1657 = vpack.c.bf16 %v1649, %v1649
        %1658 = vrot.lane.b32.xlu0 %v1109, 64
        %v1659 = vpop.permute.xlu0 %1658
        %v1661 = vsel %vm1125, %v1650, 0
        %vm1663 = vcmask 1043456
        %v1665 = vsel %vm1663, %v1659, 0
        %1667 = vmatprep.subr.bf16.mxu0 0
        %1668 = vmatpush1.bf16.msra.mxu0 %v1665
        %1669 = vmatprep.subr.bf16.mxu0 0
        %1670 = vmatpush1.bf16.msra.mxu0 0
        %1671 = vmatprep.subr.bf16.mxu0 0
        %1672 = vmatpush1.bf16.msra.mxu0 0
        %1673 = vmatprep.subr.bf16.mxu0 0
        %1674 = vmatpush1.bf16.msra.mxu0 0
        %1675 = vmatprep.subr.bf16.mxu0 0
        %1676 = vmatpush1.bf16.msra.mxu0 0
        %1677 = vmatprep.subr.bf16.mxu0 0
        %1678 = vmatpush1.bf16.msra.mxu0 0
        %1679 = vmatprep.subr.bf16.mxu0 0
        %1680 = vmatpush1.bf16.msra.mxu0 0
        %1681 = vmatprep.subr.bf16.mxu0 0
        %1682 = vmatpush1.bf16.msra.mxu0 0
        %1683 = vmatprep.subr.bf16.mxu0 0
        %1684 = vmatpush1.bf16.msra.mxu0 0
        %1685 = vmatprep.subr.bf16.mxu0 0
        %1686 = vmatpush1.bf16.msra.mxu0 0
        %1687 = vmatprep.subr.bf16.mxu0 0
        %1688 = vmatpush1.bf16.msra.mxu0 0
        %1689 = vmatprep.subr.bf16.mxu0 0
        %1690 = vmatpush1.bf16.msra.mxu0 0
        %1691 = vmatprep.subr.bf16.mxu0 0
        %1692 = vmatpush1.bf16.msra.mxu0 0
        %1693 = vmatprep.subr.bf16.mxu0 0
        %1694 = vmatpush1.bf16.msra.mxu0 0
        %1695 = vmatprep.subr.bf16.mxu0 0
        %1696 = vmatpush1.bf16.msra.mxu0 0
        %1697 = vmatprep.subr.bf16.mxu0 0
        %1698 = vmatpush1.bf16.msra.mxu0 0
        %1699 = vmatprep.mubr.bf16.mxu0 0
        %1700 = vmatmul.mubr.bf16.gmra.mrb[0].mxu0 %v1661
        %v1701 = vpop.f32.mrb[0].mxu0
        %v1702 = vadd.f32 0.0, %v1701
        %v1703 = vpop.f32.mrb[0].mxu0
        %v1704 = vpop.f32.mrb[0].mxu0
        %v1705 = vpop.f32.mrb[0].mxu0
        %1706 = vdwg.mxu0
        %1707 = vrot.lane.b32.xlu0 %v1110, 64
        %v1708 = vpop.permute.xlu0 %1707
        %v1710 = vsel %vm1125, %v1651, 0
        %v1713 = vsel %vm1663, %v1708, 0
        %1715 = vmatprep.subr.bf16.mxu0 0
        %1716 = vmatpush1.bf16.msra.mxu0 %v1713
        %1717 = vmatprep.subr.bf16.mxu0 0
        %1718 = vmatpush1.bf16.msra.mxu0 0
        %1719 = vmatprep.subr.bf16.mxu0 0
        %1720 = vmatpush1.bf16.msra.mxu0 0
        %1721 = vmatprep.subr.bf16.mxu0 0
        %1722 = vmatpush1.bf16.msra.mxu0 0
        %1723 = vmatprep.subr.bf16.mxu0 0
        %1724 = vmatpush1.bf16.msra.mxu0 0
        %1725 = vmatprep.subr.bf16.mxu0 0
        %1726 = vmatpush1.bf16.msra.mxu0 0
        %1727 = vmatprep.subr.bf16.mxu0 0
        %1728 = vmatpush1.bf16.msra.mxu0 0
        %1729 = vmatprep.subr.bf16.mxu0 0
        %1730 = vmatpush1.bf16.msra.mxu0 0
        %1731 = vmatprep.subr.bf16.mxu0 0
        %1732 = vmatpush1.bf16.msra.mxu0 0
        %1733 = vmatprep.subr.bf16.mxu0 0
        %1734 = vmatpush1.bf16.msra.mxu0 0
        %1735 = vmatprep.subr.bf16.mxu0 0
        %1736 = vmatpush1.bf16.msra.mxu0 0
        %1737 = vmatprep.subr.bf16.mxu0 0
        %1738 = vmatpush1.bf16.msra.mxu0 0
        %1739 = vmatprep.subr.bf16.mxu0 0
        %1740 = vmatpush1.bf16.msra.mxu0 0
        %1741 = vmatprep.subr.bf16.mxu0 0
        %1742 = vmatpush1.bf16.msra.mxu0 0
        %1743 = vmatprep.subr.bf16.mxu0 0
        %1744 = vmatpush1.bf16.msra.mxu0 0
        %1745 = vmatprep.subr.bf16.mxu0 0
        %1746 = vmatpush1.bf16.msra.mxu0 0
        %1747 = vmatprep.mubr.bf16.mxu0 0
        %1748 = vmatmul.mubr.bf16.gmra.mrb[0].mxu0 %v1710
        %v1749 = vpop.f32.mrb[0].mxu0
        %v1750 = vadd.f32 0.0, %v1749
        %v1751 = vpop.f32.mrb[0].mxu0
        %v1752 = vpop.f32.mrb[0].mxu0
        %v1753 = vpop.f32.mrb[0].mxu0
        %1754 = vdwg.mxu0
        %1755 = vrot.lane.b32.xlu0 %v1221, 64
        %v1756 = vpop.permute.xlu0 %1755
        %v1758 = vsel %vm1125, %v1652, 0
        %v1761 = vsel %vm1663, %v1756, 0
        %1763 = vmatprep.subr.bf16.mxu0 0
        %1764 = vmatpush1.bf16.msra.mxu0 %v1761
        %1765 = vmatprep.subr.bf16.mxu0 0
        %1766 = vmatpush1.bf16.msra.mxu0 0
        %1767 = vmatprep.subr.bf16.mxu0 0
        %1768 = vmatpush1.bf16.msra.mxu0 0
        %1769 = vmatprep.subr.bf16.mxu0 0
        %1770 = vmatpush1.bf16.msra.mxu0 0
        %1771 = vmatprep.subr.bf16.mxu0 0
        %1772 = vmatpush1.bf16.msra.mxu0 0
        %1773 = vmatprep.subr.bf16.mxu0 0
        %1774 = vmatpush1.bf16.msra.mxu0 0
        %1775 = vmatprep.subr.bf16.mxu0 0
        %1776 = vmatpush1.bf16.msra.mxu0 0
        %1777 = vmatprep.subr.bf16.mxu0 0
        %1778 = vmatpush1.bf16.msra.mxu0 0
        %1779 = vmatprep.subr.bf16.mxu0 0
        %1780 = vmatpush1.bf16.msra.mxu0 0
        %1781 = vmatprep.subr.bf16.mxu0 0
        %1782 = vmatpush1.bf16.msra.mxu0 0
        %1783 = vmatprep.subr.bf16.mxu0 0
        %1784 = vmatpush1.bf16.msra.mxu0 0
        %1785 = vmatprep.subr.bf16.mxu0 0
        %1786 = vmatpush1.bf16.msra.mxu0 0
        %1787 = vmatprep.subr.bf16.mxu0 0
        %1788 = vmatpush1.bf16.msra.mxu0 0
        %1789 = vmatprep.subr.bf16.mxu0 0
        %1790 = vmatpush1.bf16.msra.mxu0 0
        %1791 = vmatprep.subr.bf16.mxu0 0
        %1792 = vmatpush1.bf16.msra.mxu0 0
        %1793 = vmatprep.subr.bf16.mxu0 0
        %1794 = vmatpush1.bf16.msra.mxu0 0
        %1795 = vmatprep.mubr.bf16.mxu0 0
        %1796 = vmatmul.mubr.bf16.gmra.mrb[0].mxu0 %v1758
        %v1797 = vpop.f32.mrb[0].mxu0
        %v1798 = vadd.f32 0.0, %v1797
        %v1799 = vpop.f32.mrb[0].mxu0
        %v1800 = vpop.f32.mrb[0].mxu0
        %v1801 = vpop.f32.mrb[0].mxu0
        %1802 = vdwg.mxu0
        %1803 = vrot.lane.b32.xlu0 %v1271, 64
        %v1804 = vpop.permute.xlu0 %1803
        %v1806 = vsel %vm1125, %v1653, 0
        %v1809 = vsel %vm1663, %v1804, 0
        %1811 = vmatprep.subr.bf16.mxu0 0
        %1812 = vmatpush1.bf16.msra.mxu0 %v1809
        %1813 = vmatprep.subr.bf16.mxu0 0
        %1814 = vmatpush1.bf16.msra.mxu0 0
        %1815 = vmatprep.subr.bf16.mxu0 0
        %1816 = vmatpush1.bf16.msra.mxu0 0
        %1817 = vmatprep.subr.bf16.mxu0 0
        %1818 = vmatpush1.bf16.msra.mxu0 0
        %1819 = vmatprep.subr.bf16.mxu0 0
        %1820 = vmatpush1.bf16.msra.mxu0 0
        %1821 = vmatprep.subr.bf16.mxu0 0
        %1822 = vmatpush1.bf16.msra.mxu0 0
        %1823 = vmatprep.subr.bf16.mxu0 0
        %1824 = vmatpush1.bf16.msra.mxu0 0
        %1825 = vmatprep.subr.bf16.mxu0 0
        %1826 = vmatpush1.bf16.msra.mxu0 0
        %1827 = vmatprep.subr.bf16.mxu0 0
        %1828 = vmatpush1.bf16.msra.mxu0 0
        %1829 = vmatprep.subr.bf16.mxu0 0
        %1830 = vmatpush1.bf16.msra.mxu0 0
        %1831 = vmatprep.subr.bf16.mxu0 0
        %1832 = vmatpush1.bf16.msra.mxu0 0
        %1833 = vmatprep.subr.bf16.mxu0 0
        %1834 = vmatpush1.bf16.msra.mxu0 0
        %1835 = vmatprep.subr.bf16.mxu0 0
        %1836 = vmatpush1.bf16.msra.mxu0 0
        %1837 = vmatprep.subr.bf16.mxu0 0
        %1838 = vmatpush1.bf16.msra.mxu0 0
        %1839 = vmatprep.subr.bf16.mxu0 0
        %1840 = vmatpush1.bf16.msra.mxu0 0
        %1841 = vmatprep.subr.bf16.mxu0 0
        %1842 = vmatpush1.bf16.msra.mxu0 0
        %1843 = vmatprep.mubr.bf16.mxu0 0
        %1844 = vmatmul.mubr.bf16.gmra.mrb[0].mxu0 %v1806
        %v1845 = vpop.f32.mrb[0].mxu0
        %v1846 = vadd.f32 0.0, %v1845
        %v1847 = vpop.f32.mrb[0].mxu0
        %v1848 = vpop.f32.mrb[0].mxu0
        %v1849 = vpop.f32.mrb[0].mxu0
        %1850 = vdwg.mxu0
        %1851 = vrot.lane.b32.xlu0 %v1321, 64
        %v1852 = vpop.permute.xlu0 %1851
        %v1854 = vsel %vm1125, %v1654, 0
        %v1857 = vsel %vm1663, %v1852, 0
        %1859 = vmatprep.subr.bf16.mxu0 0
        %1860 = vmatpush1.bf16.msra.mxu0 %v1857
        %1861 = vmatprep.subr.bf16.mxu0 0
        %1862 = vmatpush1.bf16.msra.mxu0 0
        %1863 = vmatprep.subr.bf16.mxu0 0
        %1864 = vmatpush1.bf16.msra.mxu0 0
        %1865 = vmatprep.subr.bf16.mxu0 0
        %1866 = vmatpush1.bf16.msra.mxu0 0
        %1867 = vmatprep.subr.bf16.mxu0 0
        %1868 = vmatpush1.bf16.msra.mxu0 0
        %1869 = vmatprep.subr.bf16.mxu0 0
        %1870 = vmatpush1.bf16.msra.mxu0 0
        %1871 = vmatprep.subr.bf16.mxu0 0
        %1872 = vmatpush1.bf16.msra.mxu0 0
        %1873 = vmatprep.subr.bf16.mxu0 0
        %1874 = vmatpush1.bf16.msra.mxu0 0
        %1875 = vmatprep.subr.bf16.mxu0 0
        %1876 = vmatpush1.bf16.msra.mxu0 0
        %1877 = vmatprep.subr.bf16.mxu0 0
        %1878 = vmatpush1.bf16.msra.mxu0 0
        %1879 = vmatprep.subr.bf16.mxu0 0
        %1880 = vmatpush1.bf16.msra.mxu0 0
        %1881 = vmatprep.subr.bf16.mxu0 0
        %1882 = vmatpush1.bf16.msra.mxu0 0
        %1883 = vmatprep.subr.bf16.mxu0 0
        %1884 = vmatpush1.bf16.msra.mxu0 0
        %1885 = vmatprep.subr.bf16.mxu0 0
        %1886 = vmatpush1.bf16.msra.mxu0 0
        %1887 = vmatprep.subr.bf16.mxu0 0
        %1888 = vmatpush1.bf16.msra.mxu0 0
        %1889 = vmatprep.subr.bf16.mxu0 0
        %1890 = vmatpush1.bf16.msra.mxu0 0
        %1891 = vmatprep.mubr.bf16.mxu0 0
        %1892 = vmatmul.mubr.bf16.gmra.mrb[0].mxu0 %v1854
        %v1893 = vpop.f32.mrb[0].mxu0
        %v1894 = vadd.f32 0.0, %v1893
        %v1895 = vpop.f32.mrb[0].mxu0
        %v1896 = vpop.f32.mrb[0].mxu0
        %v1897 = vpop.f32.mrb[0].mxu0
        %1898 = vdwg.mxu0
        %1899 = vrot.lane.b32.xlu0 %v1371, 64
        %v1900 = vpop.permute.xlu0 %1899
        %v1902 = vsel %vm1125, %v1655, 0
        %v1905 = vsel %vm1663, %v1900, 0
        %1907 = vmatprep.subr.bf16.mxu0 0
        %1908 = vmatpush1.bf16.msra.mxu0 %v1905
        %1909 = vmatprep.subr.bf16.mxu0 0
        %1910 = vmatpush1.bf16.msra.mxu0 0
        %1911 = vmatprep.subr.bf16.mxu0 0
        %1912 = vmatpush1.bf16.msra.mxu0 0
        %1913 = vmatprep.subr.bf16.mxu0 0
        %1914 = vmatpush1.bf16.msra.mxu0 0
        %1915 = vmatprep.subr.bf16.mxu0 0
        %1916 = vmatpush1.bf16.msra.mxu0 0
        %1917 = vmatprep.subr.bf16.mxu0 0
        %1918 = vmatpush1.bf16.msra.mxu0 0
        %1919 = vmatprep.subr.bf16.mxu0 0
        %1920 = vmatpush1.bf16.msra.mxu0 0
        %1921 = vmatprep.subr.bf16.mxu0 0
        %1922 = vmatpush1.bf16.msra.mxu0 0
        %1923 = vmatprep.subr.bf16.mxu0 0
        %1924 = vmatpush1.bf16.msra.mxu0 0
        %1925 = vmatprep.subr.bf16.mxu0 0
        %1926 = vmatpush1.bf16.msra.mxu0 0
        %1927 = vmatprep.subr.bf16.mxu0 0
        %1928 = vmatpush1.bf16.msra.mxu0 0
        %1929 = vmatprep.subr.bf16.mxu0 0
        %1930 = vmatpush1.bf16.msra.mxu0 0
        %1931 = vmatprep.subr.bf16.mxu0 0
        %1932 = vmatpush1.bf16.msra.mxu0 0
        %1933 = vmatprep.subr.bf16.mxu0 0
        %1934 = vmatpush1.bf16.msra.mxu0 0
        %1935 = vmatprep.subr.bf16.mxu0 0
        %1936 = vmatpush1.bf16.msra.mxu0 0
        %1937 = vmatprep.subr.bf16.mxu0 0
        %1938 = vmatpush1.bf16.msra.mxu0 0
        %1939 = vmatprep.mubr.bf16.mxu0 0
        %1940 = vmatmul.mubr.bf16.gmra.mrb[0].mxu0 %v1902
        %v1941 = vpop.f32.mrb[0].mxu0
        %v1942 = vadd.f32 0.0, %v1941
        %v1943 = vpop.f32.mrb[0].mxu0
        %v1944 = vpop.f32.mrb[0].mxu0
        %v1945 = vpop.f32.mrb[0].mxu0
        %1946 = vdwg.mxu0
        %1947 = vrot.lane.b32.xlu0 %v1421, 64
        %v1948 = vpop.permute.xlu0 %1947
        %v1950 = vsel %vm1125, %v1656, 0
        %v1953 = vsel %vm1663, %v1948, 0
        %1955 = vmatprep.subr.bf16.mxu0 0
        %1956 = vmatpush1.bf16.msra.mxu0 %v1953
        %1957 = vmatprep.subr.bf16.mxu0 0
        %1958 = vmatpush1.bf16.msra.mxu0 0
        %1959 = vmatprep.subr.bf16.mxu0 0
        %1960 = vmatpush1.bf16.msra.mxu0 0
        %1961 = vmatprep.subr.bf16.mxu0 0
        %1962 = vmatpush1.bf16.msra.mxu0 0
        %1963 = vmatprep.subr.bf16.mxu0 0
        %1964 = vmatpush1.bf16.msra.mxu0 0
        %1965 = vmatprep.subr.bf16.mxu0 0
        %1966 = vmatpush1.bf16.msra.mxu0 0
        %1967 = vmatprep.subr.bf16.mxu0 0
        %1968 = vmatpush1.bf16.msra.mxu0 0
        %1969 = vmatprep.subr.bf16.mxu0 0
        %1970 = vmatpush1.bf16.msra.mxu0 0
        %1971 = vmatprep.subr.bf16.mxu0 0
        %1972 = vmatpush1.bf16.msra.mxu0 0
        %1973 = vmatprep.subr.bf16.mxu0 0
        %1974 = vmatpush1.bf16.msra.mxu0 0
        %1975 = vmatprep.subr.bf16.mxu0 0
        %1976 = vmatpush1.bf16.msra.mxu0 0
        %1977 = vmatprep.subr.bf16.mxu0 0
        %1978 = vmatpush1.bf16.msra.mxu0 0
        %1979 = vmatprep.subr.bf16.mxu0 0
        %1980 = vmatpush1.bf16.msra.mxu0 0
        %1981 = vmatprep.subr.bf16.mxu0 0
        %1982 = vmatpush1.bf16.msra.mxu0 0
        %1983 = vmatprep.subr.bf16.mxu0 0
        %1984 = vmatpush1.bf16.msra.mxu0 0
        %1985 = vmatprep.subr.bf16.mxu0 0
        %1986 = vmatpush1.bf16.msra.mxu0 0
        %1987 = vmatprep.mubr.bf16.mxu0 0
        %1988 = vmatmul.mubr.bf16.gmra.mrb[0].mxu0 %v1950
        %v1989 = vpop.f32.mrb[0].mxu0
        %v1990 = vadd.f32 0.0, %v1989
        %v1991 = vpop.f32.mrb[0].mxu0
        %v1992 = vpop.f32.mrb[0].mxu0
        %v1993 = vpop.f32.mrb[0].mxu0
        %1994 = vdwg.mxu0
        %1995 = vrot.lane.b32.xlu0 %v1471, 64
        %v1996 = vpop.permute.xlu0 %1995
        %v1998 = vsel %vm1125, %v1657, 0
        %v2001 = vsel %vm1663, %v1996, 0
        %2003 = vmatprep.subr.bf16.mxu0 0
        %2004 = vmatpush1.bf16.msra.mxu0 %v2001
        %2005 = vmatprep.subr.bf16.mxu0 0
        %2006 = vmatpush1.bf16.msra.mxu0 0
        %2007 = vmatprep.subr.bf16.mxu0 0
        %2008 = vmatpush1.bf16.msra.mxu0 0
        %2009 = vmatprep.subr.bf16.mxu0 0
        %2010 = vmatpush1.bf16.msra.mxu0 0
        %2011 = vmatprep.subr.bf16.mxu0 0
        %2012 = vmatpush1.bf16.msra.mxu0 0
        %2013 = vmatprep.subr.bf16.mxu0 0
        %2014 = vmatpush1.bf16.msra.mxu0 0
        %2015 = vmatprep.subr.bf16.mxu0 0
        %2016 = vmatpush1.bf16.msra.mxu0 0
        %2017 = vmatprep.subr.bf16.mxu0 0
        %2018 = vmatpush1.bf16.msra.mxu0 0
        %2019 = vmatprep.subr.bf16.mxu0 0
        %2020 = vmatpush1.bf16.msra.mxu0 0
        %2021 = vmatprep.subr.bf16.mxu0 0
        %2022 = vmatpush1.bf16.msra.mxu0 0
        %2023 = vmatprep.subr.bf16.mxu0 0
        %2024 = vmatpush1.bf16.msra.mxu0 0
        %2025 = vmatprep.subr.bf16.mxu0 0
        %2026 = vmatpush1.bf16.msra.mxu0 0
        %2027 = vmatprep.subr.bf16.mxu0 0
        %2028 = vmatpush1.bf16.msra.mxu0 0
        %2029 = vmatprep.subr.bf16.mxu0 0
        %2030 = vmatpush1.bf16.msra.mxu0 0
        %2031 = vmatprep.subr.bf16.mxu0 0
        %2032 = vmatpush1.bf16.msra.mxu0 0
        %2033 = vmatprep.subr.bf16.mxu0 0
        %2034 = vmatpush1.bf16.msra.mxu0 0
        %2035 = vmatprep.mubr.bf16.mxu0 0
        %2036 = vmatmul.mubr.bf16.gmra.mrb[0].mxu0 %v1998
        %v2037 = vpop.f32.mrb[0].mxu0
        %v2038 = vadd.f32 0.0, %v2037
        %v2039 = vpop.f32.mrb[0].mxu0
        %v2040 = vpop.f32.mrb[0].mxu0
        %v2041 = vpop.f32.mrb[0].mxu0
        %2042 = vdwg.mxu0
        %v2043 = vld [vmem:[%s973] sm:$0xf]
        %v2044 = vld [vmem:[%s973 + $0x4] sm:$0xf]
        %v2045 = vld [vmem:[%s973 + $0x8] sm:$0xf]
        %v2046 = vld [vmem:[%s973 + $0xc] sm:$0xf]
        %v2047 = vpack.c.bf16 %v1750, %v1702
        %v2048 = vpack.c.bf16 %v1846, %v1798
        %v2050 = vsel %vm1125, %v2048, 0
        %v2053 = vsel %vm1663, %v2044, 0
        %2055 = vmatprep.subr.bf16.mxu0 0
        %2056 = vmatpush1.bf16.msra.mxu0 %v2053
        %2057 = vmatprep.subr.bf16.mxu0 0
        %2058 = vmatpush1.bf16.msra.mxu0 0
        %2059 = vmatprep.subr.bf16.mxu0 0
        %2060 = vmatpush1.bf16.msra.mxu0 0
        %2061 = vmatprep.subr.bf16.mxu0 0
        %2062 = vmatpush1.bf16.msra.mxu0 0
        %2063 = vmatprep.subr.bf16.mxu0 0
        %2064 = vmatpush1.bf16.msra.mxu0 0
        %2065 = vmatprep.subr.bf16.mxu0 0
        %2066 = vmatpush1.bf16.msra.mxu0 0
        %2067 = vmatprep.subr.bf16.mxu0 0
        %2068 = vmatpush1.bf16.msra.mxu0 0
        %2069 = vmatprep.subr.bf16.mxu0 0
        %2070 = vmatpush1.bf16.msra.mxu0 0
        %2071 = vmatprep.subr.bf16.mxu0 0
        %2072 = vmatpush1.bf16.msra.mxu0 0
        %2073 = vmatprep.subr.bf16.mxu0 0
        %2074 = vmatpush1.bf16.msra.mxu0 0
        %2075 = vmatprep.subr.bf16.mxu0 0
        %2076 = vmatpush1.bf16.msra.mxu0 0
        %2077 = vmatprep.subr.bf16.mxu0 0
        %2078 = vmatpush1.bf16.msra.mxu0 0
        %2079 = vmatprep.subr.bf16.mxu0 0
        %2080 = vmatpush1.bf16.msra.mxu0 0
        %2081 = vmatprep.subr.bf16.mxu0 0
        %2082 = vmatpush1.bf16.msra.mxu0 0
        %2083 = vmatprep.subr.bf16.mxu0 0
        %2084 = vmatpush1.bf16.msra.mxu0 0
        %2085 = vmatprep.subr.bf16.mxu0 0
        %2086 = vmatpush1.bf16.msra.mxu0 0
        %2087 = vmatprep.mubr.bf16.mxu0 0
        %2088 = vmatmul.mubr.bf16.gmra.mrb[0].mxu0 %v2050
        %v2089 = vpop.f32.mrb[0].mxu0
        %v2090 = vadd.f32 0.0, %v2089
        %v2091 = vpop.f32.mrb[0].mxu0
        %v2092 = vpop.f32.mrb[0].mxu0
        %v2093 = vadd.f32 0.0, %v2092
        %v2094 = vpop.f32.mrb[0].mxu0
        %2095 = vdwg.mxu0
        %v2097 = vsel %vm1125, %v2047, 0
        %v2100 = vsel %vm1663, %v2043, 0
        %2102 = vmatprep.subr.bf16.mxu0 0
        %2103 = vmatpush1.bf16.msra.mxu0 %v2100
        %2104 = vmatprep.subr.bf16.mxu0 0
        %2105 = vmatpush1.bf16.msra.mxu0 0
        %2106 = vmatprep.subr.bf16.mxu0 0
        %2107 = vmatpush1.bf16.msra.mxu0 0
        %2108 = vmatprep.subr.bf16.mxu0 0
        %2109 = vmatpush1.bf16.msra.mxu0 0
        %2110 = vmatprep.subr.bf16.mxu0 0
        %2111 = vmatpush1.bf16.msra.mxu0 0
        %2112 = vmatprep.subr.bf16.mxu0 0
        %2113 = vmatpush1.bf16.msra.mxu0 0
        %2114 = vmatprep.subr.bf16.mxu0 0
        %2115 = vmatpush1.bf16.msra.mxu0 0
        %2116 = vmatprep.subr.bf16.mxu0 0
        %2117 = vmatpush1.bf16.msra.mxu0 0
        %2118 = vmatprep.subr.bf16.mxu0 0
        %2119 = vmatpush1.bf16.msra.mxu0 0
        %2120 = vmatprep.subr.bf16.mxu0 0
        %2121 = vmatpush1.bf16.msra.mxu0 0
        %2122 = vmatprep.subr.bf16.mxu0 0
        %2123 = vmatpush1.bf16.msra.mxu0 0
        %2124 = vmatprep.subr.bf16.mxu0 0
        %2125 = vmatpush1.bf16.msra.mxu0 0
        %2126 = vmatprep.subr.bf16.mxu0 0
        %2127 = vmatpush1.bf16.msra.mxu0 0
        %2128 = vmatprep.subr.bf16.mxu0 0
        %2129 = vmatpush1.bf16.msra.mxu0 0
        %2130 = vmatprep.subr.bf16.mxu0 0
        %2131 = vmatpush1.bf16.msra.mxu0 0
        %2132 = vmatprep.subr.bf16.mxu0 0
        %2133 = vmatpush1.bf16.msra.mxu0 0
        %2134 = vmatprep.mubr.bf16.mxu0 0
        %2135 = vmatmul.mubr.bf16.gmra.mrb[0].mxu0 %v2097
        %v2136 = vpop.f32.mrb[0].mxu0
        %v2137 = vadd.f32 %v2090, %v2136
        %v2138 = vpop.f32.mrb[0].mxu0
        %v2139 = vpop.f32.mrb[0].mxu0
        %v2140 = vadd.f32 %v2093, %v2139
        %v2141 = vpop.f32.mrb[0].mxu0
        %2142 = vdwg.mxu0
        %v2143 = vpack.c.bf16 %v1942, %v1894
        %v2145 = vsel %vm1125, %v2143, 0
        %v2148 = vsel %vm1663, %v2045, 0
        %2150 = vmatprep.subr.bf16.mxu0 0
        %2151 = vmatpush1.bf16.msra.mxu0 %v2148
        %2152 = vmatprep.subr.bf16.mxu0 0
        %2153 = vmatpush1.bf16.msra.mxu0 0
        %2154 = vmatprep.subr.bf16.mxu0 0
        %2155 = vmatpush1.bf16.msra.mxu0 0
        %2156 = vmatprep.subr.bf16.mxu0 0
        %2157 = vmatpush1.bf16.msra.mxu0 0
        %2158 = vmatprep.subr.bf16.mxu0 0
        %2159 = vmatpush1.bf16.msra.mxu0 0
        %2160 = vmatprep.subr.bf16.mxu0 0
        %2161 = vmatpush1.bf16.msra.mxu0 0
        %2162 = vmatprep.subr.bf16.mxu0 0
        %2163 = vmatpush1.bf16.msra.mxu0 0
        %2164 = vmatprep.subr.bf16.mxu0 0
        %2165 = vmatpush1.bf16.msra.mxu0 0
        %2166 = vmatprep.subr.bf16.mxu0 0
        %2167 = vmatpush1.bf16.msra.mxu0 0
        %2168 = vmatprep.subr.bf16.mxu0 0
        %2169 = vmatpush1.bf16.msra.mxu0 0
        %2170 = vmatprep.subr.bf16.mxu0 0
        %2171 = vmatpush1.bf16.msra.mxu0 0
        %2172 = vmatprep.subr.bf16.mxu0 0
        %2173 = vmatpush1.bf16.msra.mxu0 0
        %2174 = vmatprep.subr.bf16.mxu0 0
        %2175 = vmatpush1.bf16.msra.mxu0 0
        %2176 = vmatprep.subr.bf16.mxu0 0
        %2177 = vmatpush1.bf16.msra.mxu0 0
        %2178 = vmatprep.subr.bf16.mxu0 0
        %2179 = vmatpush1.bf16.msra.mxu0 0
        %2180 = vmatprep.subr.bf16.mxu0 0
        %2181 = vmatpush1.bf16.msra.mxu0 0
        %2182 = vmatprep.mubr.bf16.mxu0 0
        %2183 = vmatmul.mubr.bf16.gmra.mrb[0].mxu0 %v2145
        %v2184 = vpop.f32.mrb[0].mxu0
        %v2185 = vadd.f32 0.0, %v2184
        %v2186 = vpop.f32.mrb[0].mxu0
        %v2187 = vpop.f32.mrb[0].mxu0
        %v2188 = vadd.f32 0.0, %v2187
        %v2189 = vpop.f32.mrb[0].mxu0
        %2190 = vdwg.mxu0
        %v2191 = vadd.f32 %v2137, %v2185
        %v2192 = vadd.f32 %v2140, %v2188
        %v2193 = vpack.c.bf16 %v2038, %v1990
        %v2195 = vsel %vm1125, %v2193, 0
        %v2198 = vsel %vm1663, %v2046, 0
        %2200 = vmatprep.subr.bf16.mxu0 0
        %2201 = vmatpush1.bf16.msra.mxu0 %v2198
        %2202 = vmatprep.subr.bf16.mxu0 0
        %2203 = vmatpush1.bf16.msra.mxu0 0
        %2204 = vmatprep.subr.bf16.mxu0 0
        %2205 = vmatpush1.bf16.msra.mxu0 0
        %2206 = vmatprep.subr.bf16.mxu0 0
        %2207 = vmatpush1.bf16.msra.mxu0 0
        %2208 = vmatprep.subr.bf16.mxu0 0
        %2209 = vmatpush1.bf16.msra.mxu0 0
        %2210 = vmatprep.subr.bf16.mxu0 0
        %2211 = vmatpush1.bf16.msra.mxu0 0
        %2212 = vmatprep.subr.bf16.mxu0 0
        %2213 = vmatpush1.bf16.msra.mxu0 0
        %2214 = vmatprep.subr.bf16.mxu0 0
        %2215 = vmatpush1.bf16.msra.mxu0 0
        %2216 = vmatprep.subr.bf16.mxu0 0
        %2217 = vmatpush1.bf16.msra.mxu0 0
        %2218 = vmatprep.subr.bf16.mxu0 0
        %2219 = vmatpush1.bf16.msra.mxu0 0
        %2220 = vmatprep.subr.bf16.mxu0 0
        %2221 = vmatpush1.bf16.msra.mxu0 0
        %2222 = vmatprep.subr.bf16.mxu0 0
        %2223 = vmatpush1.bf16.msra.mxu0 0
        %2224 = vmatprep.subr.bf16.mxu0 0
        %2225 = vmatpush1.bf16.msra.mxu0 0
        %2226 = vmatprep.subr.bf16.mxu0 0
        %2227 = vmatpush1.bf16.msra.mxu0 0
        %2228 = vmatprep.subr.bf16.mxu0 0
        %2229 = vmatpush1.bf16.msra.mxu0 0
        %2230 = vmatprep.subr.bf16.mxu0 0
        %2231 = vmatpush1.bf16.msra.mxu0 0
        %2232 = vmatprep.mubr.bf16.mxu0 0
        %2233 = vmatmul.mubr.bf16.gmra.mrb[0].mxu0 %v2195
        %v2234 = vpop.f32.mrb[0].mxu0
        %v2235 = vadd.f32 0.0, %v2234
        %v2236 = vpop.f32.mrb[0].mxu0
        %v2237 = vpop.f32.mrb[0].mxu0
        %v2238 = vadd.f32 0.0, %v2237
        %v2239 = vpop.f32.mrb[0].mxu0
        %2240 = vdwg.mxu0
        %v2241 = vadd.f32 %v2191, %v2235
        %v2242 = vadd.f32 %v2192, %v2238
        %v2243 = vld [vmem:[%s828] sm:$0x1]
        %v2245 = vlaneseq
        %v2246 = vshrl.u32 %v2245, 7
        %v2247 = vsub.s32 0, %v2246
        %v2248 = vrot.slane %v2243, %v2247
        %v2250 = vadd.f32 %v2241, %v2248
        %v2251 = vadd.f32 %v2242, %v2248
        %v2252 = vadd.f32 %v1016, %v2250
        %v2253 = vadd.f32 %v1017, %v2251
        %v2254 = vld [vmem:[%s836] sm:$0x1]
        %v2255 = vld [vmem:[%s844] sm:$0x1]
        %v2256 = vsel %vm1042, %v2252, 0.0
        %2257 = vadd.xlane.f32.xlu0 %v2256
        %v2258 = vpop.xlane.xlu0 %2257
        %v2259 = vsel %vm1042, %v2253, 0.0
        %2260 = vadd.xlane.f32.xlu0 %v2259
        %v2261 = vpop.xlane.xlu0 %2260
        %v2262 = vrcp.pop 32.0
        %v2263 = vmul.f32 %v2258, %v2262
        %v2264 = vmul.f32 %v2261, %v2262
        %v2265 = vsub.f32 %v2252, %v2263
        %v2266 = vsub.f32 %v2253, %v2264
        %v2267 = vmul.f32 %v2265, %v2265
        %v2268 = vmul.f32 %v2266, %v2266
        %v2269 = vsel %vm1042, %v2267, 0.0
        %2270 = vadd.xlane.f32.xlu0 %v2269
        %v2271 = vpop.xlane.xlu0 %2270
        %v2272 = vsel %vm1042, %v2268, 0.0
        %2273 = vadd.xlane.f32.xlu0 %v2272
        %v2274 = vpop.xlane.xlu0 %2273
        %v2275 = vmul.f32 %v2271, %v2262
        %v2276 = vmul.f32 %v2274, %v2262
        %v2277 = vadd.f32 %v2275, 1e-12
        %v2278 = vadd.f32 %v2276, 1e-12
        %v2279 = vrsqrt.pop %v2277
        %v2280 = vrsqrt.pop %v2278
        %v2281 = vmul.f32 %v2265, %v2279
        %v2282 = vmul.f32 %v2266, %v2280
        %v2284 = vlaneseq
        %v2285 = vshrl.u32 %v2284, 7
        %v2286 = vsub.s32 0, %v2285
        %v2287 = vrot.slane %v2254, %v2286
        %v2289 = vmul.f32 %v2281, %v2287
        %v2290 = vmul.f32 %v2282, %v2287
        %v2292 = vlaneseq
        %v2293 = vshrl.u32 %v2292, 7
        %v2294 = vsub.s32 0, %v2293
        %v2295 = vrot.slane %v2255, %v2294
        %v2297 = vadd.f32 %v2289, %v2295
        %v2298 = vadd.f32 %v2290, %v2295
        %v2299 = vpack.c.bf16 %v2298, %v2297
        %v2300 = vld [vmem:[%s978] sm:$0xf]
        %v2301 = vld [vmem:[%s978 + $0x4] sm:$0xf]
        %v2302 = vld [vmem:[%s978 + $0x8] sm:$0xf]
        %v2303 = vld [vmem:[%s978 + $0xc] sm:$0xf]
        %v2304 = vld [vmem:[%s852] sm:$0x1]
        %v2306 = vlaneseq
        %v2307 = vshrl.u32 %v2306, 7
        %v2308 = vsub.s32 0, %v2307
        %v2309 = vrot.slane %v2304, %v2308
        %v2315 = vunpack.c.l.b16 %v2300
        %v2316 = vunpack.c.l.b16 %v2301
        %v2317 = vunpack.c.l.b16 %v2302
        %v2318 = vunpack.c.l.b16 %v2303
        %v2319 = vpack.c.b16 %v2316, %v2315
        %v2320 = vpack.c.b16 %v2318, %v2317
        %v2324 = vsel %vm1042, %v2299, 0
        %2326 = vmatprep.subr.bf16.mxu0 0
        %2327 = vmatpush1.bf16.msra.mxu0 %v2319
        %2328 = vmatprep.subr.bf16.mxu0 0
        %2329 = vmatpush1.bf16.msra.mxu0 %v2320
        %2330 = vmatprep.subr.bf16.mxu0 0
        %2331 = vmatpush1.bf16.msra.mxu0 0
        %2332 = vmatprep.subr.bf16.mxu0 0
        %2333 = vmatpush1.bf16.msra.mxu0 0
        %2334 = vmatprep.subr.bf16.mxu0 0
        %2335 = vmatpush1.bf16.msra.mxu0 0
        %2336 = vmatprep.subr.bf16.mxu0 0
        %2337 = vmatpush1.bf16.msra.mxu0 0
        %2338 = vmatprep.subr.bf16.mxu0 0
        %2339 = vmatpush1.bf16.msra.mxu0 0
        %2340 = vmatprep.subr.bf16.mxu0 0
        %2341 = vmatpush1.bf16.msra.mxu0 0
        %2342 = vmatprep.subr.bf16.mxu0 0
        %2343 = vmatpush1.bf16.msra.mxu0 0
        %2344 = vmatprep.subr.bf16.mxu0 0
        %2345 = vmatpush1.bf16.msra.mxu0 0
        %2346 = vmatprep.subr.bf16.mxu0 0
        %2347 = vmatpush1.bf16.msra.mxu0 0
        %2348 = vmatprep.subr.bf16.mxu0 0
        %2349 = vmatpush1.bf16.msra.mxu0 0
        %2350 = vmatprep.subr.bf16.mxu0 0
        %2351 = vmatpush1.bf16.msra.mxu0 0
        %2352 = vmatprep.subr.bf16.mxu0 0
        %2353 = vmatpush1.bf16.msra.mxu0 0
        %2354 = vmatprep.subr.bf16.mxu0 0
        %2355 = vmatpush1.bf16.msra.mxu0 0
        %2356 = vmatprep.subr.bf16.mxu0 0
        %2357 = vmatpush1.bf16.msra.mxu0 0
        %2358 = vmatprep.mubr.bf16.mxu0 0
        %2359 = vmatmul.mubr.bf16.gmra.mrb[0].mxu0 %v2324
        %v2360 = vpop.f32.mrb[0].mxu0
        %v2361 = vadd.f32 %v2309, %v2360
        %v2362 = vpop.f32.mrb[0].mxu0
        %v2363 = vpop.f32.mrb[0].mxu0
        %v2364 = vadd.f32 %v2309, %v2363
        %v2365 = vpop.f32.mrb[0].mxu0
        %2366 = vdwg.mxu0
        %v2367 = vmul.f32 %v2361, 0.5
        %v2368 = vmul.f32 %v2364, 0.5
        %v2369 = vmul.f32 %v2361, 0.044715
        %v2370 = vmul.f32 %v2364, 0.044715
        %v2371 = vmul.f32 %v2369, %v2361
        %v2372 = vmul.f32 %v2370, %v2364
        %v2373 = vmul.f32 %v2371, %v2361
        %v2374 = vmul.f32 %v2372, %v2364
        %v2375 = vadd.f32 %v2361, %v2373
        %v2376 = vadd.f32 %v2364, %v2374
        %v2377 = vmul.f32 %v2375, 0.7978846
        %v2378 = vmul.f32 %v2376, 0.7978846
        %v2379 = vtanh.pop %v2377
        %v2380 = vtanh.pop %v2378
        %v2381 = vadd.f32 %v2379, 1.0
        %v2382 = vadd.f32 %v2380, 1.0
        %v2383 = vmul.f32 %v2367, %v2381
        %v2384 = vmul.f32 %v2368, %v2382
        %v2385 = vpack.c.bf16 %v2384, %v2383
        %v2386 = vld [vmem:[%s983] sm:$0xf]
        %v2387 = vld [vmem:[%s983 + $0x4] sm:$0xf]
        %v2388 = vld [vmem:[%s983 + $0x8] sm:$0xf]
        %v2389 = vld [vmem:[%s983 + $0xc] sm:$0xf]
        %v2390 = vld [vmem:[%s983 + $0x10] sm:$0xf]
        %v2391 = vld [vmem:[%s983 + $0x14] sm:$0xf]
        %v2392 = vld [vmem:[%s983 + $0x18] sm:$0xf]
        %v2393 = vld [vmem:[%s983 + $0x1c] sm:$0xf]
        %v2394 = vld [vmem:[%s986] sm:$0x1]
        %v2396 = vlaneseq
        %v2397 = vshrl.u32 %v2396, 7
        %v2398 = vsub.s32 0, %v2397
        %v2399 = vrot.slane %v2394, %v2398
        %v2409 = vunpack.c.l.b16 %v2386
        %v2410 = vunpack.c.l.b16 %v2387
        %v2411 = vunpack.c.l.b16 %v2388
        %v2412 = vunpack.c.l.b16 %v2389
        %v2413 = vunpack.c.l.b16 %v2390
        %v2414 = vunpack.c.l.b16 %v2391
        %v2415 = vunpack.c.l.b16 %v2392
        %v2416 = vunpack.c.l.b16 %v2393
        %v2417 = vpack.c.b16 %v2410, %v2409
        %v2418 = vpack.c.b16 %v2412, %v2411
        %v2419 = vpack.c.b16 %v2414, %v2413
        %v2420 = vpack.c.b16 %v2416, %v2415
        %vm2425 = vcmask 523264
        %v2427 = vsel %vm2425, %v2385, 0
        %2429 = vmatprep.subr.bf16.mxu0 0
        %2430 = vmatpush1.bf16.msra.mxu0 %v2417
        %2431 = vmatprep.subr.bf16.mxu0 0
        %2432 = vmatpush1.bf16.msra.mxu0 %v2418
        %2433 = vmatprep.subr.bf16.mxu0 0
        %2434 = vmatpush1.bf16.msra.mxu0 %v2419
        %2435 = vmatprep.subr.bf16.mxu0 0
        %2436 = vmatpush1.bf16.msra.mxu0 %v2420
        %2437 = vmatprep.subr.bf16.mxu0 0
        %2438 = vmatpush1.bf16.msra.mxu0 0
        %2439 = vmatprep.subr.bf16.mxu0 0
        %2440 = vmatpush1.bf16.msra.mxu0 0
        %2441 = vmatprep.subr.bf16.mxu0 0
        %2442 = vmatpush1.bf16.msra.mxu0 0
        %2443 = vmatprep.subr.bf16.mxu0 0
        %2444 = vmatpush1.bf16.msra.mxu0 0
        %2445 = vmatprep.subr.bf16.mxu0 0
        %2446 = vmatpush1.bf16.msra.mxu0 0
        %2447 = vmatprep.subr.bf16.mxu0 0
        %2448 = vmatpush1.bf16.msra.mxu0 0
        %2449 = vmatprep.subr.bf16.mxu0 0
        %2450 = vmatpush1.bf16.msra.mxu0 0
        %2451 = vmatprep.subr.bf16.mxu0 0
        %2452 = vmatpush1.bf16.msra.mxu0 0
        %2453 = vmatprep.subr.bf16.mxu0 0
        %2454 = vmatpush1.bf16.msra.mxu0 0
        %2455 = vmatprep.subr.bf16.mxu0 0
        %2456 = vmatpush1.bf16.msra.mxu0 0
        %2457 = vmatprep.subr.bf16.mxu0 0
        %2458 = vmatpush1.bf16.msra.mxu0 0
        %2459 = vmatprep.subr.bf16.mxu0 0
        %2460 = vmatpush1.bf16.msra.mxu0 0
        %2461 = vmatprep.mubr.bf16.mxu0 0
        %2462 = vmatmul.mubr.bf16.gmra.mrb[0].mxu0 %v2427
        %v2463 = vpop.f32.mrb[0].mxu0
        %v2464 = vadd.f32 %v2399, %v2463
        %v2465 = vpop.f32.mrb[0].mxu0
        %v2466 = vpop.f32.mrb[0].mxu0
        %v2467 = vadd.f32 %v2399, %v2466
        %v2468 = vpop.f32.mrb[0].mxu0
        %2469 = vdwg.mxu0
        %v2470 = vadd.f32 %v2297, %v2464
        %v2471 = vadd.f32 %v2298, %v2467
        %v2472 = vld [vmem:[%s989] sm:$0x1]
        %v2473 = vld [vmem:[%s992] sm:$0x1]
        %v2474 = vsel %vm1042, %v2470, 0.0
        %2475 = vadd.xlane.f32.xlu0 %v2474
        %v2476 = vpop.xlane.xlu0 %2475
        %v2477 = vsel %vm1042, %v2471, 0.0
        %2478 = vadd.xlane.f32.xlu0 %v2477
        %v2479 = vpop.xlane.xlu0 %2478
        %v2480 = vmul.f32 %v2476, %v2262
        %v2481 = vmul.f32 %v2479, %v2262
        %v2482 = vsub.f32 %v2470, %v2480
        %v2483 = vsub.f32 %v2471, %v2481
        %v2484 = vmul.f32 %v2482, %v2482
        %v2485 = vmul.f32 %v2483, %v2483
        %v2486 = vsel %vm1042, %v2484, 0.0
        %2487 = vadd.xlane.f32.xlu0 %v2486
        %v2488 = vpop.xlane.xlu0 %2487
        %v2489 = vsel %vm1042, %v2485, 0.0
        %2490 = vadd.xlane.f32.xlu0 %v2489
        %v2491 = vpop.xlane.xlu0 %2490
        %v2492 = vmul.f32 %v2488, %v2262
        %v2493 = vmul.f32 %v2491, %v2262
        %v2494 = vadd.f32 %v2492, 1e-12
        %v2495 = vadd.f32 %v2493, 1e-12
        %v2496 = vrsqrt.pop %v2494
        %v2497 = vrsqrt.pop %v2495
        %v2498 = vmul.f32 %v2482, %v2496
        %v2499 = vmul.f32 %v2483, %v2497
        %v2501 = vlaneseq
        %v2502 = vshrl.u32 %v2501, 7
        %v2503 = vsub.s32 0, %v2502
        %v2504 = vrot.slane %v2472, %v2503
        %v2506 = vmul.f32 %v2498, %v2504
        %v2507 = vmul.f32 %v2499, %v2504
        %v2509 = vlaneseq
        %v2510 = vshrl.u32 %v2509, 7
        %v2511 = vsub.s32 0, %v2510
        %v2512 = vrot.slane %v2473, %v2511
        %v2514 = vadd.f32 %v2506, %v2512
        %v2515 = vadd.f32 %v2507, %v2512
        %2516 = vst.msk [vmem:[#allocation2] sm:$0xff] %vm1042, %v2514
        %2517 = vst.msk [vmem:[#allocation2 + $0x8] sm:$0xff] %vm1042, %v2515
        %v2518 = vpack.c.bf16 %v2514, %v2514
        %v2519 = vpack.c.bf16 %v2515, %v2515
        %vm2520 = vcmask 257024
        %2521 = vst.msk [vmem:[%s954] sm:$0xf] %vm2520, %v2518
        %2522 = vst.msk [vmem:[%s954 + $0x4] sm:$0xf] %vm2520, %v2519
        %p2523 = scmp.eq.s32.totalorder %s44, 2
        // Predicated region
        $region129: #{tpu_custom_call.1} parent=95 // pred_check
          %p2524 = pneg %p2523
        $region130: #{tpu_custom_call.1} parent=95 // pred_check_branch
          %2526 = sbr.rel (%p2524) target = $region132
        $region131: #{tpu_custom_call.1} parent=95 // pred_region
          %v2527 = vld [vmem:[%s14] sm:$0xf]
          %v2528 = vld [vmem:[%s14 + $0x4] sm:$0xf]
          %v2529 = vld [vmem:[%s14 + $0x8] sm:$0xf]
          %v2530 = vld [vmem:[%s14 + $0xc] sm:$0xf]
          %v2531 = vld [vmem:[%s15] sm:$0x1]
          %v2533 = vlaneseq
          %v2534 = vshrl.u32 %v2533, 7
          %v2535 = vsub.s32 0, %v2534
          %v2536 = vrot.slane %v2531, %v2535
          %v2540 = vunpack.c.l.b16 %v2518
          %v2541 = vunpack.c.l.b16 %v2519
          %v2542 = vrot.slane %v2541, 7
          %vm2543 = vcmask 1041409
          %v2544 = vsel %vm2543, %v2542, %v2540
          %v2545 = vpack.c.b16 %v2544, %v2544
          %v2550 = vunpack.c.l.b16 %v2527
          %v2551 = vunpack.c.l.b16 %v2528
          %v2552 = vunpack.c.l.b16 %v2529
          %v2553 = vunpack.c.l.b16 %v2530
          %v2554 = vpack.c.b16 %v2551, %v2550
          %v2555 = vpack.c.b16 %v2553, %v2552
          %v2559 = vsel %vm1042, %v2545, 0
          %2561 = vmatprep.subr.bf16.mxu0 0
          %2562 = vmatpush1.bf16.msra.mxu0 %v2554
          %2563 = vmatprep.subr.bf16.mxu0 0
          %2564 = vmatpush1.bf16.msra.mxu0 %v2555
          %2565 = vmatprep.subr.bf16.mxu0 0
          %2566 = vmatpush1.bf16.msra.mxu0 0
          %2567 = vmatprep.subr.bf16.mxu0 0
          %2568 = vmatpush1.bf16.msra.mxu0 0
          %2569 = vmatprep.subr.bf16.mxu0 0
          %2570 = vmatpush1.bf16.msra.mxu0 0
          %2571 = vmatprep.subr.bf16.mxu0 0
          %2572 = vmatpush1.bf16.msra.mxu0 0
          %2573 = vmatprep.subr.bf16.mxu0 0
          %2574 = vmatpush1.bf16.msra.mxu0 0
          %2575 = vmatprep.subr.bf16.mxu0 0
          %2576 = vmatpush1.bf16.msra.mxu0 0
          %2577 = vmatprep.subr.bf16.mxu0 0
          %2578 = vmatpush1.bf16.msra.mxu0 0
          %2579 = vmatprep.subr.bf16.mxu0 0
          %2580 = vmatpush1.bf16.msra.mxu0 0
          %2581 = vmatprep.subr.bf16.mxu0 0
          %2582 = vmatpush1.bf16.msra.mxu0 0
          %2583 = vmatprep.subr.bf16.mxu0 0
          %2584 = vmatpush1.bf16.msra.mxu0 0
          %2585 = vmatprep.subr.bf16.mxu0 0
          %2586 = vmatpush1.bf16.msra.mxu0 0
          %2587 = vmatprep.subr.bf16.mxu0 0
          %2588 = vmatpush1.bf16.msra.mxu0 0
          %2589 = vmatprep.subr.bf16.mxu0 0
          %2590 = vmatpush1.bf16.msra.mxu0 0
          %2591 = vmatprep.subr.bf16.mxu0 0
          %2592 = vmatpush1.bf16.msra.mxu0 0
          %2593 = vmatprep.mubr.bf16.mxu0 0
          %2594 = vmatmul.mubr.bf16.gmra.mrb[0].mxu0 %v2559
          %v2595 = vpop.f32.mrb[0].mxu0
          %v2596 = vadd.f32 %v2536, %v2595
          %v2597 = vpop.f32.mrb[0].mxu0
          %v2598 = vpop.f32.mrb[0].mxu0
          %v2599 = vpop.f32.mrb[0].mxu0
          %2600 = vdwg.mxu0
          %v2601 = vpack.c.bf16 %v2596, %v2596
          %v2602 = vld [vmem:[%s16] sm:$0xf]
          %v2603 = vld [vmem:[%s16 + $0x4] sm:$0xf]
          %v2604 = vld [vmem:[%s16 + $0x8] sm:$0xf]
          %v2605 = vld [vmem:[%s16 + $0xc] sm:$0xf]
          %v2606 = vld [vmem:[%s17] sm:$0x1]
          %v2608 = vlaneseq
          %v2609 = vshrl.u32 %v2608, 7
          %v2610 = vsub.s32 0, %v2609
          %v2611 = vrot.slane %v2606, %v2610
          %v2617 = vunpack.c.l.b16 %v2602
          %v2618 = vunpack.c.l.b16 %v2603
          %v2619 = vunpack.c.l.b16 %v2604
          %v2620 = vunpack.c.l.b16 %v2605
          %v2621 = vpack.c.b16 %v2618, %v2617
          %v2622 = vpack.c.b16 %v2620, %v2619
          %v2626 = vsel %vm1042, %v2601, 0
          %2628 = vmatprep.subr.bf16.mxu0 0
          %2629 = vmatpush1.bf16.msra.mxu0 %v2621
          %2630 = vmatprep.subr.bf16.mxu0 0
          %2631 = vmatpush1.bf16.msra.mxu0 %v2622
          %2632 = vmatprep.subr.bf16.mxu0 0
          %2633 = vmatpush1.bf16.msra.mxu0 0
          %2634 = vmatprep.subr.bf16.mxu0 0
          %2635 = vmatpush1.bf16.msra.mxu0 0
          %2636 = vmatprep.subr.bf16.mxu0 0
          %2637 = vmatpush1.bf16.msra.mxu0 0
          %2638 = vmatprep.subr.bf16.mxu0 0
          %2639 = vmatpush1.bf16.msra.mxu0 0
          %2640 = vmatprep.subr.bf16.mxu0 0
          %2641 = vmatpush1.bf16.msra.mxu0 0
          %2642 = vmatprep.subr.bf16.mxu0 0
          %2643 = vmatpush1.bf16.msra.mxu0 0
          %2644 = vmatprep.subr.bf16.mxu0 0
          %2645 = vmatpush1.bf16.msra.mxu0 0
          %2646 = vmatprep.subr.bf16.mxu0 0
          %2647 = vmatpush1.bf16.msra.mxu0 0
          %2648 = vmatprep.subr.bf16.mxu0 0
          %2649 = vmatpush1.bf16.msra.mxu0 0
          %2650 = vmatprep.subr.bf16.mxu0 0
          %2651 = vmatpush1.bf16.msra.mxu0 0
          %2652 = vmatprep.subr.bf16.mxu0 0
          %2653 = vmatpush1.bf16.msra.mxu0 0
          %2654 = vmatprep.subr.bf16.mxu0 0
          %2655 = vmatpush1.bf16.msra.mxu0 0
          %2656 = vmatprep.subr.bf16.mxu0 0
          %2657 = vmatpush1.bf16.msra.mxu0 0
          %2658 = vmatprep.subr.bf16.mxu0 0
          %2659 = vmatpush1.bf16.msra.mxu0 0
          %2660 = vmatprep.mubr.bf16.mxu0 0
          %2661 = vmatmul.mubr.bf16.gmra.mrb[0].mxu0 %v2626
          %v2662 = vpop.f32.mrb[0].mxu0
          %v2663 = vadd.f32 %v2611, %v2662
          %v2664 = vpop.f32.mrb[0].mxu0
          %v2665 = vpop.f32.mrb[0].mxu0
          %v2666 = vpop.f32.mrb[0].mxu0
          %2667 = vdwg.mxu0
          %2668 = vst [vmem:[#allocation14] sm:$0x3] %v2663
          %vm2669 = vcmask 1041408
          %v2670 = vsel %vm2669, %v2663, -inf
          %2671 = vmax.xlane.f32.xlu0 %v2670
          %v2672 = vpop.xlane.xlu0 %2671
          %v2673 = vsub.f32 %v2663, %v2672
          %v2674 = vmul.f32 %v2673, 1.442695
          %v2675 = vpow.pop %v2674
          %v2676 = vsel %vm2669, %v2675, 0.0
          %2677 = vadd.xlane.f32.xlu0 %v2676
          %v2678 = vpop.xlane.xlu0 %2677
          %v2679 = vlog2.pop %v2678
          %v2680 = vmul.f32 %v2679, 0.6931472
          %v2681 = vadd.f32 %v2680, %v2672
          %v2682 = vld [vmem:[%s996] sm:$0x3]
          %v2683 = vmul.f32 %v2682, %v2663
          %v2684 = vsel %vm2669, %v2683, 0.0
          %2685 = vadd.xlane.f32.xlu0 %v2684
          %v2686 = vpop.xlane.xlu0 %2685
          %v2687 = vsub.f32 %v2681, %v2686
          %vm2688 = vcmask 1024
          %2689 = vst.msk [vmem:[%s1001] sm:$0x3] %vm2688, %v2687
        $region132: #{tpu_custom_call.1} parent=95 // pred_fallthru
          _
        %s2690 = sand.u32 %s535, 1
        %s2691 = scalar_lea.sflag [#allocation5], %s2690
        %s2692 = sand.u32 %s535, 1
        %s2693 = smul.addr %s2692, 8
        %s2694 = scalar_lea.vmem [#allocation13], %s2693
        %p2695 = scmp.lt.s32.totalorder %s43, 0
        %s2696 = scalar_select %p2695, %s43, 0
        %s2697 = smul.addr %s2696, 2
        %s2698 = scalar_lea.vmem %s21, %s2697
        // Predicated region
        $region133: #{tpu_custom_call.1} parent=95 // pred_check
          %p2699 = pneg %p545
        $region134: #{tpu_custom_call.1} parent=95 // pred_check_branch
          %2701 = sbr.rel (%p2699) target = $region136
        $region135: #{tpu_custom_call.1} parent=95 // pred_region
          %s2702 = smul.u32 2, %s43
          %s2704 = ssub.s32 128, 128
          %2705 = vsyncadd %s2691, %s2704
          %s2706 = smul.addr %s44, 2
          %s2707 = sadd.s32 %s2702, %s2706
          %s2708 = smul.addr %s2707, 64
          %s2709 = scalar_lea.hbm %s19, %s2708
          %s2710 = sshll.u32 %s2694, 4
          %s2711 = int_to_ptr.vmem [resolvable:$true] %s2710
          %2716 = dma.vmem_to_hbm [thread:$0]  %s2711, 128, %s2709, %s2691, 64, 64, 4
        $region136: #{tpu_custom_call.1} parent=95 // pred_fallthru
          _
        // Predicated region
        $region137: #{tpu_custom_call.1} parent=95 // pred_check
          %p2717 = pneg %p571
        $region138: #{tpu_custom_call.1} parent=95 // pred_check_branch
          %2719 = sbr.rel (%p2717) target = $region140
        $region139: #{tpu_custom_call.1} parent=95 // pred_region
          %s2721 = ssub.s32 32, 32
          %2722 = vsyncadd [#allocation15], %s2721
          %s2723 = smul.addr %s43, 32
          %s2724 = scalar_lea.hbm %s20, %s2723
          %s2726 = sshll.u32 [#allocation14], 4
          %s2727 = int_to_ptr.vmem [resolvable:$true] %s2726
          %2729 = dma.vmem_to_hbm [thread:$0]  %s2727, 32, %s2724, [#allocation15]
        $region140: #{tpu_custom_call.1} parent=95 // pred_fallthru
          _
        // Predicated region
        $region141: #{tpu_custom_call.1} parent=95 // pred_check
          %p2730 = pneg %p597
        $region142: #{tpu_custom_call.1} parent=95 // pred_check_branch
          %2732 = sbr.rel (%p2730) target = $region144
        $region143: #{tpu_custom_call.1} parent=95 // pred_region
          _
        $region144: #{tpu_custom_call.1} parent=95 // pred_fallthru
          _
        // Predicated region
        $region145: #{tpu_custom_call.1} parent=95 // pred_check
          %p2733 = pneg %p571
        $region146: #{tpu_custom_call.1} parent=95 // pred_check_branch
          %2735 = sbr.rel (%p2733) target = $region148
        $region147: #{tpu_custom_call.1} parent=95 // pred_region
          %2736 = dma.done [#allocation15], 32
        $region148: #{tpu_custom_call.1} parent=95 // pred_fallthru
          _
        // Predicated region
        $region149: #{tpu_custom_call.1} parent=95 // pred_check
          %p2737 = pneg %p597
        $region150: #{tpu_custom_call.1} parent=95 // pred_check_branch
          %2739 = sbr.rel (%p2737) target = $region152
        $region151: #{tpu_custom_call.1} parent=95 // pred_region
          %p2740 = scmp.lt.s32.totalorder %s43, 0
          %s2741 = scalar_select %p2740, %s43, 0
          %s2742 = smul.addr %s2741, 2
          %s2743 = scalar_lea.vmem %s21, %s2742
        $region152: #{tpu_custom_call.1} parent=95 // pred_fallthru
          _
      $region96: #{tpu_custom_call.1} parent=5 // pred_fallthru
        _
      %p2744 = scmp.le.s32.totalorder 2, %s34
      // Predicated region
      $region153: #{tpu_custom_call.1} parent=5 // pred_check
        %p2745 = pneg %p2744
      $region154: #{tpu_custom_call.1} parent=5 // pred_check_branch
        %2747 = sbr.rel (%p2745) target = $region156
      $region155: #{tpu_custom_call.1} parent=5 // pred_region
        %s2748 = ssub.s32 %s34, 2
        // Predicated region
        $region157: #{tpu_custom_call.1} parent=155 // pred_check
          %p2749 = pneg %p551
        $region158: #{tpu_custom_call.1} parent=155 // pred_check_branch
          %2751 = sbr.rel (%p2749) target = $region160
        $region159: #{tpu_custom_call.1} parent=155 // pred_region
          %s2752 = sand.u32 %s536, 1
          %s2753 = scalar_lea.sflag [#allocation5], %s2752
          %s2754 = sand.u32 %s536, 1
          %s2755 = smul.addr %s2754, 8
          %s2756 = scalar_lea.vmem [#allocation13], %s2755
          %2757 = dma.done %s2753, 128
        $region160: #{tpu_custom_call.1} parent=155 // pred_fallthru
          _
      $region156: #{tpu_custom_call.1} parent=5 // pred_fallthru
        _
    $region6: #{tpu_custom_call.1} parent=1 // loop_footer
      %s38 = sadd.s32 1, %s34
    $region7: #{tpu_custom_call.1} parent=1 // loop_footer_branch
      %33 = sbr.rel target = $region3
    $region8: #{tpu_custom_call.1} parent=1 // loop_exit
      _
    %2758 = vsyncpa [#allocation4], 1
    %s2759 = scalar_lea.sflag [#allocation4], 1
    %2760 = vsyncpa %s2759, 1
    %2761 = vsyncpa [#allocation7], 1
    %2762 = vsyncpa [#allocation5], 1
    %s2763 = scalar_lea.sflag [#allocation5], 1
    %2764 = vsyncpa %s2763, 1
    %2765 = vsyncpa [#allocation15], 1

</llo_original>
